<compile_context>
chip_gen: v5e
topology: v5e:2x2
jax: 0.10.0
libtpu: 0.0.40
codegen_flags: <defaults>
</compile_context>

<pallas_src>
import jax
import jax.numpy as jnp
from jax.experimental import pallas as pl
from jax.experimental.pallas import tpu as pltpu

# ---- module hyper-parameters (match the PyTorch __init__ defaults) ----------
N_FFT = 1024
HOP = 256
WIN = 1024
SAMPLE_RATE = 48000
N_MELS = 80
N_FREQ = N_FFT // 2 + 1            # 513 torchaudio freq bins
F_USED = N_FFT // 2                # 512: Nyquist bin dropped (mel weight == 0), lane-aligned
M_PAD = 128                        # lane-padded mel bins
PADDING = (N_FFT - HOP) // 2       # 384 reflect pad each side (center=False wrapper)
TILE_R = 512                       # row tile; ~8 MiB VMEM working set (fits v5e 16 MiB scoped)


def _round_up(x, m):
    return ((x + m - 1) // m) * m


# ---- deterministic "parameter" construction (window, DFT basis, mel fbanks) -
def _hann_window_periodic(n):
    k = jnp.arange(n, dtype=jnp.float32)
    return 0.5 - 0.5 * jnp.cos(2.0 * jnp.pi * k / n)


def _dft_matrices(n_fft, n_freq):
    n = jnp.arange(n_fft, dtype=jnp.float32)[:, None]
    f = jnp.arange(n_freq, dtype=jnp.float32)[None, :]
    ang = 2.0 * jnp.pi * n * f / n_fft
    return jnp.cos(ang), -jnp.sin(ang)  # real / imag of exp(-i*ang)


def _melscale_fbanks(n_freqs, f_min, f_max, n_mels, sample_rate):
    # torchaudio.functional.melscale_fbanks, mel_scale="htk", norm=None
    all_freqs = jnp.linspace(0.0, sample_rate / 2.0, n_freqs)

    def hz_to_mel(f):
        return 2595.0 * jnp.log10(1.0 + f / 700.0)

    def mel_to_hz(m):
        return 700.0 * (jnp.power(10.0, m / 2595.0) - 1.0)

    m_pts = jnp.linspace(hz_to_mel(f_min), hz_to_mel(f_max), n_mels + 2)
    f_pts = mel_to_hz(m_pts)
    f_diff = f_pts[1:] - f_pts[:-1]
    slopes = f_pts[None, :] - all_freqs[:, None]          # (n_freqs, n_mels+2)
    down = -slopes[:, :-2] / f_diff[:-1]
    up = slopes[:, 2:] / f_diff[1:]
    fb = jnp.maximum(0.0, jnp.minimum(down, up))
    return fb.astype(jnp.float32)                         # (n_freqs, n_mels)


# ---- Pallas kernel: windowed-DFT matmul -> |.| -> mel matmul -----------------
def mel_kernel(frames_ref, cossin_ref, fb_ref, out_ref):
    x = frames_ref[...]                                   # (tile_r, n_fft) bf16
    # single MXU pass against [cos | sin] basis (Hann folded in), f32 accumulation
    y = jnp.dot(x, cossin_ref[...], preferred_element_type=jnp.float32)
    re = y[:, :F_USED]                                    # static, 128-aligned
    im = y[:, F_USED:]
    mag = jnp.sqrt(re * re + im * im)                     # power=None + abs => magnitude
    # bf16 mel matmul (~0.2-0.5% rel. err pre-**0.25); keep f32 here if bit-closeness matters.
    mel = jnp.dot(mag.astype(jnp.bfloat16), fb_ref[...],
                  preferred_element_type=jnp.float32)     # (tile_r, M_PAD) f32
    out_ref[...] = mel


def mel_spectrogram(waveform):
    """waveform: (B, T) float32 -> (B, n_mels, n_frames) float32."""
    waveform = waveform.astype(jnp.float32)
    B, T = waveform.shape

    # ---- glue: reflect pad + frame extraction (no gather: WIN == 4*HOP) -----
    x = jnp.pad(waveform, ((0, 0), (PADDING, PADDING)), mode="reflect")
    x = x.astype(jnp.bfloat16)          # cast BEFORE framing: the 4x-expanded
    L = x.shape[1]                      # frames array costs half the HBM bytes
    n_frames = (L - N_FFT) // HOP + 1
    L_pad = _round_up(L, HOP)
    if L_pad != L:
        x = jnp.pad(x, ((0, 0), (0, L_pad - L)))
    blocks = x.reshape(B, L_pad // HOP, HOP)
    frames = jnp.concatenate(
        [blocks[:, k:k + n_frames, :] for k in range(WIN // HOP)], axis=-1)
    frames = frames.reshape(B * n_frames, N_FFT)          # (R, n_fft) bf16
    # TODO(synk): stream overlapping waveform slabs ((tile_r+3, HOP) via manual
    # DMA) and do 4 accumulating matmuls against 256-row basis slices instead
    # of materializing this 4x frames array through HBM (wins grow with clip
    # length; kernel itself is compute-bound so kept simple here).

    # ---- row tiling: multiples of 16 (bf16 sublanes), >=2 even grid steps ----
    R = B * n_frames
    R16 = _round_up(R, 16)
    if R16 > 16:
        n_steps = max(2, -(-R16 // TILE_R))               # >=2 so v7x uses both TCs
        if n_steps % 2:
            n_steps += 1                                  # even split across 2 TCs
    else:
        n_steps = 1
    tile_r = _round_up(-(-R16 // n_steps), 16)
    R_pad = tile_r * n_steps
    if R_pad != R:
        frames = jnp.pad(frames, ((0, R_pad - R), (0, 0)))

    # ---- fold Hann window into the DFT basis; concat cos|sin into one RHS ---
    win = _hann_window_periodic(WIN)
    cos_m, sin_m = _dft_matrices(N_FFT, F_USED)           # bins 0..511 only
    cossin = jnp.concatenate(
        [win[:, None] * cos_m, win[:, None] * sin_m], axis=1
    ).astype(jnp.bfloat16)                                # (1024, 1024)

    fb = _melscale_fbanks(N_FREQ, 0.0, SAMPLE_RATE / 2.0, N_MELS, SAMPLE_RATE)
    fb = jnp.pad(fb[:F_USED], ((0, 0), (0, M_PAD - N_MELS)))
    fb = fb.astype(jnp.bfloat16)                          # (512, 128)

    out = pl.pallas_call(
        mel_kernel,
        out_shape=jax.ShapeDtypeStruct((R_pad, M_PAD), jnp.float32),
        grid=(R_pad // tile_r,),
        in_specs=[
            pl.BlockSpec((tile_r, N_FFT), lambda i: (i, 0)),        # streamed rows
            pl.BlockSpec((N_FFT, 2 * F_USED), lambda i: (0, 0),     # resident basis
                         pipeline_mode=pl.Buffered(1)),
            pl.BlockSpec((F_USED, M_PAD), lambda i: (0, 0),         # resident fbanks
                         pipeline_mode=pl.Buffered(1)),
        ],
        out_specs=pl.BlockSpec((tile_r, M_PAD), lambda i: (i, 0)),
        compiler_params=pltpu.CompilerParams(
            dimension_semantics=("parallel",)),
    )(frames, cossin, fb)

    # ---- tiny epilogue in plain JAX (normalize=True path) -------------------
    mel = out[:R, :N_MELS].reshape(B, n_frames, N_MELS)
    mel = jnp.transpose(mel, (0, 2, 1))                   # (B, n_mels, n_frames)
    # Global max over the whole packed batch, like torch.max(mel_spectrogram);
    # all-zero (silent) input yields NaN in the reference too.
    mel = mel / jnp.max(mel)
    mel = jnp.sqrt(jnp.sqrt(mel))                         # x ** 0.25 (mel >= 0)
    return mel
    # TODO(synk): normalize_log branch (default False) not implemented.


if __name__ == "__main__":
    key = jax.random.PRNGKey(0)
    # small input consistent with the module: batch=2, 4096 audio samples
    waveform = jax.random.normal(key, (2, 4096), dtype=jnp.float32)
    mel = jax.jit(mel_spectrogram)(waveform)
    jax.block_until_ready(mel)
    expected_frames = (4096 + 2 * PADDING - N_FFT) // HOP + 1   # 16
    assert mel.shape == (2, N_MELS, expected_frames), mel.shape
    assert bool(jnp.isfinite(mel).all())
    print("KERNEL_OK")
</pallas_src>

<mosaic_0001>
module attributes {stable_mosaic.version = 11 : i64} {
  func.func @mel_kernel(%arg0: i32, %arg1: memref<16x1024xbf16, #tpu.memory_space<vmem>>, %arg2: memref<1024x1024xbf16, #tpu.memory_space<vmem>>, %arg3: memref<512x128xbf16, #tpu.memory_space<vmem>>, %arg4: memref<16x128xf32, #tpu.memory_space<vmem>>) attributes {dimension_semantics = [#tpu.dimension_semantics<parallel>], iteration_bounds = array<i64: 2>, scalar_prefetch = 0 : i64, scratch_operands = 0 : i64, tpu.core_type = #tpu.core_type<tc>, window_params = [{transform_indices = @transform_0, window_bounds = array<i64: 16, 1024>}, {pipeline_mode = #tpu.pipeline_mode<synchronous>, transform_indices = @transform_1, window_bounds = array<i64: 1024, 1024>}, {pipeline_mode = #tpu.pipeline_mode<synchronous>, transform_indices = @transform_2, window_bounds = array<i64: 512, 128>}, {transform_indices = @transform_3, window_bounds = array<i64: 16, 128>}]} {
    %c0 = arith.constant 0 : index
    %c0_0 = arith.constant 0 : index
    %0 = vector.load %arg1[%c0, %c0_0] : memref<16x1024xbf16, #tpu.memory_space<vmem>>, vector<16x1024xbf16>
    %c0_1 = arith.constant 0 : index
    %c0_2 = arith.constant 0 : index
    %1 = vector.load %arg2[%c0_1, %c0_2] : memref<1024x1024xbf16, #tpu.memory_space<vmem>>, vector<1024x1024xbf16>
    %cst = arith.constant dense<0.000000e+00> : vector<16x1024xf32>
    %2 = tpu.matmul %0, %1, %cst {dimension_numbers = #tpu.dot_dimension_numbers<[1], [0], [0], [1], [0, 0, 1, 1], [], []>} : vector<16x1024xbf16>, vector<1024x1024xbf16>, vector<16x1024xf32> -> vector<16x1024xf32>
    %3 = vector.extract_strided_slice %2 {offsets = [0, 0], sizes = [16, 512], strides = [1, 1]} : vector<16x1024xf32> to vector<16x512xf32>
    %4 = vector.extract_strided_slice %2 {offsets = [0, 512], sizes = [16, 512], strides = [1, 1]} : vector<16x1024xf32> to vector<16x512xf32>
    %5 = arith.mulf %3, %3 : vector<16x512xf32>
    %6 = arith.mulf %4, %4 : vector<16x512xf32>
    %7 = arith.addf %5, %6 : vector<16x512xf32>
    %8 = math.sqrt %7 : vector<16x512xf32>
    %9 = arith.truncf %8 : vector<16x512xf32> to vector<16x512xbf16>
    %c0_3 = arith.constant 0 : index
    %c0_4 = arith.constant 0 : index
    %10 = vector.load %arg3[%c0_3, %c0_4] : memref<512x128xbf16, #tpu.memory_space<vmem>>, vector<512x128xbf16>
    %cst_5 = arith.constant dense<0.000000e+00> : vector<16x128xf32>
    %11 = tpu.matmul %9, %10, %cst_5 {dimension_numbers = #tpu.dot_dimension_numbers<[1], [0], [0], [1], [0, 0, 1, 1], [], []>} : vector<16x512xbf16>, vector<512x128xbf16>, vector<16x128xf32> -> vector<16x128xf32>
    %c0_6 = arith.constant 0 : index
    %c0_7 = arith.constant 0 : index
    %12 = vector.load %arg4[%c0_6, %c0_7] : memref<16x128xf32, #tpu.memory_space<vmem>>, vector<16x128xf32>
    tpu.vector_store %arg4[%c0_6, %c0_7], %11 {strides = array<i32>} : memref<16x128xf32, #tpu.memory_space<vmem>>, vector<16x128xf32>,
    return
  }
  func.func @transform_0(%arg0: i32) -> (i32, i32) {
    %c0_i32 = arith.constant 0 : i32
    %c0_i32_0 = arith.constant 0 : i32
    return %arg0, %c0_i32 : i32, i32
  }
  func.func @transform_1(%arg0: i32) -> (i32, i32) {
    %c0_i32 = arith.constant 0 : i32
    %c0_i32_0 = arith.constant 0 : i32
    %c0_i32_1 = arith.constant 0 : i32
    return %c0_i32, %c0_i32_0 : i32, i32
  }
  func.func @transform_2(%arg0: i32) -> (i32, i32) {
    %c0_i32 = arith.constant 0 : i32
    %c0_i32_0 = arith.constant 0 : i32
    %c0_i32_1 = arith.constant 0 : i32
    return %c0_i32, %c0_i32_0 : i32, i32
  }
  func.func @transform_3(%arg0: i32) -> (i32, i32) {
    %c0_i32 = arith.constant 0 : i32
    %c0_i32_0 = arith.constant 0 : i32
    return %arg0, %c0_i32 : i32, i32
  }
}

</mosaic_0001>

<llo_original>
// kernel: mel_spectrogram.1
$region0: #{mel_spectrogram.1}
  #allocation0 [shape = 'u32[]', space=smem, size = 0x4, offset = 0x4, fixed_abs, tag = 'smem constant byte address 0x4 - core index']
  #allocation1 [shape = 'u32[72,128]{1,0:T(1,128)}', space=vmem, size = 0x9000, scoped, tag = 'internal scratch']
  %s0 = inlined_call_operand.vmem [shape: bf16[32,1024], index: 0, kind: input, shape index: {}]
  %s1 = inlined_call_operand.vmem [shape: bf16[1024,1024], index: 1, kind: input, shape index: {}]
  %s2 = inlined_call_operand.vmem [shape: bf16[512,128], index: 2, kind: input, shape index: {}]
  %s3 = inlined_call_operand.vmem [shape: f32[32,128], index: 3, kind: output, shape index: {}]
  %s4 = sld [smem:[#allocation0]]
  $region45: #{mel_spectrogram.1} parent=0
    _
  %s6 = ssub.s32 1, %s4
  %s7 = scalar_select 0, %s6, %s4
  loop: start=0, step=1, limit=4
  $region2: #{mel_spectrogram.1} parent=0 // loop_pre_header
    _
  $region3: #{mel_spectrogram.1} parent=0 // loop_header
    %s9 = sphi 0, %s13
    %p10 = scmp.ge.s32.totalorder %s9, 4
    %s19 = sphi 0, %s21
    %s22 = sphi 0, %s19
    %s23 = sphi 0, %s22
    %s39 = sphi 0, %s23
    %s43 = sphi 0, %s43
    %s45 = sphi 0, %s43
    %s46 = sphi 0, %s45
    %s60 = sphi 0, %s46
    %s64 = sphi 0, %s64
    %s66 = sphi 0, %s64
    %s67 = sphi 0, %s66
    %s81 = sphi 0, %s67
    %s87 = sphi 0, %s89
    %s90 = sphi 0, %s87
    %s91 = sphi 0, %s90
    %s107 = sphi 0, %s91
  $region4: #{mel_spectrogram.1} parent=0 // loop_header_branch
    %12 = sbr.rel (%p10) target = $region8
  $region5: #{mel_spectrogram.1} parent=0 // loop_body
    %s14 = ssub.s32 %s9, 1
    %s15 = ssub.s32 %s9, 2
    %s16 = sadd.s32 %s9, 1
    %s17 = ssub.s32 %s9, %s16
    %p18 = scmp.eq.s32.totalorder %s17, 0
    %s20 = sadd.s32 %s19, 1
    %s21 = scalar_select %p18, %s19, %s20
    %p24 = pneg %p18
    %p25 = scmp.eq.s32.totalorder %s9, 1
    %p26 = por %p24, %p25
    %p27 = scmp.ne.s32.totalorder %s19, %s22
    %p28 = scmp.eq.s32.totalorder %s9, 0
    %p29 = por %p27, %p28
    %p30 = scmp.ne.s32.totalorder %s19, %s22
    %p31 = scmp.eq.s32.totalorder %s14, 1
    %p32 = por %p30, %p31
    %p33 = scmp.ne.s32.totalorder %s22, %s23
    %p34 = scmp.eq.s32.totalorder %s14, 0
    %p35 = por %p33, %p34
    %p36 = scmp.ne.s32.totalorder %s22, %s23
    %p37 = scmp.eq.s32.totalorder %s15, 1
    %p38 = por %p36, %p37
    %p40 = scmp.ne.s32.totalorder %s23, %s39
    %p41 = scmp.eq.s32.totalorder %s15, 0
    %p42 = por %p40, %p41
    %s44 = sadd.s32 %s43, 1
    %p47 = scmp.eq.s32.totalorder %s9, 1
    %p48 = scmp.ne.s32.totalorder %s43, %s45
    %p49 = scmp.eq.s32.totalorder %s9, 0
    %p50 = por %p48, %p49
    %p51 = scmp.ne.s32.totalorder %s43, %s45
    %p52 = scmp.eq.s32.totalorder %s14, 1
    %p53 = por %p51, %p52
    %p54 = scmp.ne.s32.totalorder %s45, %s46
    %p55 = scmp.eq.s32.totalorder %s14, 0
    %p56 = por %p54, %p55
    %p57 = scmp.ne.s32.totalorder %s45, %s46
    %p58 = scmp.eq.s32.totalorder %s15, 1
    %p59 = por %p57, %p58
    %p61 = scmp.ne.s32.totalorder %s46, %s60
    %p62 = scmp.eq.s32.totalorder %s15, 0
    %p63 = por %p61, %p62
    %s65 = sadd.s32 %s64, 1
    %p68 = scmp.eq.s32.totalorder %s9, 1
    %p69 = scmp.ne.s32.totalorder %s64, %s66
    %p70 = scmp.eq.s32.totalorder %s9, 0
    %p71 = por %p69, %p70
    %p72 = scmp.ne.s32.totalorder %s64, %s66
    %p73 = scmp.eq.s32.totalorder %s14, 1
    %p74 = por %p72, %p73
    %p75 = scmp.ne.s32.totalorder %s66, %s67
    %p76 = scmp.eq.s32.totalorder %s14, 0
    %p77 = por %p75, %p76
    %p78 = scmp.ne.s32.totalorder %s66, %s67
    %p79 = scmp.eq.s32.totalorder %s15, 1
    %p80 = por %p78, %p79
    %p82 = scmp.ne.s32.totalorder %s67, %s81
    %p83 = scmp.eq.s32.totalorder %s15, 0
    %p84 = por %p82, %p83
    %s85 = ssub.s32 %s9, %s16
    %p86 = scmp.eq.s32.totalorder %s85, 0
    %s88 = sadd.s32 %s87, 1
    %s89 = scalar_select %p86, %s87, %s88
    %p92 = pneg %p86
    %p93 = scmp.eq.s32.totalorder %s9, 1
    %p94 = por %p92, %p93
    %p95 = scmp.ne.s32.totalorder %s87, %s90
    %p96 = scmp.eq.s32.totalorder %s9, 0
    %p97 = por %p95, %p96
    %p98 = scmp.ne.s32.totalorder %s87, %s90
    %p99 = scmp.eq.s32.totalorder %s14, 1
    %p100 = por %p98, %p99
    %p101 = scmp.ne.s32.totalorder %s90, %s91
    %p102 = scmp.eq.s32.totalorder %s14, 0
    %p103 = por %p101, %p102
    %p104 = scmp.ne.s32.totalorder %s90, %s91
    %p105 = scmp.eq.s32.totalorder %s15, 1
    %p106 = por %p104, %p105
    %p108 = scmp.ne.s32.totalorder %s91, %s107
    %p109 = scmp.eq.s32.totalorder %s15, 0
    %p110 = por %p108, %p109
    %p111 = scmp.le.s32.totalorder 1, %s9
    %p112 = scmp.lt.s32.totalorder %s9, 3
    %p113 = pnand %p111, %p112
    %p114 = pneg %p113
    // Predicated region
    $region9: #{mel_spectrogram.1} parent=5 // pred_check
      _
    $region10: #{mel_spectrogram.1} parent=5 // pred_check_branch
      %116 = sbr.rel (%p113) target = $region12
    $region11: #{mel_spectrogram.1} parent=5 // pred_region
      %s117 = ssub.s32 %s9, 1
      // Predicated region
      $region13: #{mel_spectrogram.1} parent=11 // pred_check
        %p118 = pneg %p56
      $region14: #{mel_spectrogram.1} parent=11 // pred_check_branch
        %120 = sbr.rel (%p118) target = $region16
      $region15: #{mel_spectrogram.1} parent=11 // pred_region
        _
      $region16: #{mel_spectrogram.1} parent=11 // pred_fallthru
        _
      // Predicated region
      $region17: #{mel_spectrogram.1} parent=11 // pred_check
        %p121 = pneg %p77
      $region18: #{mel_spectrogram.1} parent=11 // pred_check_branch
        %123 = sbr.rel (%p121) target = $region20
      $region19: #{mel_spectrogram.1} parent=11 // pred_region
        _
      $region20: #{mel_spectrogram.1} parent=11 // pred_fallthru
        _
    $region12: #{mel_spectrogram.1} parent=5 // pred_fallthru
      _
    %p124 = scmp.lt.s32.totalorder %s9, 2
    // Predicated region
    $region21: #{mel_spectrogram.1} parent=5 // pred_check
      %p125 = pneg %p124
    $region22: #{mel_spectrogram.1} parent=5 // pred_check_branch
      %127 = sbr.rel (%p125) target = $region24
    $region23: #{mel_spectrogram.1} parent=5 // pred_region
      // Predicated region
      $region25: #{mel_spectrogram.1} parent=23 // pred_check
        %p128 = pneg %p29
      $region26: #{mel_spectrogram.1} parent=23 // pred_check_branch
        %130 = sbr.rel (%p128) target = $region28
      $region27: #{mel_spectrogram.1} parent=23 // pred_region
        %s131 = smul.u32 2, %s9
        %p132 = scmp.lt.s32.totalorder %s131, 3
        %s133 = scalar_select %p132, %s131, 3
        %s134 = smul.addr %s133, 8
        %s135 = smul.addr %s134, 4
        %s136 = scalar_lea.vmem %s0, %s135
        %s137 = smul.u32 2, %s9
      $region28: #{mel_spectrogram.1} parent=23 // pred_fallthru
        _
    $region24: #{mel_spectrogram.1} parent=5 // pred_fallthru
      _
    %p138 = scmp.le.s32.totalorder 1, %s9
    %p139 = scmp.lt.s32.totalorder %s9, 3
    %p140 = pnand %p138, %p139
    %p141 = pneg %p140
    // Predicated region
    $region29: #{mel_spectrogram.1} parent=5 // pred_check
      _
    $region30: #{mel_spectrogram.1} parent=5 // pred_check_branch
      %143 = sbr.rel (%p140) target = $region32
    $region31: #{mel_spectrogram.1} parent=5 // pred_region
      %s144 = ssub.s32 %s9, 1
      %s145 = smul.u32 2, %s14
      %p146 = scmp.lt.s32.totalorder %s145, 3
      %s147 = scalar_select %p146, %s145, 3
      %s148 = smul.addr %s147, 8
      %s149 = smul.addr %s148, 4
      %s150 = scalar_lea.vmem %s0, %s149
      %p151 = pneg %p35
      %p152 = pneg %p32
      %p153 = pneg %p56
      %p154 = pneg %p53
      %p155 = pneg %p77
      %p156 = pneg %p74
      %p157 = pneg %p103
      %p158 = pneg %p100
      %s159 = smul.u32 2, %s14
      %p160 = scmp.lt.s32.totalorder %s159, 3
      %s161 = scalar_select %p160, %s159, 3
      %s162 = smul.addr %s161, 8
      %s163 = scalar_lea.vmem %s3, %s162
      %s164 = smul.u32 2, %s14
      %p165 = scmp.lt.s32.totalorder %s164, 3
      %s166 = scalar_select %p165, %s164, 3
      %s167 = smul.addr %s166, 8
      %s168 = smul.addr %s167, 4
      %s169 = scalar_lea.vmem %s0, %s168
      %s170 = smul.u32 2, %s14
      %s171 = smul.u32 2, %s14
      %p172 = scmp.lt.s32.totalorder %s171, 3
      %s173 = scalar_select %p172, %s171, 3
      %s174 = smul.addr %s173, 8
      %s175 = scalar_lea.vmem %s3, %s174
      %s176 = smul.u32 2, %s14
      %v177 = vld [vmem:[%s169] sm:$0xff]
      %v178 = vld [vmem:[%s169 + $0x8] sm:$0xff]
      %v179 = vld [vmem:[%s169 + $0x10] sm:$0xff]
      %v180 = vld [vmem:[%s169 + $0x18] sm:$0xff]
      %v181 = vld [vmem:[%s169 + $0x20] sm:$0xff]
      %v182 = vld [vmem:[%s169 + $0x28] sm:$0xff]
      %v183 = vld [vmem:[%s169 + $0x30] sm:$0xff]
      %v184 = vld [vmem:[%s169 + $0x38] sm:$0xff]
      %v185 = vld [vmem:[%s1] sm:$0xff]
      %v186 = vld [vmem:[%s1 + $0x8] sm:$0xff]
      %v187 = vld [vmem:[%s1 + $0x10] sm:$0xff]
      %v188 = vld [vmem:[%s1 + $0x18] sm:$0xff]
      %v189 = vld [vmem:[%s1 + $0x20] sm:$0xff]
      %v190 = vld [vmem:[%s1 + $0x28] sm:$0xff]
      %v191 = vld [vmem:[%s1 + $0x30] sm:$0xff]
      %v192 = vld [vmem:[%s1 + $0x38] sm:$0xff]
      %v193 = vld [vmem:[%s1 + $0x40] sm:$0xff]
      %v194 = vld [vmem:[%s1 + $0x48] sm:$0xff]
      %v195 = vld [vmem:[%s1 + $0x50] sm:$0xff]
      %v196 = vld [vmem:[%s1 + $0x58] sm:$0xff]
      %v197 = vld [vmem:[%s1 + $0x60] sm:$0xff]
      %v198 = vld [vmem:[%s1 + $0x68] sm:$0xff]
      %v199 = vld [vmem:[%s1 + $0x70] sm:$0xff]
      %v200 = vld [vmem:[%s1 + $0x78] sm:$0xff]
      %v201 = vld [vmem:[%s1 + $0x80] sm:$0xff]
      %v202 = vld [vmem:[%s1 + $0x88] sm:$0xff]
      %v203 = vld [vmem:[%s1 + $0x90] sm:$0xff]
      %v204 = vld [vmem:[%s1 + $0x98] sm:$0xff]
      %v205 = vld [vmem:[%s1 + $0xa0] sm:$0xff]
      %v206 = vld [vmem:[%s1 + $0xa8] sm:$0xff]
      %v207 = vld [vmem:[%s1 + $0xb0] sm:$0xff]
      %v208 = vld [vmem:[%s1 + $0xb8] sm:$0xff]
      %v209 = vld [vmem:[%s1 + $0xc0] sm:$0xff]
      %v210 = vld [vmem:[%s1 + $0xc8] sm:$0xff]
      %v211 = vld [vmem:[%s1 + $0xd0] sm:$0xff]
      %v212 = vld [vmem:[%s1 + $0xd8] sm:$0xff]
      %v213 = vld [vmem:[%s1 + $0xe0] sm:$0xff]
      %v214 = vld [vmem:[%s1 + $0xe8] sm:$0xff]
      %v215 = vld [vmem:[%s1 + $0xf0] sm:$0xff]
      %v216 = vld [vmem:[%s1 + $0xf8] sm:$0xff]
      %v217 = vld [vmem:[%s1 + $0x100] sm:$0xff]
      %v218 = vld [vmem:[%s1 + $0x108] sm:$0xff]
      %v219 = vld [vmem:[%s1 + $0x110] sm:$0xff]
      %v220 = vld [vmem:[%s1 + $0x118] sm:$0xff]
      %v221 = vld [vmem:[%s1 + $0x120] sm:$0xff]
      %v222 = vld [vmem:[%s1 + $0x128] sm:$0xff]
      %v223 = vld [vmem:[%s1 + $0x130] sm:$0xff]
      %v224 = vld [vmem:[%s1 + $0x138] sm:$0xff]
      %v225 = vld [vmem:[%s1 + $0x140] sm:$0xff]
      %v226 = vld [vmem:[%s1 + $0x148] sm:$0xff]
      %v227 = vld [vmem:[%s1 + $0x150] sm:$0xff]
      %v228 = vld [vmem:[%s1 + $0x158] sm:$0xff]
      %v229 = vld [vmem:[%s1 + $0x160] sm:$0xff]
      %v230 = vld [vmem:[%s1 + $0x168] sm:$0xff]
      %v231 = vld [vmem:[%s1 + $0x170] sm:$0xff]
      %v232 = vld [vmem:[%s1 + $0x178] sm:$0xff]
      %v233 = vld [vmem:[%s1 + $0x180] sm:$0xff]
      %v234 = vld [vmem:[%s1 + $0x188] sm:$0xff]
      %v235 = vld [vmem:[%s1 + $0x190] sm:$0xff]
      %v236 = vld [vmem:[%s1 + $0x198] sm:$0xff]
      %v237 = vld [vmem:[%s1 + $0x1a0] sm:$0xff]
      %v238 = vld [vmem:[%s1 + $0x1a8] sm:$0xff]
      %v239 = vld [vmem:[%s1 + $0x1b0] sm:$0xff]
      %v240 = vld [vmem:[%s1 + $0x1b8] sm:$0xff]
      %v241 = vld [vmem:[%s1 + $0x1c0] sm:$0xff]
      %v242 = vld [vmem:[%s1 + $0x1c8] sm:$0xff]
      %v243 = vld [vmem:[%s1 + $0x1d0] sm:$0xff]
      %v244 = vld [vmem:[%s1 + $0x1d8] sm:$0xff]
      %v245 = vld [vmem:[%s1 + $0x1e0] sm:$0xff]
      %v246 = vld [vmem:[%s1 + $0x1e8] sm:$0xff]
      %v247 = vld [vmem:[%s1 + $0x1f0] sm:$0xff]
      %v248 = vld [vmem:[%s1 + $0x1f8] sm:$0xff]
      %v249 = vld [vmem:[%s1 + $0x200] sm:$0xff]
      %v250 = vld [vmem:[%s1 + $0x208] sm:$0xff]
      %v251 = vld [vmem:[%s1 + $0x210] sm:$0xff]
      %v252 = vld [vmem:[%s1 + $0x218] sm:$0xff]
      %v253 = vld [vmem:[%s1 + $0x220] sm:$0xff]
      %v254 = vld [vmem:[%s1 + $0x228] sm:$0xff]
      %v255 = vld [vmem:[%s1 + $0x230] sm:$0xff]
      %v256 = vld [vmem:[%s1 + $0x238] sm:$0xff]
      %v257 = vld [vmem:[%s1 + $0x240] sm:$0xff]
      %v258 = vld [vmem:[%s1 + $0x248] sm:$0xff]
      %v259 = vld [vmem:[%s1 + $0x250] sm:$0xff]
      %v260 = vld [vmem:[%s1 + $0x258] sm:$0xff]
      %v261 = vld [vmem:[%s1 + $0x260] sm:$0xff]
      %v262 = vld [vmem:[%s1 + $0x268] sm:$0xff]
      %v263 = vld [vmem:[%s1 + $0x270] sm:$0xff]
      %v264 = vld [vmem:[%s1 + $0x278] sm:$0xff]
      %v265 = vld [vmem:[%s1 + $0x280] sm:$0xff]
      %v266 = vld [vmem:[%s1 + $0x288] sm:$0xff]
      %v267 = vld [vmem:[%s1 + $0x290] sm:$0xff]
      %v268 = vld [vmem:[%s1 + $0x298] sm:$0xff]
      %v269 = vld [vmem:[%s1 + $0x2a0] sm:$0xff]
      %v270 = vld [vmem:[%s1 + $0x2a8] sm:$0xff]
      %v271 = vld [vmem:[%s1 + $0x2b0] sm:$0xff]
      %v272 = vld [vmem:[%s1 + $0x2b8] sm:$0xff]
      %v273 = vld [vmem:[%s1 + $0x2c0] sm:$0xff]
      %v274 = vld [vmem:[%s1 + $0x2c8] sm:$0xff]
      %v275 = vld [vmem:[%s1 + $0x2d0] sm:$0xff]
      %v276 = vld [vmem:[%s1 + $0x2d8] sm:$0xff]
      %v277 = vld [vmem:[%s1 + $0x2e0] sm:$0xff]
      %v278 = vld [vmem:[%s1 + $0x2e8] sm:$0xff]
      %v279 = vld [vmem:[%s1 + $0x2f0] sm:$0xff]
      %v280 = vld [vmem:[%s1 + $0x2f8] sm:$0xff]
      %v281 = vld [vmem:[%s1 + $0x300] sm:$0xff]
      %v282 = vld [vmem:[%s1 + $0x308] sm:$0xff]
      %v283 = vld [vmem:[%s1 + $0x310] sm:$0xff]
      %v284 = vld [vmem:[%s1 + $0x318] sm:$0xff]
      %v285 = vld [vmem:[%s1 + $0x320] sm:$0xff]
      %v286 = vld [vmem:[%s1 + $0x328] sm:$0xff]
      %v287 = vld [vmem:[%s1 + $0x330] sm:$0xff]
      %v288 = vld [vmem:[%s1 + $0x338] sm:$0xff]
      %v289 = vld [vmem:[%s1 + $0x340] sm:$0xff]
      %v290 = vld [vmem:[%s1 + $0x348] sm:$0xff]
      %v291 = vld [vmem:[%s1 + $0x350] sm:$0xff]
      %v292 = vld [vmem:[%s1 + $0x358] sm:$0xff]
      %v293 = vld [vmem:[%s1 + $0x360] sm:$0xff]
      %v294 = vld [vmem:[%s1 + $0x368] sm:$0xff]
      %v295 = vld [vmem:[%s1 + $0x370] sm:$0xff]
      %v296 = vld [vmem:[%s1 + $0x378] sm:$0xff]
      %v297 = vld [vmem:[%s1 + $0x380] sm:$0xff]
      %v298 = vld [vmem:[%s1 + $0x388] sm:$0xff]
      %v299 = vld [vmem:[%s1 + $0x390] sm:$0xff]
      %v300 = vld [vmem:[%s1 + $0x398] sm:$0xff]
      %v301 = vld [vmem:[%s1 + $0x3a0] sm:$0xff]
      %v302 = vld [vmem:[%s1 + $0x3a8] sm:$0xff]
      %v303 = vld [vmem:[%s1 + $0x3b0] sm:$0xff]
      %v304 = vld [vmem:[%s1 + $0x3b8] sm:$0xff]
      %v305 = vld [vmem:[%s1 + $0x3c0] sm:$0xff]
      %v306 = vld [vmem:[%s1 + $0x3c8] sm:$0xff]
      %v307 = vld [vmem:[%s1 + $0x3d0] sm:$0xff]
      %v308 = vld [vmem:[%s1 + $0x3d8] sm:$0xff]
      %v309 = vld [vmem:[%s1 + $0x3e0] sm:$0xff]
      %v310 = vld [vmem:[%s1 + $0x3e8] sm:$0xff]
      %v311 = vld [vmem:[%s1 + $0x3f0] sm:$0xff]
      %v312 = vld [vmem:[%s1 + $0x3f8] sm:$0xff]
      %v313 = vld [vmem:[%s1 + $0x400] sm:$0xff]
      %v314 = vld [vmem:[%s1 + $0x408] sm:$0xff]
      %v315 = vld [vmem:[%s1 + $0x410] sm:$0xff]
      %v316 = vld [vmem:[%s1 + $0x418] sm:$0xff]
      %v317 = vld [vmem:[%s1 + $0x420] sm:$0xff]
      %v318 = vld [vmem:[%s1 + $0x428] sm:$0xff]
      %v319 = vld [vmem:[%s1 + $0x430] sm:$0xff]
      %v320 = vld [vmem:[%s1 + $0x438] sm:$0xff]
      %v321 = vld [vmem:[%s1 + $0x440] sm:$0xff]
      %v322 = vld [vmem:[%s1 + $0x448] sm:$0xff]
      %v323 = vld [vmem:[%s1 + $0x450] sm:$0xff]
      %v324 = vld [vmem:[%s1 + $0x458] sm:$0xff]
      %v325 = vld [vmem:[%s1 + $0x460] sm:$0xff]
      %v326 = vld [vmem:[%s1 + $0x468] sm:$0xff]
      %v327 = vld [vmem:[%s1 + $0x470] sm:$0xff]
      %v328 = vld [vmem:[%s1 + $0x478] sm:$0xff]
      %v329 = vld [vmem:[%s1 + $0x480] sm:$0xff]
      %v330 = vld [vmem:[%s1 + $0x488] sm:$0xff]
      %v331 = vld [vmem:[%s1 + $0x490] sm:$0xff]
      %v332 = vld [vmem:[%s1 + $0x498] sm:$0xff]
      %v333 = vld [vmem:[%s1 + $0x4a0] sm:$0xff]
      %v334 = vld [vmem:[%s1 + $0x4a8] sm:$0xff]
      %v335 = vld [vmem:[%s1 + $0x4b0] sm:$0xff]
      %v336 = vld [vmem:[%s1 + $0x4b8] sm:$0xff]
      %v337 = vld [vmem:[%s1 + $0x4c0] sm:$0xff]
      %v338 = vld [vmem:[%s1 + $0x4c8] sm:$0xff]
      %v339 = vld [vmem:[%s1 + $0x4d0] sm:$0xff]
      %v340 = vld [vmem:[%s1 + $0x4d8] sm:$0xff]
      %v341 = vld [vmem:[%s1 + $0x4e0] sm:$0xff]
      %v342 = vld [vmem:[%s1 + $0x4e8] sm:$0xff]
      %v343 = vld [vmem:[%s1 + $0x4f0] sm:$0xff]
      %v344 = vld [vmem:[%s1 + $0x4f8] sm:$0xff]
      %v345 = vld [vmem:[%s1 + $0x500] sm:$0xff]
      %v346 = vld [vmem:[%s1 + $0x508] sm:$0xff]
      %v347 = vld [vmem:[%s1 + $0x510] sm:$0xff]
      %v348 = vld [vmem:[%s1 + $0x518] sm:$0xff]
      %v349 = vld [vmem:[%s1 + $0x520] sm:$0xff]
      %v350 = vld [vmem:[%s1 + $0x528] sm:$0xff]
      %v351 = vld [vmem:[%s1 + $0x530] sm:$0xff]
      %v352 = vld [vmem:[%s1 + $0x538] sm:$0xff]
      %v353 = vld [vmem:[%s1 + $0x540] sm:$0xff]
      %v354 = vld [vmem:[%s1 + $0x548] sm:$0xff]
      %v355 = vld [vmem:[%s1 + $0x550] sm:$0xff]
      %v356 = vld [vmem:[%s1 + $0x558] sm:$0xff]
      %v357 = vld [vmem:[%s1 + $0x560] sm:$0xff]
      %v358 = vld [vmem:[%s1 + $0x568] sm:$0xff]
      %v359 = vld [vmem:[%s1 + $0x570] sm:$0xff]
      %v360 = vld [vmem:[%s1 + $0x578] sm:$0xff]
      %v361 = vld [vmem:[%s1 + $0x580] sm:$0xff]
      %v362 = vld [vmem:[%s1 + $0x588] sm:$0xff]
      %v363 = vld [vmem:[%s1 + $0x590] sm:$0xff]
      %v364 = vld [vmem:[%s1 + $0x598] sm:$0xff]
      %v365 = vld [vmem:[%s1 + $0x5a0] sm:$0xff]
      %v366 = vld [vmem:[%s1 + $0x5a8] sm:$0xff]
      %v367 = vld [vmem:[%s1 + $0x5b0] sm:$0xff]
      %v368 = vld [vmem:[%s1 + $0x5b8] sm:$0xff]
      %v369 = vld [vmem:[%s1 + $0x5c0] sm:$0xff]
      %v370 = vld [vmem:[%s1 + $0x5c8] sm:$0xff]
      %v371 = vld [vmem:[%s1 + $0x5d0] sm:$0xff]
      %v372 = vld [vmem:[%s1 + $0x5d8] sm:$0xff]
      %v373 = vld [vmem:[%s1 + $0x5e0] sm:$0xff]
      %v374 = vld [vmem:[%s1 + $0x5e8] sm:$0xff]
      %v375 = vld [vmem:[%s1 + $0x5f0] sm:$0xff]
      %v376 = vld [vmem:[%s1 + $0x5f8] sm:$0xff]
      %v377 = vld [vmem:[%s1 + $0x600] sm:$0xff]
      %v378 = vld [vmem:[%s1 + $0x608] sm:$0xff]
      %v379 = vld [vmem:[%s1 + $0x610] sm:$0xff]
      %v380 = vld [vmem:[%s1 + $0x618] sm:$0xff]
      %v381 = vld [vmem:[%s1 + $0x620] sm:$0xff]
      %v382 = vld [vmem:[%s1 + $0x628] sm:$0xff]
      %v383 = vld [vmem:[%s1 + $0x630] sm:$0xff]
      %v384 = vld [vmem:[%s1 + $0x638] sm:$0xff]
      %v385 = vld [vmem:[%s1 + $0x640] sm:$0xff]
      %v386 = vld [vmem:[%s1 + $0x648] sm:$0xff]
      %v387 = vld [vmem:[%s1 + $0x650] sm:$0xff]
      %v388 = vld [vmem:[%s1 + $0x658] sm:$0xff]
      %v389 = vld [vmem:[%s1 + $0x660] sm:$0xff]
      %v390 = vld [vmem:[%s1 + $0x668] sm:$0xff]
      %v391 = vld [vmem:[%s1 + $0x670] sm:$0xff]
      %v392 = vld [vmem:[%s1 + $0x678] sm:$0xff]
      %v393 = vld [vmem:[%s1 + $0x680] sm:$0xff]
      %v394 = vld [vmem:[%s1 + $0x688] sm:$0xff]
      %v395 = vld [vmem:[%s1 + $0x690] sm:$0xff]
      %v396 = vld [vmem:[%s1 + $0x698] sm:$0xff]
      %v397 = vld [vmem:[%s1 + $0x6a0] sm:$0xff]
      %v398 = vld [vmem:[%s1 + $0x6a8] sm:$0xff]
      %v399 = vld [vmem:[%s1 + $0x6b0] sm:$0xff]
      %v400 = vld [vmem:[%s1 + $0x6b8] sm:$0xff]
      %v401 = vld [vmem:[%s1 + $0x6c0] sm:$0xff]
      %v402 = vld [vmem:[%s1 + $0x6c8] sm:$0xff]
      %v403 = vld [vmem:[%s1 + $0x6d0] sm:$0xff]
      %v404 = vld [vmem:[%s1 + $0x6d8] sm:$0xff]
      %v405 = vld [vmem:[%s1 + $0x6e0] sm:$0xff]
      %v406 = vld [vmem:[%s1 + $0x6e8] sm:$0xff]
      %v407 = vld [vmem:[%s1 + $0x6f0] sm:$0xff]
      %v408 = vld [vmem:[%s1 + $0x6f8] sm:$0xff]
      %v409 = vld [vmem:[%s1 + $0x700] sm:$0xff]
      %v410 = vld [vmem:[%s1 + $0x708] sm:$0xff]
      %v411 = vld [vmem:[%s1 + $0x710] sm:$0xff]
      %v412 = vld [vmem:[%s1 + $0x718] sm:$0xff]
      %v413 = vld [vmem:[%s1 + $0x720] sm:$0xff]
      %v414 = vld [vmem:[%s1 + $0x728] sm:$0xff]
      %v415 = vld [vmem:[%s1 + $0x730] sm:$0xff]
      %v416 = vld [vmem:[%s1 + $0x738] sm:$0xff]
      %v417 = vld [vmem:[%s1 + $0x740] sm:$0xff]
      %v418 = vld [vmem:[%s1 + $0x748] sm:$0xff]
      %v419 = vld [vmem:[%s1 + $0x750] sm:$0xff]
      %v420 = vld [vmem:[%s1 + $0x758] sm:$0xff]
      %v421 = vld [vmem:[%s1 + $0x760] sm:$0xff]
      %v422 = vld [vmem:[%s1 + $0x768] sm:$0xff]
      %v423 = vld [vmem:[%s1 + $0x770] sm:$0xff]
      %v424 = vld [vmem:[%s1 + $0x778] sm:$0xff]
      %v425 = vld [vmem:[%s1 + $0x780] sm:$0xff]
      %v426 = vld [vmem:[%s1 + $0x788] sm:$0xff]
      %v427 = vld [vmem:[%s1 + $0x790] sm:$0xff]
      %v428 = vld [vmem:[%s1 + $0x798] sm:$0xff]
      %v429 = vld [vmem:[%s1 + $0x7a0] sm:$0xff]
      %v430 = vld [vmem:[%s1 + $0x7a8] sm:$0xff]
      %v431 = vld [vmem:[%s1 + $0x7b0] sm:$0xff]
      %v432 = vld [vmem:[%s1 + $0x7b8] sm:$0xff]
      %v433 = vld [vmem:[%s1 + $0x7c0] sm:$0xff]
      %v434 = vld [vmem:[%s1 + $0x7c8] sm:$0xff]
      %v435 = vld [vmem:[%s1 + $0x7d0] sm:$0xff]
      %v436 = vld [vmem:[%s1 + $0x7d8] sm:$0xff]
      %v437 = vld [vmem:[%s1 + $0x7e0] sm:$0xff]
      %v438 = vld [vmem:[%s1 + $0x7e8] sm:$0xff]
      %v439 = vld [vmem:[%s1 + $0x7f0] sm:$0xff]
      %v440 = vld [vmem:[%s1 + $0x7f8] sm:$0xff]
      %v441 = vld [vmem:[%s1 + $0x800] sm:$0xff]
      %v442 = vld [vmem:[%s1 + $0x808] sm:$0xff]
      %v443 = vld [vmem:[%s1 + $0x810] sm:$0xff]
      %v444 = vld [vmem:[%s1 + $0x818] sm:$0xff]
      %v445 = vld [vmem:[%s1 + $0x820] sm:$0xff]
      %v446 = vld [vmem:[%s1 + $0x828] sm:$0xff]
      %v447 = vld [vmem:[%s1 + $0x830] sm:$0xff]
      %v448 = vld [vmem:[%s1 + $0x838] sm:$0xff]
      %v449 = vld [vmem:[%s1 + $0x840] sm:$0xff]
      %v450 = vld [vmem:[%s1 + $0x848] sm:$0xff]
      %v451 = vld [vmem:[%s1 + $0x850] sm:$0xff]
      %v452 = vld [vmem:[%s1 + $0x858] sm:$0xff]
      %v453 = vld [vmem:[%s1 + $0x860] sm:$0xff]
      %v454 = vld [vmem:[%s1 + $0x868] sm:$0xff]
      %v455 = vld [vmem:[%s1 + $0x870] sm:$0xff]
      %v456 = vld [vmem:[%s1 + $0x878] sm:$0xff]
      %v457 = vld [vmem:[%s1 + $0x880] sm:$0xff]
      %v458 = vld [vmem:[%s1 + $0x888] sm:$0xff]
      %v459 = vld [vmem:[%s1 + $0x890] sm:$0xff]
      %v460 = vld [vmem:[%s1 + $0x898] sm:$0xff]
      %v461 = vld [vmem:[%s1 + $0x8a0] sm:$0xff]
      %v462 = vld [vmem:[%s1 + $0x8a8] sm:$0xff]
      %v463 = vld [vmem:[%s1 + $0x8b0] sm:$0xff]
      %v464 = vld [vmem:[%s1 + $0x8b8] sm:$0xff]
      %v465 = vld [vmem:[%s1 + $0x8c0] sm:$0xff]
      %v466 = vld [vmem:[%s1 + $0x8c8] sm:$0xff]
      %v467 = vld [vmem:[%s1 + $0x8d0] sm:$0xff]
      %v468 = vld [vmem:[%s1 + $0x8d8] sm:$0xff]
      %v469 = vld [vmem:[%s1 + $0x8e0] sm:$0xff]
      %v470 = vld [vmem:[%s1 + $0x8e8] sm:$0xff]
      %v471 = vld [vmem:[%s1 + $0x8f0] sm:$0xff]
      %v472 = vld [vmem:[%s1 + $0x8f8] sm:$0xff]
      %v473 = vld [vmem:[%s1 + $0x900] sm:$0xff]
      %v474 = vld [vmem:[%s1 + $0x908] sm:$0xff]
      %v475 = vld [vmem:[%s1 + $0x910] sm:$0xff]
      %v476 = vld [vmem:[%s1 + $0x918] sm:$0xff]
      %v477 = vld [vmem:[%s1 + $0x920] sm:$0xff]
      %v478 = vld [vmem:[%s1 + $0x928] sm:$0xff]
      %v479 = vld [vmem:[%s1 + $0x930] sm:$0xff]
      %v480 = vld [vmem:[%s1 + $0x938] sm:$0xff]
      %v481 = vld [vmem:[%s1 + $0x940] sm:$0xff]
      %v482 = vld [vmem:[%s1 + $0x948] sm:$0xff]
      %v483 = vld [vmem:[%s1 + $0x950] sm:$0xff]
      %v484 = vld [vmem:[%s1 + $0x958] sm:$0xff]
      %v485 = vld [vmem:[%s1 + $0x960] sm:$0xff]
      %v486 = vld [vmem:[%s1 + $0x968] sm:$0xff]
      %v487 = vld [vmem:[%s1 + $0x970] sm:$0xff]
      %v488 = vld [vmem:[%s1 + $0x978] sm:$0xff]
      %v489 = vld [vmem:[%s1 + $0x980] sm:$0xff]
      %v490 = vld [vmem:[%s1 + $0x988] sm:$0xff]
      %v491 = vld [vmem:[%s1 + $0x990] sm:$0xff]
      %v492 = vld [vmem:[%s1 + $0x998] sm:$0xff]
      %v493 = vld [vmem:[%s1 + $0x9a0] sm:$0xff]
      %v494 = vld [vmem:[%s1 + $0x9a8] sm:$0xff]
      %v495 = vld [vmem:[%s1 + $0x9b0] sm:$0xff]
      %v496 = vld [vmem:[%s1 + $0x9b8] sm:$0xff]
      %v497 = vld [vmem:[%s1 + $0x9c0] sm:$0xff]
      %v498 = vld [vmem:[%s1 + $0x9c8] sm:$0xff]
      %v499 = vld [vmem:[%s1 + $0x9d0] sm:$0xff]
      %v500 = vld [vmem:[%s1 + $0x9d8] sm:$0xff]
      %v501 = vld [vmem:[%s1 + $0x9e0] sm:$0xff]
      %v502 = vld [vmem:[%s1 + $0x9e8] sm:$0xff]
      %v503 = vld [vmem:[%s1 + $0x9f0] sm:$0xff]
      %v504 = vld [vmem:[%s1 + $0x9f8] sm:$0xff]
      %v505 = vld [vmem:[%s1 + $0xa00] sm:$0xff]
      %v506 = vld [vmem:[%s1 + $0xa08] sm:$0xff]
      %v507 = vld [vmem:[%s1 + $0xa10] sm:$0xff]
      %v508 = vld [vmem:[%s1 + $0xa18] sm:$0xff]
      %v509 = vld [vmem:[%s1 + $0xa20] sm:$0xff]
      %v510 = vld [vmem:[%s1 + $0xa28] sm:$0xff]
      %v511 = vld [vmem:[%s1 + $0xa30] sm:$0xff]
      %v512 = vld [vmem:[%s1 + $0xa38] sm:$0xff]
      %v513 = vld [vmem:[%s1 + $0xa40] sm:$0xff]
      %v514 = vld [vmem:[%s1 + $0xa48] sm:$0xff]
      %v515 = vld [vmem:[%s1 + $0xa50] sm:$0xff]
      %v516 = vld [vmem:[%s1 + $0xa58] sm:$0xff]
      %v517 = vld [vmem:[%s1 + $0xa60] sm:$0xff]
      %v518 = vld [vmem:[%s1 + $0xa68] sm:$0xff]
      %v519 = vld [vmem:[%s1 + $0xa70] sm:$0xff]
      %v520 = vld [vmem:[%s1 + $0xa78] sm:$0xff]
      %v521 = vld [vmem:[%s1 + $0xa80] sm:$0xff]
      %v522 = vld [vmem:[%s1 + $0xa88] sm:$0xff]
      %v523 = vld [vmem:[%s1 + $0xa90] sm:$0xff]
      %v524 = vld [vmem:[%s1 + $0xa98] sm:$0xff]
      %v525 = vld [vmem:[%s1 + $0xaa0] sm:$0xff]
      %v526 = vld [vmem:[%s1 + $0xaa8] sm:$0xff]
      %v527 = vld [vmem:[%s1 + $0xab0] sm:$0xff]
      %v528 = vld [vmem:[%s1 + $0xab8] sm:$0xff]
      %v529 = vld [vmem:[%s1 + $0xac0] sm:$0xff]
      %v530 = vld [vmem:[%s1 + $0xac8] sm:$0xff]
      %v531 = vld [vmem:[%s1 + $0xad0] sm:$0xff]
      %v532 = vld [vmem:[%s1 + $0xad8] sm:$0xff]
      %v533 = vld [vmem:[%s1 + $0xae0] sm:$0xff]
      %v534 = vld [vmem:[%s1 + $0xae8] sm:$0xff]
      %v535 = vld [vmem:[%s1 + $0xaf0] sm:$0xff]
      %v536 = vld [vmem:[%s1 + $0xaf8] sm:$0xff]
      %v537 = vld [vmem:[%s1 + $0xb00] sm:$0xff]
      %v538 = vld [vmem:[%s1 + $0xb08] sm:$0xff]
      %v539 = vld [vmem:[%s1 + $0xb10] sm:$0xff]
      %v540 = vld [vmem:[%s1 + $0xb18] sm:$0xff]
      %v541 = vld [vmem:[%s1 + $0xb20] sm:$0xff]
      %v542 = vld [vmem:[%s1 + $0xb28] sm:$0xff]
      %v543 = vld [vmem:[%s1 + $0xb30] sm:$0xff]
      %v544 = vld [vmem:[%s1 + $0xb38] sm:$0xff]
      %v545 = vld [vmem:[%s1 + $0xb40] sm:$0xff]
      %v546 = vld [vmem:[%s1 + $0xb48] sm:$0xff]
      %v547 = vld [vmem:[%s1 + $0xb50] sm:$0xff]
      %v548 = vld [vmem:[%s1 + $0xb58] sm:$0xff]
      %v549 = vld [vmem:[%s1 + $0xb60] sm:$0xff]
      %v550 = vld [vmem:[%s1 + $0xb68] sm:$0xff]
      %v551 = vld [vmem:[%s1 + $0xb70] sm:$0xff]
      %v552 = vld [vmem:[%s1 + $0xb78] sm:$0xff]
      %v553 = vld [vmem:[%s1 + $0xb80] sm:$0xff]
      %v554 = vld [vmem:[%s1 + $0xb88] sm:$0xff]
      %v555 = vld [vmem:[%s1 + $0xb90] sm:$0xff]
      %v556 = vld [vmem:[%s1 + $0xb98] sm:$0xff]
      %v557 = vld [vmem:[%s1 + $0xba0] sm:$0xff]
      %v558 = vld [vmem:[%s1 + $0xba8] sm:$0xff]
      %v559 = vld [vmem:[%s1 + $0xbb0] sm:$0xff]
      %v560 = vld [vmem:[%s1 + $0xbb8] sm:$0xff]
      %v561 = vld [vmem:[%s1 + $0xbc0] sm:$0xff]
      %v562 = vld [vmem:[%s1 + $0xbc8] sm:$0xff]
      %v563 = vld [vmem:[%s1 + $0xbd0] sm:$0xff]
      %v564 = vld [vmem:[%s1 + $0xbd8] sm:$0xff]
      %v565 = vld [vmem:[%s1 + $0xbe0] sm:$0xff]
      %v566 = vld [vmem:[%s1 + $0xbe8] sm:$0xff]
      %v567 = vld [vmem:[%s1 + $0xbf0] sm:$0xff]
      %v568 = vld [vmem:[%s1 + $0xbf8] sm:$0xff]
      %v569 = vld [vmem:[%s1 + $0xc00] sm:$0xff]
      %v570 = vld [vmem:[%s1 + $0xc08] sm:$0xff]
      %v571 = vld [vmem:[%s1 + $0xc10] sm:$0xff]
      %v572 = vld [vmem:[%s1 + $0xc18] sm:$0xff]
      %v573 = vld [vmem:[%s1 + $0xc20] sm:$0xff]
      %v574 = vld [vmem:[%s1 + $0xc28] sm:$0xff]
      %v575 = vld [vmem:[%s1 + $0xc30] sm:$0xff]
      %v576 = vld [vmem:[%s1 + $0xc38] sm:$0xff]
      %v577 = vld [vmem:[%s1 + $0xc40] sm:$0xff]
      %v578 = vld [vmem:[%s1 + $0xc48] sm:$0xff]
      %v579 = vld [vmem:[%s1 + $0xc50] sm:$0xff]
      %v580 = vld [vmem:[%s1 + $0xc58] sm:$0xff]
      %v581 = vld [vmem:[%s1 + $0xc60] sm:$0xff]
      %v582 = vld [vmem:[%s1 + $0xc68] sm:$0xff]
      %v583 = vld [vmem:[%s1 + $0xc70] sm:$0xff]
      %v584 = vld [vmem:[%s1 + $0xc78] sm:$0xff]
      %v585 = vld [vmem:[%s1 + $0xc80] sm:$0xff]
      %v586 = vld [vmem:[%s1 + $0xc88] sm:$0xff]
      %v587 = vld [vmem:[%s1 + $0xc90] sm:$0xff]
      %v588 = vld [vmem:[%s1 + $0xc98] sm:$0xff]
      %v589 = vld [vmem:[%s1 + $0xca0] sm:$0xff]
      %v590 = vld [vmem:[%s1 + $0xca8] sm:$0xff]
      %v591 = vld [vmem:[%s1 + $0xcb0] sm:$0xff]
      %v592 = vld [vmem:[%s1 + $0xcb8] sm:$0xff]
      %v593 = vld [vmem:[%s1 + $0xcc0] sm:$0xff]
      %v594 = vld [vmem:[%s1 + $0xcc8] sm:$0xff]
      %v595 = vld [vmem:[%s1 + $0xcd0] sm:$0xff]
      %v596 = vld [vmem:[%s1 + $0xcd8] sm:$0xff]
      %v597 = vld [vmem:[%s1 + $0xce0] sm:$0xff]
      %v598 = vld [vmem:[%s1 + $0xce8] sm:$0xff]
      %v599 = vld [vmem:[%s1 + $0xcf0] sm:$0xff]
      %v600 = vld [vmem:[%s1 + $0xcf8] sm:$0xff]
      %v601 = vld [vmem:[%s1 + $0xd00] sm:$0xff]
      %v602 = vld [vmem:[%s1 + $0xd08] sm:$0xff]
      %v603 = vld [vmem:[%s1 + $0xd10] sm:$0xff]
      %v604 = vld [vmem:[%s1 + $0xd18] sm:$0xff]
      %v605 = vld [vmem:[%s1 + $0xd20] sm:$0xff]
      %v606 = vld [vmem:[%s1 + $0xd28] sm:$0xff]
      %v607 = vld [vmem:[%s1 + $0xd30] sm:$0xff]
      %v608 = vld [vmem:[%s1 + $0xd38] sm:$0xff]
      %v609 = vld [vmem:[%s1 + $0xd40] sm:$0xff]
      %v610 = vld [vmem:[%s1 + $0xd48] sm:$0xff]
      %v611 = vld [vmem:[%s1 + $0xd50] sm:$0xff]
      %v612 = vld [vmem:[%s1 + $0xd58] sm:$0xff]
      %v613 = vld [vmem:[%s1 + $0xd60] sm:$0xff]
      %v614 = vld [vmem:[%s1 + $0xd68] sm:$0xff]
      %v615 = vld [vmem:[%s1 + $0xd70] sm:$0xff]
      %v616 = vld [vmem:[%s1 + $0xd78] sm:$0xff]
      %v617 = vld [vmem:[%s1 + $0xd80] sm:$0xff]
      %v618 = vld [vmem:[%s1 + $0xd88] sm:$0xff]
      %v619 = vld [vmem:[%s1 + $0xd90] sm:$0xff]
      %v620 = vld [vmem:[%s1 + $0xd98] sm:$0xff]
      %v621 = vld [vmem:[%s1 + $0xda0] sm:$0xff]
      %v622 = vld [vmem:[%s1 + $0xda8] sm:$0xff]
      %v623 = vld [vmem:[%s1 + $0xdb0] sm:$0xff]
      %v624 = vld [vmem:[%s1 + $0xdb8] sm:$0xff]
      %v625 = vld [vmem:[%s1 + $0xdc0] sm:$0xff]
      %v626 = vld [vmem:[%s1 + $0xdc8] sm:$0xff]
      %v627 = vld [vmem:[%s1 + $0xdd0] sm:$0xff]
      %v628 = vld [vmem:[%s1 + $0xdd8] sm:$0xff]
      %v629 = vld [vmem:[%s1 + $0xde0] sm:$0xff]
      %v630 = vld [vmem:[%s1 + $0xde8] sm:$0xff]
      %v631 = vld [vmem:[%s1 + $0xdf0] sm:$0xff]
      %v632 = vld [vmem:[%s1 + $0xdf8] sm:$0xff]
      %v633 = vld [vmem:[%s1 + $0xe00] sm:$0xff]
      %v634 = vld [vmem:[%s1 + $0xe08] sm:$0xff]
      %v635 = vld [vmem:[%s1 + $0xe10] sm:$0xff]
      %v636 = vld [vmem:[%s1 + $0xe18] sm:$0xff]
      %v637 = vld [vmem:[%s1 + $0xe20] sm:$0xff]
      %v638 = vld [vmem:[%s1 + $0xe28] sm:$0xff]
      %v639 = vld [vmem:[%s1 + $0xe30] sm:$0xff]
      %v640 = vld [vmem:[%s1 + $0xe38] sm:$0xff]
      %v641 = vld [vmem:[%s1 + $0xe40] sm:$0xff]
      %v642 = vld [vmem:[%s1 + $0xe48] sm:$0xff]
      %v643 = vld [vmem:[%s1 + $0xe50] sm:$0xff]
      %v644 = vld [vmem:[%s1 + $0xe58] sm:$0xff]
      %v645 = vld [vmem:[%s1 + $0xe60] sm:$0xff]
      %v646 = vld [vmem:[%s1 + $0xe68] sm:$0xff]
      %v647 = vld [vmem:[%s1 + $0xe70] sm:$0xff]
      %v648 = vld [vmem:[%s1 + $0xe78] sm:$0xff]
      %v649 = vld [vmem:[%s1 + $0xe80] sm:$0xff]
      %v650 = vld [vmem:[%s1 + $0xe88] sm:$0xff]
      %v651 = vld [vmem:[%s1 + $0xe90] sm:$0xff]
      %v652 = vld [vmem:[%s1 + $0xe98] sm:$0xff]
      %v653 = vld [vmem:[%s1 + $0xea0] sm:$0xff]
      %v654 = vld [vmem:[%s1 + $0xea8] sm:$0xff]
      %v655 = vld [vmem:[%s1 + $0xeb0] sm:$0xff]
      %v656 = vld [vmem:[%s1 + $0xeb8] sm:$0xff]
      %v657 = vld [vmem:[%s1 + $0xec0] sm:$0xff]
      %v658 = vld [vmem:[%s1 + $0xec8] sm:$0xff]
      %v659 = vld [vmem:[%s1 + $0xed0] sm:$0xff]
      %v660 = vld [vmem:[%s1 + $0xed8] sm:$0xff]
      %v661 = vld [vmem:[%s1 + $0xee0] sm:$0xff]
      %v662 = vld [vmem:[%s1 + $0xee8] sm:$0xff]
      %v663 = vld [vmem:[%s1 + $0xef0] sm:$0xff]
      %v664 = vld [vmem:[%s1 + $0xef8] sm:$0xff]
      %v665 = vld [vmem:[%s1 + $0xf00] sm:$0xff]
      %v666 = vld [vmem:[%s1 + $0xf08] sm:$0xff]
      %v667 = vld [vmem:[%s1 + $0xf10] sm:$0xff]
      %v668 = vld [vmem:[%s1 + $0xf18] sm:$0xff]
      %v669 = vld [vmem:[%s1 + $0xf20] sm:$0xff]
      %v670 = vld [vmem:[%s1 + $0xf28] sm:$0xff]
      %v671 = vld [vmem:[%s1 + $0xf30] sm:$0xff]
      %v672 = vld [vmem:[%s1 + $0xf38] sm:$0xff]
      %v673 = vld [vmem:[%s1 + $0xf40] sm:$0xff]
      %v674 = vld [vmem:[%s1 + $0xf48] sm:$0xff]
      %v675 = vld [vmem:[%s1 + $0xf50] sm:$0xff]
      %v676 = vld [vmem:[%s1 + $0xf58] sm:$0xff]
      %v677 = vld [vmem:[%s1 + $0xf60] sm:$0xff]
      %v678 = vld [vmem:[%s1 + $0xf68] sm:$0xff]
      %v679 = vld [vmem:[%s1 + $0xf70] sm:$0xff]
      %v680 = vld [vmem:[%s1 + $0xf78] sm:$0xff]
      %v681 = vld [vmem:[%s1 + $0xf80] sm:$0xff]
      %v682 = vld [vmem:[%s1 + $0xf88] sm:$0xff]
      %v683 = vld [vmem:[%s1 + $0xf90] sm:$0xff]
      %v684 = vld [vmem:[%s1 + $0xf98] sm:$0xff]
      %v685 = vld [vmem:[%s1 + $0xfa0] sm:$0xff]
      %v686 = vld [vmem:[%s1 + $0xfa8] sm:$0xff]
      %v687 = vld [vmem:[%s1 + $0xfb0] sm:$0xff]
      %v688 = vld [vmem:[%s1 + $0xfb8] sm:$0xff]
      %v689 = vld [vmem:[%s1 + $0xfc0] sm:$0xff]
      %v690 = vld [vmem:[%s1 + $0xfc8] sm:$0xff]
      %v691 = vld [vmem:[%s1 + $0xfd0] sm:$0xff]
      %v692 = vld [vmem:[%s1 + $0xfd8] sm:$0xff]
      %v693 = vld [vmem:[%s1 + $0xfe0] sm:$0xff]
      %v694 = vld [vmem:[%s1 + $0xfe8] sm:$0xff]
      %v695 = vld [vmem:[%s1 + $0xff0] sm:$0xff]
      %v696 = vld [vmem:[%s1 + $0xff8] sm:$0xff]
      %v705 = vunpack.c.l.b16 %v177
      %v706 = vunpack.c.h.b16 %v177
      %v707 = vunpack.c.l.b16 %v178
      %v708 = vunpack.c.h.b16 %v178
      %v709 = vunpack.c.l.b16 %v179
      %v710 = vunpack.c.h.b16 %v179
      %v711 = vunpack.c.l.b16 %v180
      %v712 = vunpack.c.h.b16 %v180
      %v713 = vunpack.c.l.b16 %v181
      %v714 = vunpack.c.h.b16 %v181
      %v715 = vunpack.c.l.b16 %v182
      %v716 = vunpack.c.h.b16 %v182
      %v717 = vunpack.c.l.b16 %v183
      %v718 = vunpack.c.h.b16 %v183
      %v719 = vunpack.c.l.b16 %v184
      %v720 = vunpack.c.h.b16 %v184
      %v721 = vpack.c.b16 %v713, %v705
      %v722 = vpack.c.b16 %v714, %v706
      %v723 = vpack.c.b16 %v715, %v707
      %v724 = vpack.c.b16 %v716, %v708
      %v725 = vpack.c.b16 %v717, %v709
      %v726 = vpack.c.b16 %v718, %v710
      %v727 = vpack.c.b16 %v719, %v711
      %v728 = vpack.c.b16 %v720, %v712
      %v1249 = vunpack.c.l.b16 %v185
      %v1250 = vunpack.c.h.b16 %v185
      %v1251 = vunpack.c.l.b16 %v186
      %v1252 = vunpack.c.h.b16 %v186
      %v1253 = vunpack.c.l.b16 %v187
      %v1254 = vunpack.c.h.b16 %v187
      %v1255 = vunpack.c.l.b16 %v188
      %v1256 = vunpack.c.h.b16 %v188
      %v1257 = vunpack.c.l.b16 %v189
      %v1258 = vunpack.c.h.b16 %v189
      %v1259 = vunpack.c.l.b16 %v190
      %v1260 = vunpack.c.h.b16 %v190
      %v1261 = vunpack.c.l.b16 %v191
      %v1262 = vunpack.c.h.b16 %v191
      %v1263 = vunpack.c.l.b16 %v192
      %v1264 = vunpack.c.h.b16 %v192
      %v1265 = vunpack.c.l.b16 %v193
      %v1266 = vunpack.c.h.b16 %v193
      %v1267 = vunpack.c.l.b16 %v194
      %v1268 = vunpack.c.h.b16 %v194
      %v1269 = vunpack.c.l.b16 %v195
      %v1270 = vunpack.c.h.b16 %v195
      %v1271 = vunpack.c.l.b16 %v196
      %v1272 = vunpack.c.h.b16 %v196
      %v1273 = vunpack.c.l.b16 %v197
      %v1274 = vunpack.c.h.b16 %v197
      %v1275 = vunpack.c.l.b16 %v198
      %v1276 = vunpack.c.h.b16 %v198
      %v1277 = vunpack.c.l.b16 %v199
      %v1278 = vunpack.c.h.b16 %v199
      %v1279 = vunpack.c.l.b16 %v200
      %v1280 = vunpack.c.h.b16 %v200
      %v1281 = vunpack.c.l.b16 %v201
      %v1282 = vunpack.c.h.b16 %v201
      %v1283 = vunpack.c.l.b16 %v202
      %v1284 = vunpack.c.h.b16 %v202
      %v1285 = vunpack.c.l.b16 %v203
      %v1286 = vunpack.c.h.b16 %v203
      %v1287 = vunpack.c.l.b16 %v204
      %v1288 = vunpack.c.h.b16 %v204
      %v1289 = vunpack.c.l.b16 %v205
      %v1290 = vunpack.c.h.b16 %v205
      %v1291 = vunpack.c.l.b16 %v206
      %v1292 = vunpack.c.h.b16 %v206
      %v1293 = vunpack.c.l.b16 %v207
      %v1294 = vunpack.c.h.b16 %v207
      %v1295 = vunpack.c.l.b16 %v208
      %v1296 = vunpack.c.h.b16 %v208
      %v1297 = vunpack.c.l.b16 %v209
      %v1298 = vunpack.c.h.b16 %v209
      %v1299 = vunpack.c.l.b16 %v210
      %v1300 = vunpack.c.h.b16 %v210
      %v1301 = vunpack.c.l.b16 %v211
      %v1302 = vunpack.c.h.b16 %v211
      %v1303 = vunpack.c.l.b16 %v212
      %v1304 = vunpack.c.h.b16 %v212
      %v1305 = vunpack.c.l.b16 %v213
      %v1306 = vunpack.c.h.b16 %v213
      %v1307 = vunpack.c.l.b16 %v214
      %v1308 = vunpack.c.h.b16 %v214
      %v1309 = vunpack.c.l.b16 %v215
      %v1310 = vunpack.c.h.b16 %v215
      %v1311 = vunpack.c.l.b16 %v216
      %v1312 = vunpack.c.h.b16 %v216
      %v1313 = vunpack.c.l.b16 %v217
      %v1314 = vunpack.c.h.b16 %v217
      %v1315 = vunpack.c.l.b16 %v218
      %v1316 = vunpack.c.h.b16 %v218
      %v1317 = vunpack.c.l.b16 %v219
      %v1318 = vunpack.c.h.b16 %v219
      %v1319 = vunpack.c.l.b16 %v220
      %v1320 = vunpack.c.h.b16 %v220
      %v1321 = vunpack.c.l.b16 %v221
      %v1322 = vunpack.c.h.b16 %v221
      %v1323 = vunpack.c.l.b16 %v222
      %v1324 = vunpack.c.h.b16 %v222
      %v1325 = vunpack.c.l.b16 %v223
      %v1326 = vunpack.c.h.b16 %v223
      %v1327 = vunpack.c.l.b16 %v224
      %v1328 = vunpack.c.h.b16 %v224
      %v1329 = vunpack.c.l.b16 %v225
      %v1330 = vunpack.c.h.b16 %v225
      %v1331 = vunpack.c.l.b16 %v226
      %v1332 = vunpack.c.h.b16 %v226
      %v1333 = vunpack.c.l.b16 %v227
      %v1334 = vunpack.c.h.b16 %v227
      %v1335 = vunpack.c.l.b16 %v228
      %v1336 = vunpack.c.h.b16 %v228
      %v1337 = vunpack.c.l.b16 %v229
      %v1338 = vunpack.c.h.b16 %v229
      %v1339 = vunpack.c.l.b16 %v230
      %v1340 = vunpack.c.h.b16 %v230
      %v1341 = vunpack.c.l.b16 %v231
      %v1342 = vunpack.c.h.b16 %v231
      %v1343 = vunpack.c.l.b16 %v232
      %v1344 = vunpack.c.h.b16 %v232
      %v1345 = vunpack.c.l.b16 %v233
      %v1346 = vunpack.c.h.b16 %v233
      %v1347 = vunpack.c.l.b16 %v234
      %v1348 = vunpack.c.h.b16 %v234
      %v1349 = vunpack.c.l.b16 %v235
      %v1350 = vunpack.c.h.b16 %v235
      %v1351 = vunpack.c.l.b16 %v236
      %v1352 = vunpack.c.h.b16 %v236
      %v1353 = vunpack.c.l.b16 %v237
      %v1354 = vunpack.c.h.b16 %v237
      %v1355 = vunpack.c.l.b16 %v238
      %v1356 = vunpack.c.h.b16 %v238
      %v1357 = vunpack.c.l.b16 %v239
      %v1358 = vunpack.c.h.b16 %v239
      %v1359 = vunpack.c.l.b16 %v240
      %v1360 = vunpack.c.h.b16 %v240
      %v1361 = vunpack.c.l.b16 %v241
      %v1362 = vunpack.c.h.b16 %v241
      %v1363 = vunpack.c.l.b16 %v242
      %v1364 = vunpack.c.h.b16 %v242
      %v1365 = vunpack.c.l.b16 %v243
      %v1366 = vunpack.c.h.b16 %v243
      %v1367 = vunpack.c.l.b16 %v244
      %v1368 = vunpack.c.h.b16 %v244
      %v1369 = vunpack.c.l.b16 %v245
      %v1370 = vunpack.c.h.b16 %v245
      %v1371 = vunpack.c.l.b16 %v246
      %v1372 = vunpack.c.h.b16 %v246
      %v1373 = vunpack.c.l.b16 %v247
      %v1374 = vunpack.c.h.b16 %v247
      %v1375 = vunpack.c.l.b16 %v248
      %v1376 = vunpack.c.h.b16 %v248
      %v1377 = vunpack.c.l.b16 %v249
      %v1378 = vunpack.c.h.b16 %v249
      %v1379 = vunpack.c.l.b16 %v250
      %v1380 = vunpack.c.h.b16 %v250
      %v1381 = vunpack.c.l.b16 %v251
      %v1382 = vunpack.c.h.b16 %v251
      %v1383 = vunpack.c.l.b16 %v252
      %v1384 = vunpack.c.h.b16 %v252
      %v1385 = vunpack.c.l.b16 %v253
      %v1386 = vunpack.c.h.b16 %v253
      %v1387 = vunpack.c.l.b16 %v254
      %v1388 = vunpack.c.h.b16 %v254
      %v1389 = vunpack.c.l.b16 %v255
      %v1390 = vunpack.c.h.b16 %v255
      %v1391 = vunpack.c.l.b16 %v256
      %v1392 = vunpack.c.h.b16 %v256
      %v1393 = vunpack.c.l.b16 %v257
      %v1394 = vunpack.c.h.b16 %v257
      %v1395 = vunpack.c.l.b16 %v258
      %v1396 = vunpack.c.h.b16 %v258
      %v1397 = vunpack.c.l.b16 %v259
      %v1398 = vunpack.c.h.b16 %v259
      %v1399 = vunpack.c.l.b16 %v260
      %v1400 = vunpack.c.h.b16 %v260
      %v1401 = vunpack.c.l.b16 %v261
      %v1402 = vunpack.c.h.b16 %v261
      %v1403 = vunpack.c.l.b16 %v262
      %v1404 = vunpack.c.h.b16 %v262
      %v1405 = vunpack.c.l.b16 %v263
      %v1406 = vunpack.c.h.b16 %v263
      %v1407 = vunpack.c.l.b16 %v264
      %v1408 = vunpack.c.h.b16 %v264
      %v1409 = vunpack.c.l.b16 %v265
      %v1410 = vunpack.c.h.b16 %v265
      %v1411 = vunpack.c.l.b16 %v266
      %v1412 = vunpack.c.h.b16 %v266
      %v1413 = vunpack.c.l.b16 %v267
      %v1414 = vunpack.c.h.b16 %v267
      %v1415 = vunpack.c.l.b16 %v268
      %v1416 = vunpack.c.h.b16 %v268
      %v1417 = vunpack.c.l.b16 %v269
      %v1418 = vunpack.c.h.b16 %v269
      %v1419 = vunpack.c.l.b16 %v270
      %v1420 = vunpack.c.h.b16 %v270
      %v1421 = vunpack.c.l.b16 %v271
      %v1422 = vunpack.c.h.b16 %v271
      %v1423 = vunpack.c.l.b16 %v272
      %v1424 = vunpack.c.h.b16 %v272
      %v1425 = vunpack.c.l.b16 %v273
      %v1426 = vunpack.c.h.b16 %v273
      %v1427 = vunpack.c.l.b16 %v274
      %v1428 = vunpack.c.h.b16 %v274
      %v1429 = vunpack.c.l.b16 %v275
      %v1430 = vunpack.c.h.b16 %v275
      %v1431 = vunpack.c.l.b16 %v276
      %v1432 = vunpack.c.h.b16 %v276
      %v1433 = vunpack.c.l.b16 %v277
      %v1434 = vunpack.c.h.b16 %v277
      %v1435 = vunpack.c.l.b16 %v278
      %v1436 = vunpack.c.h.b16 %v278
      %v1437 = vunpack.c.l.b16 %v279
      %v1438 = vunpack.c.h.b16 %v279
      %v1439 = vunpack.c.l.b16 %v280
      %v1440 = vunpack.c.h.b16 %v280
      %v1441 = vunpack.c.l.b16 %v281
      %v1442 = vunpack.c.h.b16 %v281
      %v1443 = vunpack.c.l.b16 %v282
      %v1444 = vunpack.c.h.b16 %v282
      %v1445 = vunpack.c.l.b16 %v283
      %v1446 = vunpack.c.h.b16 %v283
      %v1447 = vunpack.c.l.b16 %v284
      %v1448 = vunpack.c.h.b16 %v284
      %v1449 = vunpack.c.l.b16 %v285
      %v1450 = vunpack.c.h.b16 %v285
      %v1451 = vunpack.c.l.b16 %v286
      %v1452 = vunpack.c.h.b16 %v286
      %v1453 = vunpack.c.l.b16 %v287
      %v1454 = vunpack.c.h.b16 %v287
      %v1455 = vunpack.c.l.b16 %v288
      %v1456 = vunpack.c.h.b16 %v288
      %v1457 = vunpack.c.l.b16 %v289
      %v1458 = vunpack.c.h.b16 %v289
      %v1459 = vunpack.c.l.b16 %v290
      %v1460 = vunpack.c.h.b16 %v290
      %v1461 = vunpack.c.l.b16 %v291
      %v1462 = vunpack.c.h.b16 %v291
      %v1463 = vunpack.c.l.b16 %v292
      %v1464 = vunpack.c.h.b16 %v292
      %v1465 = vunpack.c.l.b16 %v293
      %v1466 = vunpack.c.h.b16 %v293
      %v1467 = vunpack.c.l.b16 %v294
      %v1468 = vunpack.c.h.b16 %v294
      %v1469 = vunpack.c.l.b16 %v295
      %v1470 = vunpack.c.h.b16 %v295
      %v1471 = vunpack.c.l.b16 %v296
      %v1472 = vunpack.c.h.b16 %v296
      %v1473 = vunpack.c.l.b16 %v297
      %v1474 = vunpack.c.h.b16 %v297
      %v1475 = vunpack.c.l.b16 %v298
      %v1476 = vunpack.c.h.b16 %v298
      %v1477 = vunpack.c.l.b16 %v299
      %v1478 = vunpack.c.h.b16 %v299
      %v1479 = vunpack.c.l.b16 %v300
      %v1480 = vunpack.c.h.b16 %v300
      %v1481 = vunpack.c.l.b16 %v301
      %v1482 = vunpack.c.h.b16 %v301
      %v1483 = vunpack.c.l.b16 %v302
      %v1484 = vunpack.c.h.b16 %v302
      %v1485 = vunpack.c.l.b16 %v303
      %v1486 = vunpack.c.h.b16 %v303
      %v1487 = vunpack.c.l.b16 %v304
      %v1488 = vunpack.c.h.b16 %v304
      %v1489 = vunpack.c.l.b16 %v305
      %v1490 = vunpack.c.h.b16 %v305
      %v1491 = vunpack.c.l.b16 %v306
      %v1492 = vunpack.c.h.b16 %v306
      %v1493 = vunpack.c.l.b16 %v307
      %v1494 = vunpack.c.h.b16 %v307
      %v1495 = vunpack.c.l.b16 %v308
      %v1496 = vunpack.c.h.b16 %v308
      %v1497 = vunpack.c.l.b16 %v309
      %v1498 = vunpack.c.h.b16 %v309
      %v1499 = vunpack.c.l.b16 %v310
      %v1500 = vunpack.c.h.b16 %v310
      %v1501 = vunpack.c.l.b16 %v311
      %v1502 = vunpack.c.h.b16 %v311
      %v1503 = vunpack.c.l.b16 %v312
      %v1504 = vunpack.c.h.b16 %v312
      %v1505 = vunpack.c.l.b16 %v313
      %v1506 = vunpack.c.h.b16 %v313
      %v1507 = vunpack.c.l.b16 %v314
      %v1508 = vunpack.c.h.b16 %v314
      %v1509 = vunpack.c.l.b16 %v315
      %v1510 = vunpack.c.h.b16 %v315
      %v1511 = vunpack.c.l.b16 %v316
      %v1512 = vunpack.c.h.b16 %v316
      %v1513 = vunpack.c.l.b16 %v317
      %v1514 = vunpack.c.h.b16 %v317
      %v1515 = vunpack.c.l.b16 %v318
      %v1516 = vunpack.c.h.b16 %v318
      %v1517 = vunpack.c.l.b16 %v319
      %v1518 = vunpack.c.h.b16 %v319
      %v1519 = vunpack.c.l.b16 %v320
      %v1520 = vunpack.c.h.b16 %v320
      %v1521 = vunpack.c.l.b16 %v321
      %v1522 = vunpack.c.h.b16 %v321
      %v1523 = vunpack.c.l.b16 %v322
      %v1524 = vunpack.c.h.b16 %v322
      %v1525 = vunpack.c.l.b16 %v323
      %v1526 = vunpack.c.h.b16 %v323
      %v1527 = vunpack.c.l.b16 %v324
      %v1528 = vunpack.c.h.b16 %v324
      %v1529 = vunpack.c.l.b16 %v325
      %v1530 = vunpack.c.h.b16 %v325
      %v1531 = vunpack.c.l.b16 %v326
      %v1532 = vunpack.c.h.b16 %v326
      %v1533 = vunpack.c.l.b16 %v327
      %v1534 = vunpack.c.h.b16 %v327
      %v1535 = vunpack.c.l.b16 %v328
      %v1536 = vunpack.c.h.b16 %v328
      %v1537 = vunpack.c.l.b16 %v329
      %v1538 = vunpack.c.h.b16 %v329
      %v1539 = vunpack.c.l.b16 %v330
      %v1540 = vunpack.c.h.b16 %v330
      %v1541 = vunpack.c.l.b16 %v331
      %v1542 = vunpack.c.h.b16 %v331
      %v1543 = vunpack.c.l.b16 %v332
      %v1544 = vunpack.c.h.b16 %v332
      %v1545 = vunpack.c.l.b16 %v333
      %v1546 = vunpack.c.h.b16 %v333
      %v1547 = vunpack.c.l.b16 %v334
      %v1548 = vunpack.c.h.b16 %v334
      %v1549 = vunpack.c.l.b16 %v335
      %v1550 = vunpack.c.h.b16 %v335
      %v1551 = vunpack.c.l.b16 %v336
      %v1552 = vunpack.c.h.b16 %v336
      %v1553 = vunpack.c.l.b16 %v337
      %v1554 = vunpack.c.h.b16 %v337
      %v1555 = vunpack.c.l.b16 %v338
      %v1556 = vunpack.c.h.b16 %v338
      %v1557 = vunpack.c.l.b16 %v339
      %v1558 = vunpack.c.h.b16 %v339
      %v1559 = vunpack.c.l.b16 %v340
      %v1560 = vunpack.c.h.b16 %v340
      %v1561 = vunpack.c.l.b16 %v341
      %v1562 = vunpack.c.h.b16 %v341
      %v1563 = vunpack.c.l.b16 %v342
      %v1564 = vunpack.c.h.b16 %v342
      %v1565 = vunpack.c.l.b16 %v343
      %v1566 = vunpack.c.h.b16 %v343
      %v1567 = vunpack.c.l.b16 %v344
      %v1568 = vunpack.c.h.b16 %v344
      %v1569 = vunpack.c.l.b16 %v345
      %v1570 = vunpack.c.h.b16 %v345
      %v1571 = vunpack.c.l.b16 %v346
      %v1572 = vunpack.c.h.b16 %v346
      %v1573 = vunpack.c.l.b16 %v347
      %v1574 = vunpack.c.h.b16 %v347
      %v1575 = vunpack.c.l.b16 %v348
      %v1576 = vunpack.c.h.b16 %v348
      %v1577 = vunpack.c.l.b16 %v349
      %v1578 = vunpack.c.h.b16 %v349
      %v1579 = vunpack.c.l.b16 %v350
      %v1580 = vunpack.c.h.b16 %v350
      %v1581 = vunpack.c.l.b16 %v351
      %v1582 = vunpack.c.h.b16 %v351
      %v1583 = vunpack.c.l.b16 %v352
      %v1584 = vunpack.c.h.b16 %v352
      %v1585 = vunpack.c.l.b16 %v353
      %v1586 = vunpack.c.h.b16 %v353
      %v1587 = vunpack.c.l.b16 %v354
      %v1588 = vunpack.c.h.b16 %v354
      %v1589 = vunpack.c.l.b16 %v355
      %v1590 = vunpack.c.h.b16 %v355
      %v1591 = vunpack.c.l.b16 %v356
      %v1592 = vunpack.c.h.b16 %v356
      %v1593 = vunpack.c.l.b16 %v357
      %v1594 = vunpack.c.h.b16 %v357
      %v1595 = vunpack.c.l.b16 %v358
      %v1596 = vunpack.c.h.b16 %v358
      %v1597 = vunpack.c.l.b16 %v359
      %v1598 = vunpack.c.h.b16 %v359
      %v1599 = vunpack.c.l.b16 %v360
      %v1600 = vunpack.c.h.b16 %v360
      %v1601 = vunpack.c.l.b16 %v361
      %v1602 = vunpack.c.h.b16 %v361
      %v1603 = vunpack.c.l.b16 %v362
      %v1604 = vunpack.c.h.b16 %v362
      %v1605 = vunpack.c.l.b16 %v363
      %v1606 = vunpack.c.h.b16 %v363
      %v1607 = vunpack.c.l.b16 %v364
      %v1608 = vunpack.c.h.b16 %v364
      %v1609 = vunpack.c.l.b16 %v365
      %v1610 = vunpack.c.h.b16 %v365
      %v1611 = vunpack.c.l.b16 %v366
      %v1612 = vunpack.c.h.b16 %v366
      %v1613 = vunpack.c.l.b16 %v367
      %v1614 = vunpack.c.h.b16 %v367
      %v1615 = vunpack.c.l.b16 %v368
      %v1616 = vunpack.c.h.b16 %v368
      %v1617 = vunpack.c.l.b16 %v369
      %v1618 = vunpack.c.h.b16 %v369
      %v1619 = vunpack.c.l.b16 %v370
      %v1620 = vunpack.c.h.b16 %v370
      %v1621 = vunpack.c.l.b16 %v371
      %v1622 = vunpack.c.h.b16 %v371
      %v1623 = vunpack.c.l.b16 %v372
      %v1624 = vunpack.c.h.b16 %v372
      %v1625 = vunpack.c.l.b16 %v373
      %v1626 = vunpack.c.h.b16 %v373
      %v1627 = vunpack.c.l.b16 %v374
      %v1628 = vunpack.c.h.b16 %v374
      %v1629 = vunpack.c.l.b16 %v375
      %v1630 = vunpack.c.h.b16 %v375
      %v1631 = vunpack.c.l.b16 %v376
      %v1632 = vunpack.c.h.b16 %v376
      %v1633 = vunpack.c.l.b16 %v377
      %v1634 = vunpack.c.h.b16 %v377
      %v1635 = vunpack.c.l.b16 %v378
      %v1636 = vunpack.c.h.b16 %v378
      %v1637 = vunpack.c.l.b16 %v379
      %v1638 = vunpack.c.h.b16 %v379
      %v1639 = vunpack.c.l.b16 %v380
      %v1640 = vunpack.c.h.b16 %v380
      %v1641 = vunpack.c.l.b16 %v381
      %v1642 = vunpack.c.h.b16 %v381
      %v1643 = vunpack.c.l.b16 %v382
      %v1644 = vunpack.c.h.b16 %v382
      %v1645 = vunpack.c.l.b16 %v383
      %v1646 = vunpack.c.h.b16 %v383
      %v1647 = vunpack.c.l.b16 %v384
      %v1648 = vunpack.c.h.b16 %v384
      %v1649 = vunpack.c.l.b16 %v385
      %v1650 = vunpack.c.h.b16 %v385
      %v1651 = vunpack.c.l.b16 %v386
      %v1652 = vunpack.c.h.b16 %v386
      %v1653 = vunpack.c.l.b16 %v387
      %v1654 = vunpack.c.h.b16 %v387
      %v1655 = vunpack.c.l.b16 %v388
      %v1656 = vunpack.c.h.b16 %v388
      %v1657 = vunpack.c.l.b16 %v389
      %v1658 = vunpack.c.h.b16 %v389
      %v1659 = vunpack.c.l.b16 %v390
      %v1660 = vunpack.c.h.b16 %v390
      %v1661 = vunpack.c.l.b16 %v391
      %v1662 = vunpack.c.h.b16 %v391
      %v1663 = vunpack.c.l.b16 %v392
      %v1664 = vunpack.c.h.b16 %v392
      %v1665 = vunpack.c.l.b16 %v393
      %v1666 = vunpack.c.h.b16 %v393
      %v1667 = vunpack.c.l.b16 %v394
      %v1668 = vunpack.c.h.b16 %v394
      %v1669 = vunpack.c.l.b16 %v395
      %v1670 = vunpack.c.h.b16 %v395
      %v1671 = vunpack.c.l.b16 %v396
      %v1672 = vunpack.c.h.b16 %v396
      %v1673 = vunpack.c.l.b16 %v397
      %v1674 = vunpack.c.h.b16 %v397
      %v1675 = vunpack.c.l.b16 %v398
      %v1676 = vunpack.c.h.b16 %v398
      %v1677 = vunpack.c.l.b16 %v399
      %v1678 = vunpack.c.h.b16 %v399
      %v1679 = vunpack.c.l.b16 %v400
      %v1680 = vunpack.c.h.b16 %v400
      %v1681 = vunpack.c.l.b16 %v401
      %v1682 = vunpack.c.h.b16 %v401
      %v1683 = vunpack.c.l.b16 %v402
      %v1684 = vunpack.c.h.b16 %v402
      %v1685 = vunpack.c.l.b16 %v403
      %v1686 = vunpack.c.h.b16 %v403
      %v1687 = vunpack.c.l.b16 %v404
      %v1688 = vunpack.c.h.b16 %v404
      %v1689 = vunpack.c.l.b16 %v405
      %v1690 = vunpack.c.h.b16 %v405
      %v1691 = vunpack.c.l.b16 %v406
      %v1692 = vunpack.c.h.b16 %v406
      %v1693 = vunpack.c.l.b16 %v407
      %v1694 = vunpack.c.h.b16 %v407
      %v1695 = vunpack.c.l.b16 %v408
      %v1696 = vunpack.c.h.b16 %v408
      %v1697 = vunpack.c.l.b16 %v409
      %v1698 = vunpack.c.h.b16 %v409
      %v1699 = vunpack.c.l.b16 %v410
      %v1700 = vunpack.c.h.b16 %v410
      %v1701 = vunpack.c.l.b16 %v411
      %v1702 = vunpack.c.h.b16 %v411
      %v1703 = vunpack.c.l.b16 %v412
      %v1704 = vunpack.c.h.b16 %v412
      %v1705 = vunpack.c.l.b16 %v413
      %v1706 = vunpack.c.h.b16 %v413
      %v1707 = vunpack.c.l.b16 %v414
      %v1708 = vunpack.c.h.b16 %v414
      %v1709 = vunpack.c.l.b16 %v415
      %v1710 = vunpack.c.h.b16 %v415
      %v1711 = vunpack.c.l.b16 %v416
      %v1712 = vunpack.c.h.b16 %v416
      %v1713 = vunpack.c.l.b16 %v417
      %v1714 = vunpack.c.h.b16 %v417
      %v1715 = vunpack.c.l.b16 %v418
      %v1716 = vunpack.c.h.b16 %v418
      %v1717 = vunpack.c.l.b16 %v419
      %v1718 = vunpack.c.h.b16 %v419
      %v1719 = vunpack.c.l.b16 %v420
      %v1720 = vunpack.c.h.b16 %v420
      %v1721 = vunpack.c.l.b16 %v421
      %v1722 = vunpack.c.h.b16 %v421
      %v1723 = vunpack.c.l.b16 %v422
      %v1724 = vunpack.c.h.b16 %v422
      %v1725 = vunpack.c.l.b16 %v423
      %v1726 = vunpack.c.h.b16 %v423
      %v1727 = vunpack.c.l.b16 %v424
      %v1728 = vunpack.c.h.b16 %v424
      %v1729 = vunpack.c.l.b16 %v425
      %v1730 = vunpack.c.h.b16 %v425
      %v1731 = vunpack.c.l.b16 %v426
      %v1732 = vunpack.c.h.b16 %v426
      %v1733 = vunpack.c.l.b16 %v427
      %v1734 = vunpack.c.h.b16 %v427
      %v1735 = vunpack.c.l.b16 %v428
      %v1736 = vunpack.c.h.b16 %v428
      %v1737 = vunpack.c.l.b16 %v429
      %v1738 = vunpack.c.h.b16 %v429
      %v1739 = vunpack.c.l.b16 %v430
      %v1740 = vunpack.c.h.b16 %v430
      %v1741 = vunpack.c.l.b16 %v431
      %v1742 = vunpack.c.h.b16 %v431
      %v1743 = vunpack.c.l.b16 %v432
      %v1744 = vunpack.c.h.b16 %v432
      %v1745 = vunpack.c.l.b16 %v433
      %v1746 = vunpack.c.h.b16 %v433
      %v1747 = vunpack.c.l.b16 %v434
      %v1748 = vunpack.c.h.b16 %v434
      %v1749 = vunpack.c.l.b16 %v435
      %v1750 = vunpack.c.h.b16 %v435
      %v1751 = vunpack.c.l.b16 %v436
      %v1752 = vunpack.c.h.b16 %v436
      %v1753 = vunpack.c.l.b16 %v437
      %v1754 = vunpack.c.h.b16 %v437
      %v1755 = vunpack.c.l.b16 %v438
      %v1756 = vunpack.c.h.b16 %v438
      %v1757 = vunpack.c.l.b16 %v439
      %v1758 = vunpack.c.h.b16 %v439
      %v1759 = vunpack.c.l.b16 %v440
      %v1760 = vunpack.c.h.b16 %v440
      %v1761 = vunpack.c.l.b16 %v441
      %v1762 = vunpack.c.h.b16 %v441
      %v1763 = vunpack.c.l.b16 %v442
      %v1764 = vunpack.c.h.b16 %v442
      %v1765 = vunpack.c.l.b16 %v443
      %v1766 = vunpack.c.h.b16 %v443
      %v1767 = vunpack.c.l.b16 %v444
      %v1768 = vunpack.c.h.b16 %v444
      %v1769 = vunpack.c.l.b16 %v445
      %v1770 = vunpack.c.h.b16 %v445
      %v1771 = vunpack.c.l.b16 %v446
      %v1772 = vunpack.c.h.b16 %v446
      %v1773 = vunpack.c.l.b16 %v447
      %v1774 = vunpack.c.h.b16 %v447
      %v1775 = vunpack.c.l.b16 %v448
      %v1776 = vunpack.c.h.b16 %v448
      %v1777 = vunpack.c.l.b16 %v449
      %v1778 = vunpack.c.h.b16 %v449
      %v1779 = vunpack.c.l.b16 %v450
      %v1780 = vunpack.c.h.b16 %v450
      %v1781 = vunpack.c.l.b16 %v451
      %v1782 = vunpack.c.h.b16 %v451
      %v1783 = vunpack.c.l.b16 %v452
      %v1784 = vunpack.c.h.b16 %v452
      %v1785 = vunpack.c.l.b16 %v453
      %v1786 = vunpack.c.h.b16 %v453
      %v1787 = vunpack.c.l.b16 %v454
      %v1788 = vunpack.c.h.b16 %v454
      %v1789 = vunpack.c.l.b16 %v455
      %v1790 = vunpack.c.h.b16 %v455
      %v1791 = vunpack.c.l.b16 %v456
      %v1792 = vunpack.c.h.b16 %v456
      %v1793 = vunpack.c.l.b16 %v457
      %v1794 = vunpack.c.h.b16 %v457
      %v1795 = vunpack.c.l.b16 %v458
      %v1796 = vunpack.c.h.b16 %v458
      %v1797 = vunpack.c.l.b16 %v459
      %v1798 = vunpack.c.h.b16 %v459
      %v1799 = vunpack.c.l.b16 %v460
      %v1800 = vunpack.c.h.b16 %v460
      %v1801 = vunpack.c.l.b16 %v461
      %v1802 = vunpack.c.h.b16 %v461
      %v1803 = vunpack.c.l.b16 %v462
      %v1804 = vunpack.c.h.b16 %v462
      %v1805 = vunpack.c.l.b16 %v463
      %v1806 = vunpack.c.h.b16 %v463
      %v1807 = vunpack.c.l.b16 %v464
      %v1808 = vunpack.c.h.b16 %v464
      %v1809 = vunpack.c.l.b16 %v465
      %v1810 = vunpack.c.h.b16 %v465
      %v1811 = vunpack.c.l.b16 %v466
      %v1812 = vunpack.c.h.b16 %v466
      %v1813 = vunpack.c.l.b16 %v467
      %v1814 = vunpack.c.h.b16 %v467
      %v1815 = vunpack.c.l.b16 %v468
      %v1816 = vunpack.c.h.b16 %v468
      %v1817 = vunpack.c.l.b16 %v469
      %v1818 = vunpack.c.h.b16 %v469
      %v1819 = vunpack.c.l.b16 %v470
      %v1820 = vunpack.c.h.b16 %v470
      %v1821 = vunpack.c.l.b16 %v471
      %v1822 = vunpack.c.h.b16 %v471
      %v1823 = vunpack.c.l.b16 %v472
      %v1824 = vunpack.c.h.b16 %v472
      %v1825 = vunpack.c.l.b16 %v473
      %v1826 = vunpack.c.h.b16 %v473
      %v1827 = vunpack.c.l.b16 %v474
      %v1828 = vunpack.c.h.b16 %v474
      %v1829 = vunpack.c.l.b16 %v475
      %v1830 = vunpack.c.h.b16 %v475
      %v1831 = vunpack.c.l.b16 %v476
      %v1832 = vunpack.c.h.b16 %v476
      %v1833 = vunpack.c.l.b16 %v477
      %v1834 = vunpack.c.h.b16 %v477
      %v1835 = vunpack.c.l.b16 %v478
      %v1836 = vunpack.c.h.b16 %v478
      %v1837 = vunpack.c.l.b16 %v479
      %v1838 = vunpack.c.h.b16 %v479
      %v1839 = vunpack.c.l.b16 %v480
      %v1840 = vunpack.c.h.b16 %v480
      %v1841 = vunpack.c.l.b16 %v481
      %v1842 = vunpack.c.h.b16 %v481
      %v1843 = vunpack.c.l.b16 %v482
      %v1844 = vunpack.c.h.b16 %v482
      %v1845 = vunpack.c.l.b16 %v483
      %v1846 = vunpack.c.h.b16 %v483
      %v1847 = vunpack.c.l.b16 %v484
      %v1848 = vunpack.c.h.b16 %v484
      %v1849 = vunpack.c.l.b16 %v485
      %v1850 = vunpack.c.h.b16 %v485
      %v1851 = vunpack.c.l.b16 %v486
      %v1852 = vunpack.c.h.b16 %v486
      %v1853 = vunpack.c.l.b16 %v487
      %v1854 = vunpack.c.h.b16 %v487
      %v1855 = vunpack.c.l.b16 %v488
      %v1856 = vunpack.c.h.b16 %v488
      %v1857 = vunpack.c.l.b16 %v489
      %v1858 = vunpack.c.h.b16 %v489
      %v1859 = vunpack.c.l.b16 %v490
      %v1860 = vunpack.c.h.b16 %v490
      %v1861 = vunpack.c.l.b16 %v491
      %v1862 = vunpack.c.h.b16 %v491
      %v1863 = vunpack.c.l.b16 %v492
      %v1864 = vunpack.c.h.b16 %v492
      %v1865 = vunpack.c.l.b16 %v493
      %v1866 = vunpack.c.h.b16 %v493
      %v1867 = vunpack.c.l.b16 %v494
      %v1868 = vunpack.c.h.b16 %v494
      %v1869 = vunpack.c.l.b16 %v495
      %v1870 = vunpack.c.h.b16 %v495
      %v1871 = vunpack.c.l.b16 %v496
      %v1872 = vunpack.c.h.b16 %v496
      %v1873 = vunpack.c.l.b16 %v497
      %v1874 = vunpack.c.h.b16 %v497
      %v1875 = vunpack.c.l.b16 %v498
      %v1876 = vunpack.c.h.b16 %v498
      %v1877 = vunpack.c.l.b16 %v499
      %v1878 = vunpack.c.h.b16 %v499
      %v1879 = vunpack.c.l.b16 %v500
      %v1880 = vunpack.c.h.b16 %v500
      %v1881 = vunpack.c.l.b16 %v501
      %v1882 = vunpack.c.h.b16 %v501
      %v1883 = vunpack.c.l.b16 %v502
      %v1884 = vunpack.c.h.b16 %v502
      %v1885 = vunpack.c.l.b16 %v503
      %v1886 = vunpack.c.h.b16 %v503
      %v1887 = vunpack.c.l.b16 %v504
      %v1888 = vunpack.c.h.b16 %v504
      %v1889 = vunpack.c.l.b16 %v505
      %v1890 = vunpack.c.h.b16 %v505
      %v1891 = vunpack.c.l.b16 %v506
      %v1892 = vunpack.c.h.b16 %v506
      %v1893 = vunpack.c.l.b16 %v507
      %v1894 = vunpack.c.h.b16 %v507
      %v1895 = vunpack.c.l.b16 %v508
      %v1896 = vunpack.c.h.b16 %v508
      %v1897 = vunpack.c.l.b16 %v509
      %v1898 = vunpack.c.h.b16 %v509
      %v1899 = vunpack.c.l.b16 %v510
      %v1900 = vunpack.c.h.b16 %v510
      %v1901 = vunpack.c.l.b16 %v511
      %v1902 = vunpack.c.h.b16 %v511
      %v1903 = vunpack.c.l.b16 %v512
      %v1904 = vunpack.c.h.b16 %v512
      %v1905 = vunpack.c.l.b16 %v513
      %v1906 = vunpack.c.h.b16 %v513
      %v1907 = vunpack.c.l.b16 %v514
      %v1908 = vunpack.c.h.b16 %v514
      %v1909 = vunpack.c.l.b16 %v515
      %v1910 = vunpack.c.h.b16 %v515
      %v1911 = vunpack.c.l.b16 %v516
      %v1912 = vunpack.c.h.b16 %v516
      %v1913 = vunpack.c.l.b16 %v517
      %v1914 = vunpack.c.h.b16 %v517
      %v1915 = vunpack.c.l.b16 %v518
      %v1916 = vunpack.c.h.b16 %v518
      %v1917 = vunpack.c.l.b16 %v519
      %v1918 = vunpack.c.h.b16 %v519
      %v1919 = vunpack.c.l.b16 %v520
      %v1920 = vunpack.c.h.b16 %v520
      %v1921 = vunpack.c.l.b16 %v521
      %v1922 = vunpack.c.h.b16 %v521
      %v1923 = vunpack.c.l.b16 %v522
      %v1924 = vunpack.c.h.b16 %v522
      %v1925 = vunpack.c.l.b16 %v523
      %v1926 = vunpack.c.h.b16 %v523
      %v1927 = vunpack.c.l.b16 %v524
      %v1928 = vunpack.c.h.b16 %v524
      %v1929 = vunpack.c.l.b16 %v525
      %v1930 = vunpack.c.h.b16 %v525
      %v1931 = vunpack.c.l.b16 %v526
      %v1932 = vunpack.c.h.b16 %v526
      %v1933 = vunpack.c.l.b16 %v527
      %v1934 = vunpack.c.h.b16 %v527
      %v1935 = vunpack.c.l.b16 %v528
      %v1936 = vunpack.c.h.b16 %v528
      %v1937 = vunpack.c.l.b16 %v529
      %v1938 = vunpack.c.h.b16 %v529
      %v1939 = vunpack.c.l.b16 %v530
      %v1940 = vunpack.c.h.b16 %v530
      %v1941 = vunpack.c.l.b16 %v531
      %v1942 = vunpack.c.h.b16 %v531
      %v1943 = vunpack.c.l.b16 %v532
      %v1944 = vunpack.c.h.b16 %v532
      %v1945 = vunpack.c.l.b16 %v533
      %v1946 = vunpack.c.h.b16 %v533
      %v1947 = vunpack.c.l.b16 %v534
      %v1948 = vunpack.c.h.b16 %v534
      %v1949 = vunpack.c.l.b16 %v535
      %v1950 = vunpack.c.h.b16 %v535
      %v1951 = vunpack.c.l.b16 %v536
      %v1952 = vunpack.c.h.b16 %v536
      %v1953 = vunpack.c.l.b16 %v537
      %v1954 = vunpack.c.h.b16 %v537
      %v1955 = vunpack.c.l.b16 %v538
      %v1956 = vunpack.c.h.b16 %v538
      %v1957 = vunpack.c.l.b16 %v539
      %v1958 = vunpack.c.h.b16 %v539
      %v1959 = vunpack.c.l.b16 %v540
      %v1960 = vunpack.c.h.b16 %v540
      %v1961 = vunpack.c.l.b16 %v541
      %v1962 = vunpack.c.h.b16 %v541
      %v1963 = vunpack.c.l.b16 %v542
      %v1964 = vunpack.c.h.b16 %v542
      %v1965 = vunpack.c.l.b16 %v543
      %v1966 = vunpack.c.h.b16 %v543
      %v1967 = vunpack.c.l.b16 %v544
      %v1968 = vunpack.c.h.b16 %v544
      %v1969 = vunpack.c.l.b16 %v545
      %v1970 = vunpack.c.h.b16 %v545
      %v1971 = vunpack.c.l.b16 %v546
      %v1972 = vunpack.c.h.b16 %v546
      %v1973 = vunpack.c.l.b16 %v547
      %v1974 = vunpack.c.h.b16 %v547
      %v1975 = vunpack.c.l.b16 %v548
      %v1976 = vunpack.c.h.b16 %v548
      %v1977 = vunpack.c.l.b16 %v549
      %v1978 = vunpack.c.h.b16 %v549
      %v1979 = vunpack.c.l.b16 %v550
      %v1980 = vunpack.c.h.b16 %v550
      %v1981 = vunpack.c.l.b16 %v551
      %v1982 = vunpack.c.h.b16 %v551
      %v1983 = vunpack.c.l.b16 %v552
      %v1984 = vunpack.c.h.b16 %v552
      %v1985 = vunpack.c.l.b16 %v553
      %v1986 = vunpack.c.h.b16 %v553
      %v1987 = vunpack.c.l.b16 %v554
      %v1988 = vunpack.c.h.b16 %v554
      %v1989 = vunpack.c.l.b16 %v555
      %v1990 = vunpack.c.h.b16 %v555
      %v1991 = vunpack.c.l.b16 %v556
      %v1992 = vunpack.c.h.b16 %v556
      %v1993 = vunpack.c.l.b16 %v557
      %v1994 = vunpack.c.h.b16 %v557
      %v1995 = vunpack.c.l.b16 %v558
      %v1996 = vunpack.c.h.b16 %v558
      %v1997 = vunpack.c.l.b16 %v559
      %v1998 = vunpack.c.h.b16 %v559
      %v1999 = vunpack.c.l.b16 %v560
      %v2000 = vunpack.c.h.b16 %v560
      %v2001 = vunpack.c.l.b16 %v561
      %v2002 = vunpack.c.h.b16 %v561
      %v2003 = vunpack.c.l.b16 %v562
      %v2004 = vunpack.c.h.b16 %v562
      %v2005 = vunpack.c.l.b16 %v563
      %v2006 = vunpack.c.h.b16 %v563
      %v2007 = vunpack.c.l.b16 %v564
      %v2008 = vunpack.c.h.b16 %v564
      %v2009 = vunpack.c.l.b16 %v565
      %v2010 = vunpack.c.h.b16 %v565
      %v2011 = vunpack.c.l.b16 %v566
      %v2012 = vunpack.c.h.b16 %v566
      %v2013 = vunpack.c.l.b16 %v567
      %v2014 = vunpack.c.h.b16 %v567
      %v2015 = vunpack.c.l.b16 %v568
      %v2016 = vunpack.c.h.b16 %v568
      %v2017 = vunpack.c.l.b16 %v569
      %v2018 = vunpack.c.h.b16 %v569
      %v2019 = vunpack.c.l.b16 %v570
      %v2020 = vunpack.c.h.b16 %v570
      %v2021 = vunpack.c.l.b16 %v571
      %v2022 = vunpack.c.h.b16 %v571
      %v2023 = vunpack.c.l.b16 %v572
      %v2024 = vunpack.c.h.b16 %v572
      %v2025 = vunpack.c.l.b16 %v573
      %v2026 = vunpack.c.h.b16 %v573
      %v2027 = vunpack.c.l.b16 %v574
      %v2028 = vunpack.c.h.b16 %v574
      %v2029 = vunpack.c.l.b16 %v575
      %v2030 = vunpack.c.h.b16 %v575
      %v2031 = vunpack.c.l.b16 %v576
      %v2032 = vunpack.c.h.b16 %v576
      %v2033 = vunpack.c.l.b16 %v577
      %v2034 = vunpack.c.h.b16 %v577
      %v2035 = vunpack.c.l.b16 %v578
      %v2036 = vunpack.c.h.b16 %v578
      %v2037 = vunpack.c.l.b16 %v579
      %v2038 = vunpack.c.h.b16 %v579
      %v2039 = vunpack.c.l.b16 %v580
      %v2040 = vunpack.c.h.b16 %v580
      %v2041 = vunpack.c.l.b16 %v581
      %v2042 = vunpack.c.h.b16 %v581
      %v2043 = vunpack.c.l.b16 %v582
      %v2044 = vunpack.c.h.b16 %v582
      %v2045 = vunpack.c.l.b16 %v583
      %v2046 = vunpack.c.h.b16 %v583
      %v2047 = vunpack.c.l.b16 %v584
      %v2048 = vunpack.c.h.b16 %v584
      %v2049 = vunpack.c.l.b16 %v585
      %v2050 = vunpack.c.h.b16 %v585
      %v2051 = vunpack.c.l.b16 %v586
      %v2052 = vunpack.c.h.b16 %v586
      %v2053 = vunpack.c.l.b16 %v587
      %v2054 = vunpack.c.h.b16 %v587
      %v2055 = vunpack.c.l.b16 %v588
      %v2056 = vunpack.c.h.b16 %v588
      %v2057 = vunpack.c.l.b16 %v589
      %v2058 = vunpack.c.h.b16 %v589
      %v2059 = vunpack.c.l.b16 %v590
      %v2060 = vunpack.c.h.b16 %v590
      %v2061 = vunpack.c.l.b16 %v591
      %v2062 = vunpack.c.h.b16 %v591
      %v2063 = vunpack.c.l.b16 %v592
      %v2064 = vunpack.c.h.b16 %v592
      %v2065 = vunpack.c.l.b16 %v593
      %v2066 = vunpack.c.h.b16 %v593
      %v2067 = vunpack.c.l.b16 %v594
      %v2068 = vunpack.c.h.b16 %v594
      %v2069 = vunpack.c.l.b16 %v595
      %v2070 = vunpack.c.h.b16 %v595
      %v2071 = vunpack.c.l.b16 %v596
      %v2072 = vunpack.c.h.b16 %v596
      %v2073 = vunpack.c.l.b16 %v597
      %v2074 = vunpack.c.h.b16 %v597
      %v2075 = vunpack.c.l.b16 %v598
      %v2076 = vunpack.c.h.b16 %v598
      %v2077 = vunpack.c.l.b16 %v599
      %v2078 = vunpack.c.h.b16 %v599
      %v2079 = vunpack.c.l.b16 %v600
      %v2080 = vunpack.c.h.b16 %v600
      %v2081 = vunpack.c.l.b16 %v601
      %v2082 = vunpack.c.h.b16 %v601
      %v2083 = vunpack.c.l.b16 %v602
      %v2084 = vunpack.c.h.b16 %v602
      %v2085 = vunpack.c.l.b16 %v603
      %v2086 = vunpack.c.h.b16 %v603
      %v2087 = vunpack.c.l.b16 %v604
      %v2088 = vunpack.c.h.b16 %v604
      %v2089 = vunpack.c.l.b16 %v605
      %v2090 = vunpack.c.h.b16 %v605
      %v2091 = vunpack.c.l.b16 %v606
      %v2092 = vunpack.c.h.b16 %v606
      %v2093 = vunpack.c.l.b16 %v607
      %v2094 = vunpack.c.h.b16 %v607
      %v2095 = vunpack.c.l.b16 %v608
      %v2096 = vunpack.c.h.b16 %v608
      %v2097 = vunpack.c.l.b16 %v609
      %v2098 = vunpack.c.h.b16 %v609
      %v2099 = vunpack.c.l.b16 %v610
      %v2100 = vunpack.c.h.b16 %v610
      %v2101 = vunpack.c.l.b16 %v611
      %v2102 = vunpack.c.h.b16 %v611
      %v2103 = vunpack.c.l.b16 %v612
      %v2104 = vunpack.c.h.b16 %v612
      %v2105 = vunpack.c.l.b16 %v613
      %v2106 = vunpack.c.h.b16 %v613
      %v2107 = vunpack.c.l.b16 %v614
      %v2108 = vunpack.c.h.b16 %v614
      %v2109 = vunpack.c.l.b16 %v615
      %v2110 = vunpack.c.h.b16 %v615
      %v2111 = vunpack.c.l.b16 %v616
      %v2112 = vunpack.c.h.b16 %v616
      %v2113 = vunpack.c.l.b16 %v617
      %v2114 = vunpack.c.h.b16 %v617
      %v2115 = vunpack.c.l.b16 %v618
      %v2116 = vunpack.c.h.b16 %v618
      %v2117 = vunpack.c.l.b16 %v619
      %v2118 = vunpack.c.h.b16 %v619
      %v2119 = vunpack.c.l.b16 %v620
      %v2120 = vunpack.c.h.b16 %v620
      %v2121 = vunpack.c.l.b16 %v621
      %v2122 = vunpack.c.h.b16 %v621
      %v2123 = vunpack.c.l.b16 %v622
      %v2124 = vunpack.c.h.b16 %v622
      %v2125 = vunpack.c.l.b16 %v623
      %v2126 = vunpack.c.h.b16 %v623
      %v2127 = vunpack.c.l.b16 %v624
      %v2128 = vunpack.c.h.b16 %v624
      %v2129 = vunpack.c.l.b16 %v625
      %v2130 = vunpack.c.h.b16 %v625
      %v2131 = vunpack.c.l.b16 %v626
      %v2132 = vunpack.c.h.b16 %v626
      %v2133 = vunpack.c.l.b16 %v627
      %v2134 = vunpack.c.h.b16 %v627
      %v2135 = vunpack.c.l.b16 %v628
      %v2136 = vunpack.c.h.b16 %v628
      %v2137 = vunpack.c.l.b16 %v629
      %v2138 = vunpack.c.h.b16 %v629
      %v2139 = vunpack.c.l.b16 %v630
      %v2140 = vunpack.c.h.b16 %v630
      %v2141 = vunpack.c.l.b16 %v631
      %v2142 = vunpack.c.h.b16 %v631
      %v2143 = vunpack.c.l.b16 %v632
      %v2144 = vunpack.c.h.b16 %v632
      %v2145 = vunpack.c.l.b16 %v633
      %v2146 = vunpack.c.h.b16 %v633
      %v2147 = vunpack.c.l.b16 %v634
      %v2148 = vunpack.c.h.b16 %v634
      %v2149 = vunpack.c.l.b16 %v635
      %v2150 = vunpack.c.h.b16 %v635
      %v2151 = vunpack.c.l.b16 %v636
      %v2152 = vunpack.c.h.b16 %v636
      %v2153 = vunpack.c.l.b16 %v637
      %v2154 = vunpack.c.h.b16 %v637
      %v2155 = vunpack.c.l.b16 %v638
      %v2156 = vunpack.c.h.b16 %v638
      %v2157 = vunpack.c.l.b16 %v639
      %v2158 = vunpack.c.h.b16 %v639
      %v2159 = vunpack.c.l.b16 %v640
      %v2160 = vunpack.c.h.b16 %v640
      %v2161 = vunpack.c.l.b16 %v641
      %v2162 = vunpack.c.h.b16 %v641
      %v2163 = vunpack.c.l.b16 %v642
      %v2164 = vunpack.c.h.b16 %v642
      %v2165 = vunpack.c.l.b16 %v643
      %v2166 = vunpack.c.h.b16 %v643
      %v2167 = vunpack.c.l.b16 %v644
      %v2168 = vunpack.c.h.b16 %v644
      %v2169 = vunpack.c.l.b16 %v645
      %v2170 = vunpack.c.h.b16 %v645
      %v2171 = vunpack.c.l.b16 %v646
      %v2172 = vunpack.c.h.b16 %v646
      %v2173 = vunpack.c.l.b16 %v647
      %v2174 = vunpack.c.h.b16 %v647
      %v2175 = vunpack.c.l.b16 %v648
      %v2176 = vunpack.c.h.b16 %v648
      %v2177 = vunpack.c.l.b16 %v649
      %v2178 = vunpack.c.h.b16 %v649
      %v2179 = vunpack.c.l.b16 %v650
      %v2180 = vunpack.c.h.b16 %v650
      %v2181 = vunpack.c.l.b16 %v651
      %v2182 = vunpack.c.h.b16 %v651
      %v2183 = vunpack.c.l.b16 %v652
      %v2184 = vunpack.c.h.b16 %v652
      %v2185 = vunpack.c.l.b16 %v653
      %v2186 = vunpack.c.h.b16 %v653
      %v2187 = vunpack.c.l.b16 %v654
      %v2188 = vunpack.c.h.b16 %v654
      %v2189 = vunpack.c.l.b16 %v655
      %v2190 = vunpack.c.h.b16 %v655
      %v2191 = vunpack.c.l.b16 %v656
      %v2192 = vunpack.c.h.b16 %v656
      %v2193 = vunpack.c.l.b16 %v657
      %v2194 = vunpack.c.h.b16 %v657
      %v2195 = vunpack.c.l.b16 %v658
      %v2196 = vunpack.c.h.b16 %v658
      %v2197 = vunpack.c.l.b16 %v659
      %v2198 = vunpack.c.h.b16 %v659
      %v2199 = vunpack.c.l.b16 %v660
      %v2200 = vunpack.c.h.b16 %v660
      %v2201 = vunpack.c.l.b16 %v661
      %v2202 = vunpack.c.h.b16 %v661
      %v2203 = vunpack.c.l.b16 %v662
      %v2204 = vunpack.c.h.b16 %v662
      %v2205 = vunpack.c.l.b16 %v663
      %v2206 = vunpack.c.h.b16 %v663
      %v2207 = vunpack.c.l.b16 %v664
      %v2208 = vunpack.c.h.b16 %v664
      %v2209 = vunpack.c.l.b16 %v665
      %v2210 = vunpack.c.h.b16 %v665
      %v2211 = vunpack.c.l.b16 %v666
      %v2212 = vunpack.c.h.b16 %v666
      %v2213 = vunpack.c.l.b16 %v667
      %v2214 = vunpack.c.h.b16 %v667
      %v2215 = vunpack.c.l.b16 %v668
      %v2216 = vunpack.c.h.b16 %v668
      %v2217 = vunpack.c.l.b16 %v669
      %v2218 = vunpack.c.h.b16 %v669
      %v2219 = vunpack.c.l.b16 %v670
      %v2220 = vunpack.c.h.b16 %v670
      %v2221 = vunpack.c.l.b16 %v671
      %v2222 = vunpack.c.h.b16 %v671
      %v2223 = vunpack.c.l.b16 %v672
      %v2224 = vunpack.c.h.b16 %v672
      %v2225 = vunpack.c.l.b16 %v673
      %v2226 = vunpack.c.h.b16 %v673
      %v2227 = vunpack.c.l.b16 %v674
      %v2228 = vunpack.c.h.b16 %v674
      %v2229 = vunpack.c.l.b16 %v675
      %v2230 = vunpack.c.h.b16 %v675
      %v2231 = vunpack.c.l.b16 %v676
      %v2232 = vunpack.c.h.b16 %v676
      %v2233 = vunpack.c.l.b16 %v677
      %v2234 = vunpack.c.h.b16 %v677
      %v2235 = vunpack.c.l.b16 %v678
      %v2236 = vunpack.c.h.b16 %v678
      %v2237 = vunpack.c.l.b16 %v679
      %v2238 = vunpack.c.h.b16 %v679
      %v2239 = vunpack.c.l.b16 %v680
      %v2240 = vunpack.c.h.b16 %v680
      %v2241 = vunpack.c.l.b16 %v681
      %v2242 = vunpack.c.h.b16 %v681
      %v2243 = vunpack.c.l.b16 %v682
      %v2244 = vunpack.c.h.b16 %v682
      %v2245 = vunpack.c.l.b16 %v683
      %v2246 = vunpack.c.h.b16 %v683
      %v2247 = vunpack.c.l.b16 %v684
      %v2248 = vunpack.c.h.b16 %v684
      %v2249 = vunpack.c.l.b16 %v685
      %v2250 = vunpack.c.h.b16 %v685
      %v2251 = vunpack.c.l.b16 %v686
      %v2252 = vunpack.c.h.b16 %v686
      %v2253 = vunpack.c.l.b16 %v687
      %v2254 = vunpack.c.h.b16 %v687
      %v2255 = vunpack.c.l.b16 %v688
      %v2256 = vunpack.c.h.b16 %v688
      %v2257 = vunpack.c.l.b16 %v689
      %v2258 = vunpack.c.h.b16 %v689
      %v2259 = vunpack.c.l.b16 %v690
      %v2260 = vunpack.c.h.b16 %v690
      %v2261 = vunpack.c.l.b16 %v691
      %v2262 = vunpack.c.h.b16 %v691
      %v2263 = vunpack.c.l.b16 %v692
      %v2264 = vunpack.c.h.b16 %v692
      %v2265 = vunpack.c.l.b16 %v693
      %v2266 = vunpack.c.h.b16 %v693
      %v2267 = vunpack.c.l.b16 %v694
      %v2268 = vunpack.c.h.b16 %v694
      %v2269 = vunpack.c.l.b16 %v695
      %v2270 = vunpack.c.h.b16 %v695
      %v2271 = vunpack.c.l.b16 %v696
      %v2272 = vunpack.c.h.b16 %v696
      %v2273 = vpack.c.b16 %v1257, %v1249
      %v2274 = vpack.c.b16 %v1258, %v1250
      %v2275 = vpack.c.b16 %v1259, %v1251
      %v2276 = vpack.c.b16 %v1260, %v1252
      %v2277 = vpack.c.b16 %v1261, %v1253
      %v2278 = vpack.c.b16 %v1262, %v1254
      %v2279 = vpack.c.b16 %v1263, %v1255
      %v2280 = vpack.c.b16 %v1264, %v1256
      %v2281 = vpack.c.b16 %v1273, %v1265
      %v2282 = vpack.c.b16 %v1274, %v1266
      %v2283 = vpack.c.b16 %v1275, %v1267
      %v2284 = vpack.c.b16 %v1276, %v1268
      %v2285 = vpack.c.b16 %v1277, %v1269
      %v2286 = vpack.c.b16 %v1278, %v1270
      %v2287 = vpack.c.b16 %v1279, %v1271
      %v2288 = vpack.c.b16 %v1280, %v1272
      %v2289 = vpack.c.b16 %v1289, %v1281
      %v2290 = vpack.c.b16 %v1290, %v1282
      %v2291 = vpack.c.b16 %v1291, %v1283
      %v2292 = vpack.c.b16 %v1292, %v1284
      %v2293 = vpack.c.b16 %v1293, %v1285
      %v2294 = vpack.c.b16 %v1294, %v1286
      %v2295 = vpack.c.b16 %v1295, %v1287
      %v2296 = vpack.c.b16 %v1296, %v1288
      %v2297 = vpack.c.b16 %v1305, %v1297
      %v2298 = vpack.c.b16 %v1306, %v1298
      %v2299 = vpack.c.b16 %v1307, %v1299
      %v2300 = vpack.c.b16 %v1308, %v1300
      %v2301 = vpack.c.b16 %v1309, %v1301
      %v2302 = vpack.c.b16 %v1310, %v1302
      %v2303 = vpack.c.b16 %v1311, %v1303
      %v2304 = vpack.c.b16 %v1312, %v1304
      %v2305 = vpack.c.b16 %v1321, %v1313
      %v2306 = vpack.c.b16 %v1322, %v1314
      %v2307 = vpack.c.b16 %v1323, %v1315
      %v2308 = vpack.c.b16 %v1324, %v1316
      %v2309 = vpack.c.b16 %v1325, %v1317
      %v2310 = vpack.c.b16 %v1326, %v1318
      %v2311 = vpack.c.b16 %v1327, %v1319
      %v2312 = vpack.c.b16 %v1328, %v1320
      %v2313 = vpack.c.b16 %v1337, %v1329
      %v2314 = vpack.c.b16 %v1338, %v1330
      %v2315 = vpack.c.b16 %v1339, %v1331
      %v2316 = vpack.c.b16 %v1340, %v1332
      %v2317 = vpack.c.b16 %v1341, %v1333
      %v2318 = vpack.c.b16 %v1342, %v1334
      %v2319 = vpack.c.b16 %v1343, %v1335
      %v2320 = vpack.c.b16 %v1344, %v1336
      %v2321 = vpack.c.b16 %v1353, %v1345
      %v2322 = vpack.c.b16 %v1354, %v1346
      %v2323 = vpack.c.b16 %v1355, %v1347
      %v2324 = vpack.c.b16 %v1356, %v1348
      %v2325 = vpack.c.b16 %v1357, %v1349
      %v2326 = vpack.c.b16 %v1358, %v1350
      %v2327 = vpack.c.b16 %v1359, %v1351
      %v2328 = vpack.c.b16 %v1360, %v1352
      %v2329 = vpack.c.b16 %v1369, %v1361
      %v2330 = vpack.c.b16 %v1370, %v1362
      %v2331 = vpack.c.b16 %v1371, %v1363
      %v2332 = vpack.c.b16 %v1372, %v1364
      %v2333 = vpack.c.b16 %v1373, %v1365
      %v2334 = vpack.c.b16 %v1374, %v1366
      %v2335 = vpack.c.b16 %v1375, %v1367
      %v2336 = vpack.c.b16 %v1376, %v1368
      %v2337 = vpack.c.b16 %v1385, %v1377
      %v2338 = vpack.c.b16 %v1386, %v1378
      %v2339 = vpack.c.b16 %v1387, %v1379
      %v2340 = vpack.c.b16 %v1388, %v1380
      %v2341 = vpack.c.b16 %v1389, %v1381
      %v2342 = vpack.c.b16 %v1390, %v1382
      %v2343 = vpack.c.b16 %v1391, %v1383
      %v2344 = vpack.c.b16 %v1392, %v1384
      %v2345 = vpack.c.b16 %v1401, %v1393
      %v2346 = vpack.c.b16 %v1402, %v1394
      %v2347 = vpack.c.b16 %v1403, %v1395
      %v2348 = vpack.c.b16 %v1404, %v1396
      %v2349 = vpack.c.b16 %v1405, %v1397
      %v2350 = vpack.c.b16 %v1406, %v1398
      %v2351 = vpack.c.b16 %v1407, %v1399
      %v2352 = vpack.c.b16 %v1408, %v1400
      %v2353 = vpack.c.b16 %v1417, %v1409
      %v2354 = vpack.c.b16 %v1418, %v1410
      %v2355 = vpack.c.b16 %v1419, %v1411
      %v2356 = vpack.c.b16 %v1420, %v1412
      %v2357 = vpack.c.b16 %v1421, %v1413
      %v2358 = vpack.c.b16 %v1422, %v1414
      %v2359 = vpack.c.b16 %v1423, %v1415
      %v2360 = vpack.c.b16 %v1424, %v1416
      %v2361 = vpack.c.b16 %v1433, %v1425
      %v2362 = vpack.c.b16 %v1434, %v1426
      %v2363 = vpack.c.b16 %v1435, %v1427
      %v2364 = vpack.c.b16 %v1436, %v1428
      %v2365 = vpack.c.b16 %v1437, %v1429
      %v2366 = vpack.c.b16 %v1438, %v1430
      %v2367 = vpack.c.b16 %v1439, %v1431
      %v2368 = vpack.c.b16 %v1440, %v1432
      %v2369 = vpack.c.b16 %v1449, %v1441
      %v2370 = vpack.c.b16 %v1450, %v1442
      %v2371 = vpack.c.b16 %v1451, %v1443
      %v2372 = vpack.c.b16 %v1452, %v1444
      %v2373 = vpack.c.b16 %v1453, %v1445
      %v2374 = vpack.c.b16 %v1454, %v1446
      %v2375 = vpack.c.b16 %v1455, %v1447
      %v2376 = vpack.c.b16 %v1456, %v1448
      %v2377 = vpack.c.b16 %v1465, %v1457
      %v2378 = vpack.c.b16 %v1466, %v1458
      %v2379 = vpack.c.b16 %v1467, %v1459
      %v2380 = vpack.c.b16 %v1468, %v1460
      %v2381 = vpack.c.b16 %v1469, %v1461
      %v2382 = vpack.c.b16 %v1470, %v1462
      %v2383 = vpack.c.b16 %v1471, %v1463
      %v2384 = vpack.c.b16 %v1472, %v1464
      %v2385 = vpack.c.b16 %v1481, %v1473
      %v2386 = vpack.c.b16 %v1482, %v1474
      %v2387 = vpack.c.b16 %v1483, %v1475
      %v2388 = vpack.c.b16 %v1484, %v1476
      %v2389 = vpack.c.b16 %v1485, %v1477
      %v2390 = vpack.c.b16 %v1486, %v1478
      %v2391 = vpack.c.b16 %v1487, %v1479
      %v2392 = vpack.c.b16 %v1488, %v1480
      %v2393 = vpack.c.b16 %v1497, %v1489
      %v2394 = vpack.c.b16 %v1498, %v1490
      %v2395 = vpack.c.b16 %v1499, %v1491
      %v2396 = vpack.c.b16 %v1500, %v1492
      %v2397 = vpack.c.b16 %v1501, %v1493
      %v2398 = vpack.c.b16 %v1502, %v1494
      %v2399 = vpack.c.b16 %v1503, %v1495
      %v2400 = vpack.c.b16 %v1504, %v1496
      %v2401 = vpack.c.b16 %v1513, %v1505
      %v2402 = vpack.c.b16 %v1514, %v1506
      %v2403 = vpack.c.b16 %v1515, %v1507
      %v2404 = vpack.c.b16 %v1516, %v1508
      %v2405 = vpack.c.b16 %v1517, %v1509
      %v2406 = vpack.c.b16 %v1518, %v1510
      %v2407 = vpack.c.b16 %v1519, %v1511
      %v2408 = vpack.c.b16 %v1520, %v1512
      %v2409 = vpack.c.b16 %v1529, %v1521
      %v2410 = vpack.c.b16 %v1530, %v1522
      %v2411 = vpack.c.b16 %v1531, %v1523
      %v2412 = vpack.c.b16 %v1532, %v1524
      %v2413 = vpack.c.b16 %v1533, %v1525
      %v2414 = vpack.c.b16 %v1534, %v1526
      %v2415 = vpack.c.b16 %v1535, %v1527
      %v2416 = vpack.c.b16 %v1536, %v1528
      %v2417 = vpack.c.b16 %v1545, %v1537
      %v2418 = vpack.c.b16 %v1546, %v1538
      %v2419 = vpack.c.b16 %v1547, %v1539
      %v2420 = vpack.c.b16 %v1548, %v1540
      %v2421 = vpack.c.b16 %v1549, %v1541
      %v2422 = vpack.c.b16 %v1550, %v1542
      %v2423 = vpack.c.b16 %v1551, %v1543
      %v2424 = vpack.c.b16 %v1552, %v1544
      %v2425 = vpack.c.b16 %v1561, %v1553
      %v2426 = vpack.c.b16 %v1562, %v1554
      %v2427 = vpack.c.b16 %v1563, %v1555
      %v2428 = vpack.c.b16 %v1564, %v1556
      %v2429 = vpack.c.b16 %v1565, %v1557
      %v2430 = vpack.c.b16 %v1566, %v1558
      %v2431 = vpack.c.b16 %v1567, %v1559
      %v2432 = vpack.c.b16 %v1568, %v1560
      %v2433 = vpack.c.b16 %v1577, %v1569
      %v2434 = vpack.c.b16 %v1578, %v1570
      %v2435 = vpack.c.b16 %v1579, %v1571
      %v2436 = vpack.c.b16 %v1580, %v1572
      %v2437 = vpack.c.b16 %v1581, %v1573
      %v2438 = vpack.c.b16 %v1582, %v1574
      %v2439 = vpack.c.b16 %v1583, %v1575
      %v2440 = vpack.c.b16 %v1584, %v1576
      %v2441 = vpack.c.b16 %v1593, %v1585
      %v2442 = vpack.c.b16 %v1594, %v1586
      %v2443 = vpack.c.b16 %v1595, %v1587
      %v2444 = vpack.c.b16 %v1596, %v1588
      %v2445 = vpack.c.b16 %v1597, %v1589
      %v2446 = vpack.c.b16 %v1598, %v1590
      %v2447 = vpack.c.b16 %v1599, %v1591
      %v2448 = vpack.c.b16 %v1600, %v1592
      %v2449 = vpack.c.b16 %v1609, %v1601
      %v2450 = vpack.c.b16 %v1610, %v1602
      %v2451 = vpack.c.b16 %v1611, %v1603
      %v2452 = vpack.c.b16 %v1612, %v1604
      %v2453 = vpack.c.b16 %v1613, %v1605
      %v2454 = vpack.c.b16 %v1614, %v1606
      %v2455 = vpack.c.b16 %v1615, %v1607
      %v2456 = vpack.c.b16 %v1616, %v1608
      %v2457 = vpack.c.b16 %v1625, %v1617
      %v2458 = vpack.c.b16 %v1626, %v1618
      %v2459 = vpack.c.b16 %v1627, %v1619
      %v2460 = vpack.c.b16 %v1628, %v1620
      %v2461 = vpack.c.b16 %v1629, %v1621
      %v2462 = vpack.c.b16 %v1630, %v1622
      %v2463 = vpack.c.b16 %v1631, %v1623
      %v2464 = vpack.c.b16 %v1632, %v1624
      %v2465 = vpack.c.b16 %v1641, %v1633
      %v2466 = vpack.c.b16 %v1642, %v1634
      %v2467 = vpack.c.b16 %v1643, %v1635
      %v2468 = vpack.c.b16 %v1644, %v1636
      %v2469 = vpack.c.b16 %v1645, %v1637
      %v2470 = vpack.c.b16 %v1646, %v1638
      %v2471 = vpack.c.b16 %v1647, %v1639
      %v2472 = vpack.c.b16 %v1648, %v1640
      %v2473 = vpack.c.b16 %v1657, %v1649
      %v2474 = vpack.c.b16 %v1658, %v1650
      %v2475 = vpack.c.b16 %v1659, %v1651
      %v2476 = vpack.c.b16 %v1660, %v1652
      %v2477 = vpack.c.b16 %v1661, %v1653
      %v2478 = vpack.c.b16 %v1662, %v1654
      %v2479 = vpack.c.b16 %v1663, %v1655
      %v2480 = vpack.c.b16 %v1664, %v1656
      %v2481 = vpack.c.b16 %v1673, %v1665
      %v2482 = vpack.c.b16 %v1674, %v1666
      %v2483 = vpack.c.b16 %v1675, %v1667
      %v2484 = vpack.c.b16 %v1676, %v1668
      %v2485 = vpack.c.b16 %v1677, %v1669
      %v2486 = vpack.c.b16 %v1678, %v1670
      %v2487 = vpack.c.b16 %v1679, %v1671
      %v2488 = vpack.c.b16 %v1680, %v1672
      %v2489 = vpack.c.b16 %v1689, %v1681
      %v2490 = vpack.c.b16 %v1690, %v1682
      %v2491 = vpack.c.b16 %v1691, %v1683
      %v2492 = vpack.c.b16 %v1692, %v1684
      %v2493 = vpack.c.b16 %v1693, %v1685
      %v2494 = vpack.c.b16 %v1694, %v1686
      %v2495 = vpack.c.b16 %v1695, %v1687
      %v2496 = vpack.c.b16 %v1696, %v1688
      %v2497 = vpack.c.b16 %v1705, %v1697
      %v2498 = vpack.c.b16 %v1706, %v1698
      %v2499 = vpack.c.b16 %v1707, %v1699
      %v2500 = vpack.c.b16 %v1708, %v1700
      %v2501 = vpack.c.b16 %v1709, %v1701
      %v2502 = vpack.c.b16 %v1710, %v1702
      %v2503 = vpack.c.b16 %v1711, %v1703
      %v2504 = vpack.c.b16 %v1712, %v1704
      %v2505 = vpack.c.b16 %v1721, %v1713
      %v2506 = vpack.c.b16 %v1722, %v1714
      %v2507 = vpack.c.b16 %v1723, %v1715
      %v2508 = vpack.c.b16 %v1724, %v1716
      %v2509 = vpack.c.b16 %v1725, %v1717
      %v2510 = vpack.c.b16 %v1726, %v1718
      %v2511 = vpack.c.b16 %v1727, %v1719
      %v2512 = vpack.c.b16 %v1728, %v1720
      %v2513 = vpack.c.b16 %v1737, %v1729
      %v2514 = vpack.c.b16 %v1738, %v1730
      %v2515 = vpack.c.b16 %v1739, %v1731
      %v2516 = vpack.c.b16 %v1740, %v1732
      %v2517 = vpack.c.b16 %v1741, %v1733
      %v2518 = vpack.c.b16 %v1742, %v1734
      %v2519 = vpack.c.b16 %v1743, %v1735
      %v2520 = vpack.c.b16 %v1744, %v1736
      %v2521 = vpack.c.b16 %v1753, %v1745
      %v2522 = vpack.c.b16 %v1754, %v1746
      %v2523 = vpack.c.b16 %v1755, %v1747
      %v2524 = vpack.c.b16 %v1756, %v1748
      %v2525 = vpack.c.b16 %v1757, %v1749
      %v2526 = vpack.c.b16 %v1758, %v1750
      %v2527 = vpack.c.b16 %v1759, %v1751
      %v2528 = vpack.c.b16 %v1760, %v1752
      %v2529 = vpack.c.b16 %v1769, %v1761
      %v2530 = vpack.c.b16 %v1770, %v1762
      %v2531 = vpack.c.b16 %v1771, %v1763
      %v2532 = vpack.c.b16 %v1772, %v1764
      %v2533 = vpack.c.b16 %v1773, %v1765
      %v2534 = vpack.c.b16 %v1774, %v1766
      %v2535 = vpack.c.b16 %v1775, %v1767
      %v2536 = vpack.c.b16 %v1776, %v1768
      %v2537 = vpack.c.b16 %v1785, %v1777
      %v2538 = vpack.c.b16 %v1786, %v1778
      %v2539 = vpack.c.b16 %v1787, %v1779
      %v2540 = vpack.c.b16 %v1788, %v1780
      %v2541 = vpack.c.b16 %v1789, %v1781
      %v2542 = vpack.c.b16 %v1790, %v1782
      %v2543 = vpack.c.b16 %v1791, %v1783
      %v2544 = vpack.c.b16 %v1792, %v1784
      %v2545 = vpack.c.b16 %v1801, %v1793
      %v2546 = vpack.c.b16 %v1802, %v1794
      %v2547 = vpack.c.b16 %v1803, %v1795
      %v2548 = vpack.c.b16 %v1804, %v1796
      %v2549 = vpack.c.b16 %v1805, %v1797
      %v2550 = vpack.c.b16 %v1806, %v1798
      %v2551 = vpack.c.b16 %v1807, %v1799
      %v2552 = vpack.c.b16 %v1808, %v1800
      %v2553 = vpack.c.b16 %v1817, %v1809
      %v2554 = vpack.c.b16 %v1818, %v1810
      %v2555 = vpack.c.b16 %v1819, %v1811
      %v2556 = vpack.c.b16 %v1820, %v1812
      %v2557 = vpack.c.b16 %v1821, %v1813
      %v2558 = vpack.c.b16 %v1822, %v1814
      %v2559 = vpack.c.b16 %v1823, %v1815
      %v2560 = vpack.c.b16 %v1824, %v1816
      %v2561 = vpack.c.b16 %v1833, %v1825
      %v2562 = vpack.c.b16 %v1834, %v1826
      %v2563 = vpack.c.b16 %v1835, %v1827
      %v2564 = vpack.c.b16 %v1836, %v1828
      %v2565 = vpack.c.b16 %v1837, %v1829
      %v2566 = vpack.c.b16 %v1838, %v1830
      %v2567 = vpack.c.b16 %v1839, %v1831
      %v2568 = vpack.c.b16 %v1840, %v1832
      %v2569 = vpack.c.b16 %v1849, %v1841
      %v2570 = vpack.c.b16 %v1850, %v1842
      %v2571 = vpack.c.b16 %v1851, %v1843
      %v2572 = vpack.c.b16 %v1852, %v1844
      %v2573 = vpack.c.b16 %v1853, %v1845
      %v2574 = vpack.c.b16 %v1854, %v1846
      %v2575 = vpack.c.b16 %v1855, %v1847
      %v2576 = vpack.c.b16 %v1856, %v1848
      %v2577 = vpack.c.b16 %v1865, %v1857
      %v2578 = vpack.c.b16 %v1866, %v1858
      %v2579 = vpack.c.b16 %v1867, %v1859
      %v2580 = vpack.c.b16 %v1868, %v1860
      %v2581 = vpack.c.b16 %v1869, %v1861
      %v2582 = vpack.c.b16 %v1870, %v1862
      %v2583 = vpack.c.b16 %v1871, %v1863
      %v2584 = vpack.c.b16 %v1872, %v1864
      %v2585 = vpack.c.b16 %v1881, %v1873
      %v2586 = vpack.c.b16 %v1882, %v1874
      %v2587 = vpack.c.b16 %v1883, %v1875
      %v2588 = vpack.c.b16 %v1884, %v1876
      %v2589 = vpack.c.b16 %v1885, %v1877
      %v2590 = vpack.c.b16 %v1886, %v1878
      %v2591 = vpack.c.b16 %v1887, %v1879
      %v2592 = vpack.c.b16 %v1888, %v1880
      %v2593 = vpack.c.b16 %v1897, %v1889
      %v2594 = vpack.c.b16 %v1898, %v1890
      %v2595 = vpack.c.b16 %v1899, %v1891
      %v2596 = vpack.c.b16 %v1900, %v1892
      %v2597 = vpack.c.b16 %v1901, %v1893
      %v2598 = vpack.c.b16 %v1902, %v1894
      %v2599 = vpack.c.b16 %v1903, %v1895
      %v2600 = vpack.c.b16 %v1904, %v1896
      %v2601 = vpack.c.b16 %v1913, %v1905
      %v2602 = vpack.c.b16 %v1914, %v1906
      %v2603 = vpack.c.b16 %v1915, %v1907
      %v2604 = vpack.c.b16 %v1916, %v1908
      %v2605 = vpack.c.b16 %v1917, %v1909
      %v2606 = vpack.c.b16 %v1918, %v1910
      %v2607 = vpack.c.b16 %v1919, %v1911
      %v2608 = vpack.c.b16 %v1920, %v1912
      %v2609 = vpack.c.b16 %v1929, %v1921
      %v2610 = vpack.c.b16 %v1930, %v1922
      %v2611 = vpack.c.b16 %v1931, %v1923
      %v2612 = vpack.c.b16 %v1932, %v1924
      %v2613 = vpack.c.b16 %v1933, %v1925
      %v2614 = vpack.c.b16 %v1934, %v1926
      %v2615 = vpack.c.b16 %v1935, %v1927
      %v2616 = vpack.c.b16 %v1936, %v1928
      %v2617 = vpack.c.b16 %v1945, %v1937
      %v2618 = vpack.c.b16 %v1946, %v1938
      %v2619 = vpack.c.b16 %v1947, %v1939
      %v2620 = vpack.c.b16 %v1948, %v1940
      %v2621 = vpack.c.b16 %v1949, %v1941
      %v2622 = vpack.c.b16 %v1950, %v1942
      %v2623 = vpack.c.b16 %v1951, %v1943
      %v2624 = vpack.c.b16 %v1952, %v1944
      %v2625 = vpack.c.b16 %v1961, %v1953
      %v2626 = vpack.c.b16 %v1962, %v1954
      %v2627 = vpack.c.b16 %v1963, %v1955
      %v2628 = vpack.c.b16 %v1964, %v1956
      %v2629 = vpack.c.b16 %v1965, %v1957
      %v2630 = vpack.c.b16 %v1966, %v1958
      %v2631 = vpack.c.b16 %v1967, %v1959
      %v2632 = vpack.c.b16 %v1968, %v1960
      %v2633 = vpack.c.b16 %v1977, %v1969
      %v2634 = vpack.c.b16 %v1978, %v1970
      %v2635 = vpack.c.b16 %v1979, %v1971
      %v2636 = vpack.c.b16 %v1980, %v1972
      %v2637 = vpack.c.b16 %v1981, %v1973
      %v2638 = vpack.c.b16 %v1982, %v1974
      %v2639 = vpack.c.b16 %v1983, %v1975
      %v2640 = vpack.c.b16 %v1984, %v1976
      %v2641 = vpack.c.b16 %v1993, %v1985
      %v2642 = vpack.c.b16 %v1994, %v1986
      %v2643 = vpack.c.b16 %v1995, %v1987
      %v2644 = vpack.c.b16 %v1996, %v1988
      %v2645 = vpack.c.b16 %v1997, %v1989
      %v2646 = vpack.c.b16 %v1998, %v1990
      %v2647 = vpack.c.b16 %v1999, %v1991
      %v2648 = vpack.c.b16 %v2000, %v1992
      %v2649 = vpack.c.b16 %v2009, %v2001
      %v2650 = vpack.c.b16 %v2010, %v2002
      %v2651 = vpack.c.b16 %v2011, %v2003
      %v2652 = vpack.c.b16 %v2012, %v2004
      %v2653 = vpack.c.b16 %v2013, %v2005
      %v2654 = vpack.c.b16 %v2014, %v2006
      %v2655 = vpack.c.b16 %v2015, %v2007
      %v2656 = vpack.c.b16 %v2016, %v2008
      %v2657 = vpack.c.b16 %v2025, %v2017
      %v2658 = vpack.c.b16 %v2026, %v2018
      %v2659 = vpack.c.b16 %v2027, %v2019
      %v2660 = vpack.c.b16 %v2028, %v2020
      %v2661 = vpack.c.b16 %v2029, %v2021
      %v2662 = vpack.c.b16 %v2030, %v2022
      %v2663 = vpack.c.b16 %v2031, %v2023
      %v2664 = vpack.c.b16 %v2032, %v2024
      %v2665 = vpack.c.b16 %v2041, %v2033
      %v2666 = vpack.c.b16 %v2042, %v2034
      %v2667 = vpack.c.b16 %v2043, %v2035
      %v2668 = vpack.c.b16 %v2044, %v2036
      %v2669 = vpack.c.b16 %v2045, %v2037
      %v2670 = vpack.c.b16 %v2046, %v2038
      %v2671 = vpack.c.b16 %v2047, %v2039
      %v2672 = vpack.c.b16 %v2048, %v2040
      %v2673 = vpack.c.b16 %v2057, %v2049
      %v2674 = vpack.c.b16 %v2058, %v2050
      %v2675 = vpack.c.b16 %v2059, %v2051
      %v2676 = vpack.c.b16 %v2060, %v2052
      %v2677 = vpack.c.b16 %v2061, %v2053
      %v2678 = vpack.c.b16 %v2062, %v2054
      %v2679 = vpack.c.b16 %v2063, %v2055
      %v2680 = vpack.c.b16 %v2064, %v2056
      %v2681 = vpack.c.b16 %v2073, %v2065
      %v2682 = vpack.c.b16 %v2074, %v2066
      %v2683 = vpack.c.b16 %v2075, %v2067
      %v2684 = vpack.c.b16 %v2076, %v2068
      %v2685 = vpack.c.b16 %v2077, %v2069
      %v2686 = vpack.c.b16 %v2078, %v2070
      %v2687 = vpack.c.b16 %v2079, %v2071
      %v2688 = vpack.c.b16 %v2080, %v2072
      %v2689 = vpack.c.b16 %v2089, %v2081
      %v2690 = vpack.c.b16 %v2090, %v2082
      %v2691 = vpack.c.b16 %v2091, %v2083
      %v2692 = vpack.c.b16 %v2092, %v2084
      %v2693 = vpack.c.b16 %v2093, %v2085
      %v2694 = vpack.c.b16 %v2094, %v2086
      %v2695 = vpack.c.b16 %v2095, %v2087
      %v2696 = vpack.c.b16 %v2096, %v2088
      %v2697 = vpack.c.b16 %v2105, %v2097
      %v2698 = vpack.c.b16 %v2106, %v2098
      %v2699 = vpack.c.b16 %v2107, %v2099
      %v2700 = vpack.c.b16 %v2108, %v2100
      %v2701 = vpack.c.b16 %v2109, %v2101
      %v2702 = vpack.c.b16 %v2110, %v2102
      %v2703 = vpack.c.b16 %v2111, %v2103
      %v2704 = vpack.c.b16 %v2112, %v2104
      %v2705 = vpack.c.b16 %v2121, %v2113
      %v2706 = vpack.c.b16 %v2122, %v2114
      %v2707 = vpack.c.b16 %v2123, %v2115
      %v2708 = vpack.c.b16 %v2124, %v2116
      %v2709 = vpack.c.b16 %v2125, %v2117
      %v2710 = vpack.c.b16 %v2126, %v2118
      %v2711 = vpack.c.b16 %v2127, %v2119
      %v2712 = vpack.c.b16 %v2128, %v2120
      %v2713 = vpack.c.b16 %v2137, %v2129
      %v2714 = vpack.c.b16 %v2138, %v2130
      %v2715 = vpack.c.b16 %v2139, %v2131
      %v2716 = vpack.c.b16 %v2140, %v2132
      %v2717 = vpack.c.b16 %v2141, %v2133
      %v2718 = vpack.c.b16 %v2142, %v2134
      %v2719 = vpack.c.b16 %v2143, %v2135
      %v2720 = vpack.c.b16 %v2144, %v2136
      %v2721 = vpack.c.b16 %v2153, %v2145
      %v2722 = vpack.c.b16 %v2154, %v2146
      %v2723 = vpack.c.b16 %v2155, %v2147
      %v2724 = vpack.c.b16 %v2156, %v2148
      %v2725 = vpack.c.b16 %v2157, %v2149
      %v2726 = vpack.c.b16 %v2158, %v2150
      %v2727 = vpack.c.b16 %v2159, %v2151
      %v2728 = vpack.c.b16 %v2160, %v2152
      %v2729 = vpack.c.b16 %v2169, %v2161
      %v2730 = vpack.c.b16 %v2170, %v2162
      %v2731 = vpack.c.b16 %v2171, %v2163
      %v2732 = vpack.c.b16 %v2172, %v2164
      %v2733 = vpack.c.b16 %v2173, %v2165
      %v2734 = vpack.c.b16 %v2174, %v2166
      %v2735 = vpack.c.b16 %v2175, %v2167
      %v2736 = vpack.c.b16 %v2176, %v2168
      %v2737 = vpack.c.b16 %v2185, %v2177
      %v2738 = vpack.c.b16 %v2186, %v2178
      %v2739 = vpack.c.b16 %v2187, %v2179
      %v2740 = vpack.c.b16 %v2188, %v2180
      %v2741 = vpack.c.b16 %v2189, %v2181
      %v2742 = vpack.c.b16 %v2190, %v2182
      %v2743 = vpack.c.b16 %v2191, %v2183
      %v2744 = vpack.c.b16 %v2192, %v2184
      %v2745 = vpack.c.b16 %v2201, %v2193
      %v2746 = vpack.c.b16 %v2202, %v2194
      %v2747 = vpack.c.b16 %v2203, %v2195
      %v2748 = vpack.c.b16 %v2204, %v2196
      %v2749 = vpack.c.b16 %v2205, %v2197
      %v2750 = vpack.c.b16 %v2206, %v2198
      %v2751 = vpack.c.b16 %v2207, %v2199
      %v2752 = vpack.c.b16 %v2208, %v2200
      %v2753 = vpack.c.b16 %v2217, %v2209
      %v2754 = vpack.c.b16 %v2218, %v2210
      %v2755 = vpack.c.b16 %v2219, %v2211
      %v2756 = vpack.c.b16 %v2220, %v2212
      %v2757 = vpack.c.b16 %v2221, %v2213
      %v2758 = vpack.c.b16 %v2222, %v2214
      %v2759 = vpack.c.b16 %v2223, %v2215
      %v2760 = vpack.c.b16 %v2224, %v2216
      %v2761 = vpack.c.b16 %v2233, %v2225
      %v2762 = vpack.c.b16 %v2234, %v2226
      %v2763 = vpack.c.b16 %v2235, %v2227
      %v2764 = vpack.c.b16 %v2236, %v2228
      %v2765 = vpack.c.b16 %v2237, %v2229
      %v2766 = vpack.c.b16 %v2238, %v2230
      %v2767 = vpack.c.b16 %v2239, %v2231
      %v2768 = vpack.c.b16 %v2240, %v2232
      %v2769 = vpack.c.b16 %v2249, %v2241
      %v2770 = vpack.c.b16 %v2250, %v2242
      %v2771 = vpack.c.b16 %v2251, %v2243
      %v2772 = vpack.c.b16 %v2252, %v2244
      %v2773 = vpack.c.b16 %v2253, %v2245
      %v2774 = vpack.c.b16 %v2254, %v2246
      %v2775 = vpack.c.b16 %v2255, %v2247
      %v2776 = vpack.c.b16 %v2256, %v2248
      %v2777 = vpack.c.b16 %v2265, %v2257
      %v2778 = vpack.c.b16 %v2266, %v2258
      %v2779 = vpack.c.b16 %v2267, %v2259
      %v2780 = vpack.c.b16 %v2268, %v2260
      %v2781 = vpack.c.b16 %v2269, %v2261
      %v2782 = vpack.c.b16 %v2270, %v2262
      %v2783 = vpack.c.b16 %v2271, %v2263
      %v2784 = vpack.c.b16 %v2272, %v2264
      %3297 = vmatpush.bf16.msra.mxu0 %v2329
      %3298 = vmatpush.bf16.msra.mxu0 %v2321
      %3299 = vmatpush.bf16.msra.mxu0 %v2313
      %3300 = vmatpush.bf16.msra.mxu0 %v2305
      %3301 = vmatpush.bf16.msra.mxu0 %v2297
      %3302 = vmatpush.bf16.msra.mxu0 %v2289
      %3303 = vmatpush.bf16.msra.mxu0 %v2281
      %3304 = vmatpush.bf16.msra.mxu0 %v2273
      %3305 = vmatmul.bf16.gmra.mxu0 %v721
      %v3306 = vpop.f32.mrf.mxu0
      %v3307 = vadd.f32 0.0, %v3306
      %v3308 = vpop.f32.mrf.mxu0
      %v3309 = vadd.f32 0.0, %v3308
      %3310 = vdwg.mxu0
      %3311 = vmatpush.bf16.msra.mxu0 %v2393
      %3312 = vmatpush.bf16.msra.mxu0 %v2385
      %3313 = vmatpush.bf16.msra.mxu0 %v2377
      %3314 = vmatpush.bf16.msra.mxu0 %v2369
      %3315 = vmatpush.bf16.msra.mxu0 %v2361
      %3316 = vmatpush.bf16.msra.mxu0 %v2353
      %3317 = vmatpush.bf16.msra.mxu0 %v2345
      %3318 = vmatpush.bf16.msra.mxu0 %v2337
      %3319 = vmatmul.bf16.gmra.mxu0 %v722
      %v3320 = vpop.f32.mrf.mxu0
      %v3321 = vadd.f32 %v3307, %v3320
      %v3322 = vpop.f32.mrf.mxu0
      %v3323 = vadd.f32 %v3309, %v3322
      %3324 = vdwg.mxu0
      %3325 = vmatpush.bf16.msra.mxu0 %v2457
      %3326 = vmatpush.bf16.msra.mxu0 %v2449
      %3327 = vmatpush.bf16.msra.mxu0 %v2441
      %3328 = vmatpush.bf16.msra.mxu0 %v2433
      %3329 = vmatpush.bf16.msra.mxu0 %v2425
      %3330 = vmatpush.bf16.msra.mxu0 %v2417
      %3331 = vmatpush.bf16.msra.mxu0 %v2409
      %3332 = vmatpush.bf16.msra.mxu0 %v2401
      %3333 = vmatmul.bf16.gmra.mxu0 %v723
      %v3334 = vpop.f32.mrf.mxu0
      %v3335 = vadd.f32 %v3321, %v3334
      %v3336 = vpop.f32.mrf.mxu0
      %v3337 = vadd.f32 %v3323, %v3336
      %3338 = vdwg.mxu0
      %3339 = vmatpush.bf16.msra.mxu0 %v2521
      %3340 = vmatpush.bf16.msra.mxu0 %v2513
      %3341 = vmatpush.bf16.msra.mxu0 %v2505
      %3342 = vmatpush.bf16.msra.mxu0 %v2497
      %3343 = vmatpush.bf16.msra.mxu0 %v2489
      %3344 = vmatpush.bf16.msra.mxu0 %v2481
      %3345 = vmatpush.bf16.msra.mxu0 %v2473
      %3346 = vmatpush.bf16.msra.mxu0 %v2465
      %3347 = vmatmul.bf16.gmra.mxu0 %v724
      %v3348 = vpop.f32.mrf.mxu0
      %v3349 = vadd.f32 %v3335, %v3348
      %v3350 = vpop.f32.mrf.mxu0
      %v3351 = vadd.f32 %v3337, %v3350
      %3352 = vdwg.mxu0
      %3353 = vmatpush.bf16.msra.mxu0 %v2585
      %3354 = vmatpush.bf16.msra.mxu0 %v2577
      %3355 = vmatpush.bf16.msra.mxu0 %v2569
      %3356 = vmatpush.bf16.msra.mxu0 %v2561
      %3357 = vmatpush.bf16.msra.mxu0 %v2553
      %3358 = vmatpush.bf16.msra.mxu0 %v2545
      %3359 = vmatpush.bf16.msra.mxu0 %v2537
      %3360 = vmatpush.bf16.msra.mxu0 %v2529
      %3361 = vmatmul.bf16.gmra.mxu0 %v725
      %v3362 = vpop.f32.mrf.mxu0
      %v3363 = vadd.f32 %v3349, %v3362
      %v3364 = vpop.f32.mrf.mxu0
      %v3365 = vadd.f32 %v3351, %v3364
      %3366 = vdwg.mxu0
      %3367 = vmatpush.bf16.msra.mxu0 %v2649
      %3368 = vmatpush.bf16.msra.mxu0 %v2641
      %3369 = vmatpush.bf16.msra.mxu0 %v2633
      %3370 = vmatpush.bf16.msra.mxu0 %v2625
      %3371 = vmatpush.bf16.msra.mxu0 %v2617
      %3372 = vmatpush.bf16.msra.mxu0 %v2609
      %3373 = vmatpush.bf16.msra.mxu0 %v2601
      %3374 = vmatpush.bf16.msra.mxu0 %v2593
      %3375 = vmatmul.bf16.gmra.mxu0 %v726
      %v3376 = vpop.f32.mrf.mxu0
      %v3377 = vadd.f32 %v3363, %v3376
      %v3378 = vpop.f32.mrf.mxu0
      %v3379 = vadd.f32 %v3365, %v3378
      %3380 = vdwg.mxu0
      %3381 = vmatpush.bf16.msra.mxu0 %v2713
      %3382 = vmatpush.bf16.msra.mxu0 %v2705
      %3383 = vmatpush.bf16.msra.mxu0 %v2697
      %3384 = vmatpush.bf16.msra.mxu0 %v2689
      %3385 = vmatpush.bf16.msra.mxu0 %v2681
      %3386 = vmatpush.bf16.msra.mxu0 %v2673
      %3387 = vmatpush.bf16.msra.mxu0 %v2665
      %3388 = vmatpush.bf16.msra.mxu0 %v2657
      %3389 = vmatmul.bf16.gmra.mxu0 %v727
      %v3390 = vpop.f32.mrf.mxu0
      %v3391 = vadd.f32 %v3377, %v3390
      %v3392 = vpop.f32.mrf.mxu0
      %v3393 = vadd.f32 %v3379, %v3392
      %3394 = vdwg.mxu0
      %3395 = vmatpush.bf16.msra.mxu0 %v2777
      %3396 = vmatpush.bf16.msra.mxu0 %v2769
      %3397 = vmatpush.bf16.msra.mxu0 %v2761
      %3398 = vmatpush.bf16.msra.mxu0 %v2753
      %3399 = vmatpush.bf16.msra.mxu0 %v2745
      %3400 = vmatpush.bf16.msra.mxu0 %v2737
      %3401 = vmatpush.bf16.msra.mxu0 %v2729
      %3402 = vmatpush.bf16.msra.mxu0 %v2721
      %3403 = vmatmul.bf16.gmra.mxu0 %v728
      %v3404 = vpop.f32.mrf.mxu0
      %v3405 = vadd.f32 %v3391, %v3404
      %v3406 = vpop.f32.mrf.mxu0
      %v3407 = vadd.f32 %v3393, %v3406
      %3408 = vdwg.mxu0
      %3409 = vmatpush.bf16.msra.mxu0 %v2330
      %3410 = vmatpush.bf16.msra.mxu0 %v2322
      %3411 = vmatpush.bf16.msra.mxu0 %v2314
      %3412 = vmatpush.bf16.msra.mxu0 %v2306
      %3413 = vmatpush.bf16.msra.mxu0 %v2298
      %3414 = vmatpush.bf16.msra.mxu0 %v2290
      %3415 = vmatpush.bf16.msra.mxu0 %v2282
      %3416 = vmatpush.bf16.msra.mxu0 %v2274
      %3417 = vmatmul.bf16.gmra.mxu0 %v721
      %v3418 = vpop.f32.mrf.mxu0
      %v3419 = vadd.f32 0.0, %v3418
      %v3420 = vpop.f32.mrf.mxu0
      %v3421 = vadd.f32 0.0, %v3420
      %3422 = vdwg.mxu0
      %3423 = vmatpush.bf16.msra.mxu0 %v2394
      %3424 = vmatpush.bf16.msra.mxu0 %v2386
      %3425 = vmatpush.bf16.msra.mxu0 %v2378
      %3426 = vmatpush.bf16.msra.mxu0 %v2370
      %3427 = vmatpush.bf16.msra.mxu0 %v2362
      %3428 = vmatpush.bf16.msra.mxu0 %v2354
      %3429 = vmatpush.bf16.msra.mxu0 %v2346
      %3430 = vmatpush.bf16.msra.mxu0 %v2338
      %3431 = vmatmul.bf16.gmra.mxu0 %v722
      %v3432 = vpop.f32.mrf.mxu0
      %v3433 = vadd.f32 %v3419, %v3432
      %v3434 = vpop.f32.mrf.mxu0
      %v3435 = vadd.f32 %v3421, %v3434
      %3436 = vdwg.mxu0
      %3437 = vmatpush.bf16.msra.mxu0 %v2458
      %3438 = vmatpush.bf16.msra.mxu0 %v2450
      %3439 = vmatpush.bf16.msra.mxu0 %v2442
      %3440 = vmatpush.bf16.msra.mxu0 %v2434
      %3441 = vmatpush.bf16.msra.mxu0 %v2426
      %3442 = vmatpush.bf16.msra.mxu0 %v2418
      %3443 = vmatpush.bf16.msra.mxu0 %v2410
      %3444 = vmatpush.bf16.msra.mxu0 %v2402
      %3445 = vmatmul.bf16.gmra.mxu0 %v723
      %v3446 = vpop.f32.mrf.mxu0
      %v3447 = vadd.f32 %v3433, %v3446
      %v3448 = vpop.f32.mrf.mxu0
      %v3449 = vadd.f32 %v3435, %v3448
      %3450 = vdwg.mxu0
      %3451 = vmatpush.bf16.msra.mxu0 %v2522
      %3452 = vmatpush.bf16.msra.mxu0 %v2514
      %3453 = vmatpush.bf16.msra.mxu0 %v2506
      %3454 = vmatpush.bf16.msra.mxu0 %v2498
      %3455 = vmatpush.bf16.msra.mxu0 %v2490
      %3456 = vmatpush.bf16.msra.mxu0 %v2482
      %3457 = vmatpush.bf16.msra.mxu0 %v2474
      %3458 = vmatpush.bf16.msra.mxu0 %v2466
      %3459 = vmatmul.bf16.gmra.mxu0 %v724
      %v3460 = vpop.f32.mrf.mxu0
      %v3461 = vadd.f32 %v3447, %v3460
      %v3462 = vpop.f32.mrf.mxu0
      %v3463 = vadd.f32 %v3449, %v3462
      %3464 = vdwg.mxu0
      %3465 = vmatpush.bf16.msra.mxu0 %v2586
      %3466 = vmatpush.bf16.msra.mxu0 %v2578
      %3467 = vmatpush.bf16.msra.mxu0 %v2570
      %3468 = vmatpush.bf16.msra.mxu0 %v2562
      %3469 = vmatpush.bf16.msra.mxu0 %v2554
      %3470 = vmatpush.bf16.msra.mxu0 %v2546
      %3471 = vmatpush.bf16.msra.mxu0 %v2538
      %3472 = vmatpush.bf16.msra.mxu0 %v2530
      %3473 = vmatmul.bf16.gmra.mxu0 %v725
      %v3474 = vpop.f32.mrf.mxu0
      %v3475 = vadd.f32 %v3461, %v3474
      %v3476 = vpop.f32.mrf.mxu0
      %v3477 = vadd.f32 %v3463, %v3476
      %3478 = vdwg.mxu0
      %3479 = vmatpush.bf16.msra.mxu0 %v2650
      %3480 = vmatpush.bf16.msra.mxu0 %v2642
      %3481 = vmatpush.bf16.msra.mxu0 %v2634
      %3482 = vmatpush.bf16.msra.mxu0 %v2626
      %3483 = vmatpush.bf16.msra.mxu0 %v2618
      %3484 = vmatpush.bf16.msra.mxu0 %v2610
      %3485 = vmatpush.bf16.msra.mxu0 %v2602
      %3486 = vmatpush.bf16.msra.mxu0 %v2594
      %3487 = vmatmul.bf16.gmra.mxu0 %v726
      %v3488 = vpop.f32.mrf.mxu0
      %v3489 = vadd.f32 %v3475, %v3488
      %v3490 = vpop.f32.mrf.mxu0
      %v3491 = vadd.f32 %v3477, %v3490
      %3492 = vdwg.mxu0
      %3493 = vmatpush.bf16.msra.mxu0 %v2714
      %3494 = vmatpush.bf16.msra.mxu0 %v2706
      %3495 = vmatpush.bf16.msra.mxu0 %v2698
      %3496 = vmatpush.bf16.msra.mxu0 %v2690
      %3497 = vmatpush.bf16.msra.mxu0 %v2682
      %3498 = vmatpush.bf16.msra.mxu0 %v2674
      %3499 = vmatpush.bf16.msra.mxu0 %v2666
      %3500 = vmatpush.bf16.msra.mxu0 %v2658
      %3501 = vmatmul.bf16.gmra.mxu0 %v727
      %v3502 = vpop.f32.mrf.mxu0
      %v3503 = vadd.f32 %v3489, %v3502
      %v3504 = vpop.f32.mrf.mxu0
      %v3505 = vadd.f32 %v3491, %v3504
      %3506 = vdwg.mxu0
      %3507 = vmatpush.bf16.msra.mxu0 %v2778
      %3508 = vmatpush.bf16.msra.mxu0 %v2770
      %3509 = vmatpush.bf16.msra.mxu0 %v2762
      %3510 = vmatpush.bf16.msra.mxu0 %v2754
      %3511 = vmatpush.bf16.msra.mxu0 %v2746
      %3512 = vmatpush.bf16.msra.mxu0 %v2738
      %3513 = vmatpush.bf16.msra.mxu0 %v2730
      %3514 = vmatpush.bf16.msra.mxu0 %v2722
      %3515 = vmatmul.bf16.gmra.mxu0 %v728
      %v3516 = vpop.f32.mrf.mxu0
      %v3517 = vadd.f32 %v3503, %v3516
      %v3518 = vpop.f32.mrf.mxu0
      %v3519 = vadd.f32 %v3505, %v3518
      %3520 = vdwg.mxu0
      %3521 = vmatpush.bf16.msra.mxu0 %v2331
      %3522 = vmatpush.bf16.msra.mxu0 %v2323
      %3523 = vmatpush.bf16.msra.mxu0 %v2315
      %3524 = vmatpush.bf16.msra.mxu0 %v2307
      %3525 = vmatpush.bf16.msra.mxu0 %v2299
      %3526 = vmatpush.bf16.msra.mxu0 %v2291
      %3527 = vmatpush.bf16.msra.mxu0 %v2283
      %3528 = vmatpush.bf16.msra.mxu0 %v2275
      %3529 = vmatmul.bf16.gmra.mxu0 %v721
      %v3530 = vpop.f32.mrf.mxu0
      %v3531 = vadd.f32 0.0, %v3530
      %v3532 = vpop.f32.mrf.mxu0
      %v3533 = vadd.f32 0.0, %v3532
      %3534 = vdwg.mxu0
      %3535 = vmatpush.bf16.msra.mxu0 %v2395
      %3536 = vmatpush.bf16.msra.mxu0 %v2387
      %3537 = vmatpush.bf16.msra.mxu0 %v2379
      %3538 = vmatpush.bf16.msra.mxu0 %v2371
      %3539 = vmatpush.bf16.msra.mxu0 %v2363
      %3540 = vmatpush.bf16.msra.mxu0 %v2355
      %3541 = vmatpush.bf16.msra.mxu0 %v2347
      %3542 = vmatpush.bf16.msra.mxu0 %v2339
      %3543 = vmatmul.bf16.gmra.mxu0 %v722
      %v3544 = vpop.f32.mrf.mxu0
      %v3545 = vadd.f32 %v3531, %v3544
      %v3546 = vpop.f32.mrf.mxu0
      %v3547 = vadd.f32 %v3533, %v3546
      %3548 = vdwg.mxu0
      %3549 = vmatpush.bf16.msra.mxu0 %v2459
      %3550 = vmatpush.bf16.msra.mxu0 %v2451
      %3551 = vmatpush.bf16.msra.mxu0 %v2443
      %3552 = vmatpush.bf16.msra.mxu0 %v2435
      %3553 = vmatpush.bf16.msra.mxu0 %v2427
      %3554 = vmatpush.bf16.msra.mxu0 %v2419
      %3555 = vmatpush.bf16.msra.mxu0 %v2411
      %3556 = vmatpush.bf16.msra.mxu0 %v2403
      %3557 = vmatmul.bf16.gmra.mxu0 %v723
      %v3558 = vpop.f32.mrf.mxu0
      %v3559 = vadd.f32 %v3545, %v3558
      %v3560 = vpop.f32.mrf.mxu0
      %v3561 = vadd.f32 %v3547, %v3560
      %3562 = vdwg.mxu0
      %3563 = vmatpush.bf16.msra.mxu0 %v2523
      %3564 = vmatpush.bf16.msra.mxu0 %v2515
      %3565 = vmatpush.bf16.msra.mxu0 %v2507
      %3566 = vmatpush.bf16.msra.mxu0 %v2499
      %3567 = vmatpush.bf16.msra.mxu0 %v2491
      %3568 = vmatpush.bf16.msra.mxu0 %v2483
      %3569 = vmatpush.bf16.msra.mxu0 %v2475
      %3570 = vmatpush.bf16.msra.mxu0 %v2467
      %3571 = vmatmul.bf16.gmra.mxu0 %v724
      %v3572 = vpop.f32.mrf.mxu0
      %v3573 = vadd.f32 %v3559, %v3572
      %v3574 = vpop.f32.mrf.mxu0
      %v3575 = vadd.f32 %v3561, %v3574
      %3576 = vdwg.mxu0
      %3577 = vmatpush.bf16.msra.mxu0 %v2587
      %3578 = vmatpush.bf16.msra.mxu0 %v2579
      %3579 = vmatpush.bf16.msra.mxu0 %v2571
      %3580 = vmatpush.bf16.msra.mxu0 %v2563
      %3581 = vmatpush.bf16.msra.mxu0 %v2555
      %3582 = vmatpush.bf16.msra.mxu0 %v2547
      %3583 = vmatpush.bf16.msra.mxu0 %v2539
      %3584 = vmatpush.bf16.msra.mxu0 %v2531
      %3585 = vmatmul.bf16.gmra.mxu0 %v725
      %v3586 = vpop.f32.mrf.mxu0
      %v3587 = vadd.f32 %v3573, %v3586
      %v3588 = vpop.f32.mrf.mxu0
      %v3589 = vadd.f32 %v3575, %v3588
      %3590 = vdwg.mxu0
      %3591 = vmatpush.bf16.msra.mxu0 %v2651
      %3592 = vmatpush.bf16.msra.mxu0 %v2643
      %3593 = vmatpush.bf16.msra.mxu0 %v2635
      %3594 = vmatpush.bf16.msra.mxu0 %v2627
      %3595 = vmatpush.bf16.msra.mxu0 %v2619
      %3596 = vmatpush.bf16.msra.mxu0 %v2611
      %3597 = vmatpush.bf16.msra.mxu0 %v2603
      %3598 = vmatpush.bf16.msra.mxu0 %v2595
      %3599 = vmatmul.bf16.gmra.mxu0 %v726
      %v3600 = vpop.f32.mrf.mxu0
      %v3601 = vadd.f32 %v3587, %v3600
      %v3602 = vpop.f32.mrf.mxu0
      %v3603 = vadd.f32 %v3589, %v3602
      %3604 = vdwg.mxu0
      %3605 = vmatpush.bf16.msra.mxu0 %v2715
      %3606 = vmatpush.bf16.msra.mxu0 %v2707
      %3607 = vmatpush.bf16.msra.mxu0 %v2699
      %3608 = vmatpush.bf16.msra.mxu0 %v2691
      %3609 = vmatpush.bf16.msra.mxu0 %v2683
      %3610 = vmatpush.bf16.msra.mxu0 %v2675
      %3611 = vmatpush.bf16.msra.mxu0 %v2667
      %3612 = vmatpush.bf16.msra.mxu0 %v2659
      %3613 = vmatmul.bf16.gmra.mxu0 %v727
      %v3614 = vpop.f32.mrf.mxu0
      %v3615 = vadd.f32 %v3601, %v3614
      %v3616 = vpop.f32.mrf.mxu0
      %v3617 = vadd.f32 %v3603, %v3616
      %3618 = vdwg.mxu0
      %3619 = vmatpush.bf16.msra.mxu0 %v2779
      %3620 = vmatpush.bf16.msra.mxu0 %v2771
      %3621 = vmatpush.bf16.msra.mxu0 %v2763
      %3622 = vmatpush.bf16.msra.mxu0 %v2755
      %3623 = vmatpush.bf16.msra.mxu0 %v2747
      %3624 = vmatpush.bf16.msra.mxu0 %v2739
      %3625 = vmatpush.bf16.msra.mxu0 %v2731
      %3626 = vmatpush.bf16.msra.mxu0 %v2723
      %3627 = vmatmul.bf16.gmra.mxu0 %v728
      %v3628 = vpop.f32.mrf.mxu0
      %v3629 = vadd.f32 %v3615, %v3628
      %v3630 = vpop.f32.mrf.mxu0
      %v3631 = vadd.f32 %v3617, %v3630
      %3632 = vdwg.mxu0
      %3633 = vmatpush.bf16.msra.mxu0 %v2332
      %3634 = vmatpush.bf16.msra.mxu0 %v2324
      %3635 = vmatpush.bf16.msra.mxu0 %v2316
      %3636 = vmatpush.bf16.msra.mxu0 %v2308
      %3637 = vmatpush.bf16.msra.mxu0 %v2300
      %3638 = vmatpush.bf16.msra.mxu0 %v2292
      %3639 = vmatpush.bf16.msra.mxu0 %v2284
      %3640 = vmatpush.bf16.msra.mxu0 %v2276
      %3641 = vmatmul.bf16.gmra.mxu0 %v721
      %v3642 = vpop.f32.mrf.mxu0
      %v3643 = vadd.f32 0.0, %v3642
      %v3644 = vpop.f32.mrf.mxu0
      %v3645 = vadd.f32 0.0, %v3644
      %3646 = vdwg.mxu0
      %3647 = vmatpush.bf16.msra.mxu0 %v2396
      %3648 = vmatpush.bf16.msra.mxu0 %v2388
      %3649 = vmatpush.bf16.msra.mxu0 %v2380
      %3650 = vmatpush.bf16.msra.mxu0 %v2372
      %3651 = vmatpush.bf16.msra.mxu0 %v2364
      %3652 = vmatpush.bf16.msra.mxu0 %v2356
      %3653 = vmatpush.bf16.msra.mxu0 %v2348
      %3654 = vmatpush.bf16.msra.mxu0 %v2340
      %3655 = vmatmul.bf16.gmra.mxu0 %v722
      %v3656 = vpop.f32.mrf.mxu0
      %v3657 = vadd.f32 %v3643, %v3656
      %v3658 = vpop.f32.mrf.mxu0
      %v3659 = vadd.f32 %v3645, %v3658
      %3660 = vdwg.mxu0
      %3661 = vmatpush.bf16.msra.mxu0 %v2460
      %3662 = vmatpush.bf16.msra.mxu0 %v2452
      %3663 = vmatpush.bf16.msra.mxu0 %v2444
      %3664 = vmatpush.bf16.msra.mxu0 %v2436
      %3665 = vmatpush.bf16.msra.mxu0 %v2428
      %3666 = vmatpush.bf16.msra.mxu0 %v2420
      %3667 = vmatpush.bf16.msra.mxu0 %v2412
      %3668 = vmatpush.bf16.msra.mxu0 %v2404
      %3669 = vmatmul.bf16.gmra.mxu0 %v723
      %v3670 = vpop.f32.mrf.mxu0
      %v3671 = vadd.f32 %v3657, %v3670
      %v3672 = vpop.f32.mrf.mxu0
      %v3673 = vadd.f32 %v3659, %v3672
      %3674 = vdwg.mxu0
      %3675 = vmatpush.bf16.msra.mxu0 %v2524
      %3676 = vmatpush.bf16.msra.mxu0 %v2516
      %3677 = vmatpush.bf16.msra.mxu0 %v2508
      %3678 = vmatpush.bf16.msra.mxu0 %v2500
      %3679 = vmatpush.bf16.msra.mxu0 %v2492
      %3680 = vmatpush.bf16.msra.mxu0 %v2484
      %3681 = vmatpush.bf16.msra.mxu0 %v2476
      %3682 = vmatpush.bf16.msra.mxu0 %v2468
      %3683 = vmatmul.bf16.gmra.mxu0 %v724
      %v3684 = vpop.f32.mrf.mxu0
      %v3685 = vadd.f32 %v3671, %v3684
      %v3686 = vpop.f32.mrf.mxu0
      %v3687 = vadd.f32 %v3673, %v3686
      %3688 = vdwg.mxu0
      %3689 = vmatpush.bf16.msra.mxu0 %v2588
      %3690 = vmatpush.bf16.msra.mxu0 %v2580
      %3691 = vmatpush.bf16.msra.mxu0 %v2572
      %3692 = vmatpush.bf16.msra.mxu0 %v2564
      %3693 = vmatpush.bf16.msra.mxu0 %v2556
      %3694 = vmatpush.bf16.msra.mxu0 %v2548
      %3695 = vmatpush.bf16.msra.mxu0 %v2540
      %3696 = vmatpush.bf16.msra.mxu0 %v2532
      %3697 = vmatmul.bf16.gmra.mxu0 %v725
      %v3698 = vpop.f32.mrf.mxu0
      %v3699 = vadd.f32 %v3685, %v3698
      %v3700 = vpop.f32.mrf.mxu0
      %v3701 = vadd.f32 %v3687, %v3700
      %3702 = vdwg.mxu0
      %3703 = vmatpush.bf16.msra.mxu0 %v2652
      %3704 = vmatpush.bf16.msra.mxu0 %v2644
      %3705 = vmatpush.bf16.msra.mxu0 %v2636
      %3706 = vmatpush.bf16.msra.mxu0 %v2628
      %3707 = vmatpush.bf16.msra.mxu0 %v2620
      %3708 = vmatpush.bf16.msra.mxu0 %v2612
      %3709 = vmatpush.bf16.msra.mxu0 %v2604
      %3710 = vmatpush.bf16.msra.mxu0 %v2596
      %3711 = vmatmul.bf16.gmra.mxu0 %v726
      %v3712 = vpop.f32.mrf.mxu0
      %v3713 = vadd.f32 %v3699, %v3712
      %v3714 = vpop.f32.mrf.mxu0
      %v3715 = vadd.f32 %v3701, %v3714
      %3716 = vdwg.mxu0
      %3717 = vmatpush.bf16.msra.mxu0 %v2716
      %3718 = vmatpush.bf16.msra.mxu0 %v2708
      %3719 = vmatpush.bf16.msra.mxu0 %v2700
      %3720 = vmatpush.bf16.msra.mxu0 %v2692
      %3721 = vmatpush.bf16.msra.mxu0 %v2684
      %3722 = vmatpush.bf16.msra.mxu0 %v2676
      %3723 = vmatpush.bf16.msra.mxu0 %v2668
      %3724 = vmatpush.bf16.msra.mxu0 %v2660
      %3725 = vmatmul.bf16.gmra.mxu0 %v727
      %v3726 = vpop.f32.mrf.mxu0
      %v3727 = vadd.f32 %v3713, %v3726
      %v3728 = vpop.f32.mrf.mxu0
      %v3729 = vadd.f32 %v3715, %v3728
      %3730 = vdwg.mxu0
      %3731 = vmatpush.bf16.msra.mxu0 %v2780
      %3732 = vmatpush.bf16.msra.mxu0 %v2772
      %3733 = vmatpush.bf16.msra.mxu0 %v2764
      %3734 = vmatpush.bf16.msra.mxu0 %v2756
      %3735 = vmatpush.bf16.msra.mxu0 %v2748
      %3736 = vmatpush.bf16.msra.mxu0 %v2740
      %3737 = vmatpush.bf16.msra.mxu0 %v2732
      %3738 = vmatpush.bf16.msra.mxu0 %v2724
      %3739 = vmatmul.bf16.gmra.mxu0 %v728
      %v3740 = vpop.f32.mrf.mxu0
      %v3741 = vadd.f32 %v3727, %v3740
      %v3742 = vpop.f32.mrf.mxu0
      %v3743 = vadd.f32 %v3729, %v3742
      %3744 = vdwg.mxu0
      %3745 = vmatpush.bf16.msra.mxu0 %v2333
      %3746 = vmatpush.bf16.msra.mxu0 %v2325
      %3747 = vmatpush.bf16.msra.mxu0 %v2317
      %3748 = vmatpush.bf16.msra.mxu0 %v2309
      %3749 = vmatpush.bf16.msra.mxu0 %v2301
      %3750 = vmatpush.bf16.msra.mxu0 %v2293
      %3751 = vmatpush.bf16.msra.mxu0 %v2285
      %3752 = vmatpush.bf16.msra.mxu0 %v2277
      %3753 = vmatmul.bf16.gmra.mxu0 %v721
      %v3754 = vpop.f32.mrf.mxu0
      %v3755 = vadd.f32 0.0, %v3754
      %v3756 = vpop.f32.mrf.mxu0
      %v3757 = vadd.f32 0.0, %v3756
      %3758 = vdwg.mxu0
      %3759 = vmatpush.bf16.msra.mxu0 %v2397
      %3760 = vmatpush.bf16.msra.mxu0 %v2389
      %3761 = vmatpush.bf16.msra.mxu0 %v2381
      %3762 = vmatpush.bf16.msra.mxu0 %v2373
      %3763 = vmatpush.bf16.msra.mxu0 %v2365
      %3764 = vmatpush.bf16.msra.mxu0 %v2357
      %3765 = vmatpush.bf16.msra.mxu0 %v2349
      %3766 = vmatpush.bf16.msra.mxu0 %v2341
      %3767 = vmatmul.bf16.gmra.mxu0 %v722
      %v3768 = vpop.f32.mrf.mxu0
      %v3769 = vadd.f32 %v3755, %v3768
      %v3770 = vpop.f32.mrf.mxu0
      %v3771 = vadd.f32 %v3757, %v3770
      %3772 = vdwg.mxu0
      %3773 = vmatpush.bf16.msra.mxu0 %v2461
      %3774 = vmatpush.bf16.msra.mxu0 %v2453
      %3775 = vmatpush.bf16.msra.mxu0 %v2445
      %3776 = vmatpush.bf16.msra.mxu0 %v2437
      %3777 = vmatpush.bf16.msra.mxu0 %v2429
      %3778 = vmatpush.bf16.msra.mxu0 %v2421
      %3779 = vmatpush.bf16.msra.mxu0 %v2413
      %3780 = vmatpush.bf16.msra.mxu0 %v2405
      %3781 = vmatmul.bf16.gmra.mxu0 %v723
      %v3782 = vpop.f32.mrf.mxu0
      %v3783 = vadd.f32 %v3769, %v3782
      %v3784 = vpop.f32.mrf.mxu0
      %v3785 = vadd.f32 %v3771, %v3784
      %3786 = vdwg.mxu0
      %3787 = vmatpush.bf16.msra.mxu0 %v2525
      %3788 = vmatpush.bf16.msra.mxu0 %v2517
      %3789 = vmatpush.bf16.msra.mxu0 %v2509
      %3790 = vmatpush.bf16.msra.mxu0 %v2501
      %3791 = vmatpush.bf16.msra.mxu0 %v2493
      %3792 = vmatpush.bf16.msra.mxu0 %v2485
      %3793 = vmatpush.bf16.msra.mxu0 %v2477
      %3794 = vmatpush.bf16.msra.mxu0 %v2469
      %3795 = vmatmul.bf16.gmra.mxu0 %v724
      %v3796 = vpop.f32.mrf.mxu0
      %v3797 = vadd.f32 %v3783, %v3796
      %v3798 = vpop.f32.mrf.mxu0
      %v3799 = vadd.f32 %v3785, %v3798
      %3800 = vdwg.mxu0
      %3801 = vmatpush.bf16.msra.mxu0 %v2589
      %3802 = vmatpush.bf16.msra.mxu0 %v2581
      %3803 = vmatpush.bf16.msra.mxu0 %v2573
      %3804 = vmatpush.bf16.msra.mxu0 %v2565
      %3805 = vmatpush.bf16.msra.mxu0 %v2557
      %3806 = vmatpush.bf16.msra.mxu0 %v2549
      %3807 = vmatpush.bf16.msra.mxu0 %v2541
      %3808 = vmatpush.bf16.msra.mxu0 %v2533
      %3809 = vmatmul.bf16.gmra.mxu0 %v725
      %v3810 = vpop.f32.mrf.mxu0
      %v3811 = vadd.f32 %v3797, %v3810
      %v3812 = vpop.f32.mrf.mxu0
      %v3813 = vadd.f32 %v3799, %v3812
      %3814 = vdwg.mxu0
      %3815 = vmatpush.bf16.msra.mxu0 %v2653
      %3816 = vmatpush.bf16.msra.mxu0 %v2645
      %3817 = vmatpush.bf16.msra.mxu0 %v2637
      %3818 = vmatpush.bf16.msra.mxu0 %v2629
      %3819 = vmatpush.bf16.msra.mxu0 %v2621
      %3820 = vmatpush.bf16.msra.mxu0 %v2613
      %3821 = vmatpush.bf16.msra.mxu0 %v2605
      %3822 = vmatpush.bf16.msra.mxu0 %v2597
      %3823 = vmatmul.bf16.gmra.mxu0 %v726
      %v3824 = vpop.f32.mrf.mxu0
      %v3825 = vadd.f32 %v3811, %v3824
      %v3826 = vpop.f32.mrf.mxu0
      %v3827 = vadd.f32 %v3813, %v3826
      %3828 = vdwg.mxu0
      %3829 = vmatpush.bf16.msra.mxu0 %v2717
      %3830 = vmatpush.bf16.msra.mxu0 %v2709
      %3831 = vmatpush.bf16.msra.mxu0 %v2701
      %3832 = vmatpush.bf16.msra.mxu0 %v2693
      %3833 = vmatpush.bf16.msra.mxu0 %v2685
      %3834 = vmatpush.bf16.msra.mxu0 %v2677
      %3835 = vmatpush.bf16.msra.mxu0 %v2669
      %3836 = vmatpush.bf16.msra.mxu0 %v2661
      %3837 = vmatmul.bf16.gmra.mxu0 %v727
      %v3838 = vpop.f32.mrf.mxu0
      %v3839 = vadd.f32 %v3825, %v3838
      %v3840 = vpop.f32.mrf.mxu0
      %v3841 = vadd.f32 %v3827, %v3840
      %3842 = vdwg.mxu0
      %3843 = vmatpush.bf16.msra.mxu0 %v2781
      %3844 = vmatpush.bf16.msra.mxu0 %v2773
      %3845 = vmatpush.bf16.msra.mxu0 %v2765
      %3846 = vmatpush.bf16.msra.mxu0 %v2757
      %3847 = vmatpush.bf16.msra.mxu0 %v2749
      %3848 = vmatpush.bf16.msra.mxu0 %v2741
      %3849 = vmatpush.bf16.msra.mxu0 %v2733
      %3850 = vmatpush.bf16.msra.mxu0 %v2725
      %3851 = vmatmul.bf16.gmra.mxu0 %v728
      %v3852 = vpop.f32.mrf.mxu0
      %v3853 = vadd.f32 %v3839, %v3852
      %v3854 = vpop.f32.mrf.mxu0
      %v3855 = vadd.f32 %v3841, %v3854
      %3856 = vdwg.mxu0
      %3857 = vmatpush.bf16.msra.mxu0 %v2334
      %3858 = vmatpush.bf16.msra.mxu0 %v2326
      %3859 = vmatpush.bf16.msra.mxu0 %v2318
      %3860 = vmatpush.bf16.msra.mxu0 %v2310
      %3861 = vmatpush.bf16.msra.mxu0 %v2302
      %3862 = vmatpush.bf16.msra.mxu0 %v2294
      %3863 = vmatpush.bf16.msra.mxu0 %v2286
      %3864 = vmatpush.bf16.msra.mxu0 %v2278
      %3865 = vmatmul.bf16.gmra.mxu0 %v721
      %v3866 = vpop.f32.mrf.mxu0
      %v3867 = vadd.f32 0.0, %v3866
      %v3868 = vpop.f32.mrf.mxu0
      %v3869 = vadd.f32 0.0, %v3868
      %3870 = vdwg.mxu0
      %3871 = vmatpush.bf16.msra.mxu0 %v2398
      %3872 = vmatpush.bf16.msra.mxu0 %v2390
      %3873 = vmatpush.bf16.msra.mxu0 %v2382
      %3874 = vmatpush.bf16.msra.mxu0 %v2374
      %3875 = vmatpush.bf16.msra.mxu0 %v2366
      %3876 = vmatpush.bf16.msra.mxu0 %v2358
      %3877 = vmatpush.bf16.msra.mxu0 %v2350
      %3878 = vmatpush.bf16.msra.mxu0 %v2342
      %3879 = vmatmul.bf16.gmra.mxu0 %v722
      %v3880 = vpop.f32.mrf.mxu0
      %v3881 = vadd.f32 %v3867, %v3880
      %v3882 = vpop.f32.mrf.mxu0
      %v3883 = vadd.f32 %v3869, %v3882
      %3884 = vdwg.mxu0
      %3885 = vmatpush.bf16.msra.mxu0 %v2462
      %3886 = vmatpush.bf16.msra.mxu0 %v2454
      %3887 = vmatpush.bf16.msra.mxu0 %v2446
      %3888 = vmatpush.bf16.msra.mxu0 %v2438
      %3889 = vmatpush.bf16.msra.mxu0 %v2430
      %3890 = vmatpush.bf16.msra.mxu0 %v2422
      %3891 = vmatpush.bf16.msra.mxu0 %v2414
      %3892 = vmatpush.bf16.msra.mxu0 %v2406
      %3893 = vmatmul.bf16.gmra.mxu0 %v723
      %v3894 = vpop.f32.mrf.mxu0
      %v3895 = vadd.f32 %v3881, %v3894
      %v3896 = vpop.f32.mrf.mxu0
      %v3897 = vadd.f32 %v3883, %v3896
      %3898 = vdwg.mxu0
      %3899 = vmatpush.bf16.msra.mxu0 %v2526
      %3900 = vmatpush.bf16.msra.mxu0 %v2518
      %3901 = vmatpush.bf16.msra.mxu0 %v2510
      %3902 = vmatpush.bf16.msra.mxu0 %v2502
      %3903 = vmatpush.bf16.msra.mxu0 %v2494
      %3904 = vmatpush.bf16.msra.mxu0 %v2486
      %3905 = vmatpush.bf16.msra.mxu0 %v2478
      %3906 = vmatpush.bf16.msra.mxu0 %v2470
      %3907 = vmatmul.bf16.gmra.mxu0 %v724
      %v3908 = vpop.f32.mrf.mxu0
      %v3909 = vadd.f32 %v3895, %v3908
      %v3910 = vpop.f32.mrf.mxu0
      %v3911 = vadd.f32 %v3897, %v3910
      %3912 = vdwg.mxu0
      %3913 = vmatpush.bf16.msra.mxu0 %v2590
      %3914 = vmatpush.bf16.msra.mxu0 %v2582
      %3915 = vmatpush.bf16.msra.mxu0 %v2574
      %3916 = vmatpush.bf16.msra.mxu0 %v2566
      %3917 = vmatpush.bf16.msra.mxu0 %v2558
      %3918 = vmatpush.bf16.msra.mxu0 %v2550
      %3919 = vmatpush.bf16.msra.mxu0 %v2542
      %3920 = vmatpush.bf16.msra.mxu0 %v2534
      %3921 = vmatmul.bf16.gmra.mxu0 %v725
      %v3922 = vpop.f32.mrf.mxu0
      %v3923 = vadd.f32 %v3909, %v3922
      %v3924 = vpop.f32.mrf.mxu0
      %v3925 = vadd.f32 %v3911, %v3924
      %3926 = vdwg.mxu0
      %3927 = vmatpush.bf16.msra.mxu0 %v2654
      %3928 = vmatpush.bf16.msra.mxu0 %v2646
      %3929 = vmatpush.bf16.msra.mxu0 %v2638
      %3930 = vmatpush.bf16.msra.mxu0 %v2630
      %3931 = vmatpush.bf16.msra.mxu0 %v2622
      %3932 = vmatpush.bf16.msra.mxu0 %v2614
      %3933 = vmatpush.bf16.msra.mxu0 %v2606
      %3934 = vmatpush.bf16.msra.mxu0 %v2598
      %3935 = vmatmul.bf16.gmra.mxu0 %v726
      %v3936 = vpop.f32.mrf.mxu0
      %v3937 = vadd.f32 %v3923, %v3936
      %v3938 = vpop.f32.mrf.mxu0
      %v3939 = vadd.f32 %v3925, %v3938
      %3940 = vdwg.mxu0
      %3941 = vmatpush.bf16.msra.mxu0 %v2718
      %3942 = vmatpush.bf16.msra.mxu0 %v2710
      %3943 = vmatpush.bf16.msra.mxu0 %v2702
      %3944 = vmatpush.bf16.msra.mxu0 %v2694
      %3945 = vmatpush.bf16.msra.mxu0 %v2686
      %3946 = vmatpush.bf16.msra.mxu0 %v2678
      %3947 = vmatpush.bf16.msra.mxu0 %v2670
      %3948 = vmatpush.bf16.msra.mxu0 %v2662
      %3949 = vmatmul.bf16.gmra.mxu0 %v727
      %v3950 = vpop.f32.mrf.mxu0
      %v3951 = vadd.f32 %v3937, %v3950
      %v3952 = vpop.f32.mrf.mxu0
      %v3953 = vadd.f32 %v3939, %v3952
      %3954 = vdwg.mxu0
      %3955 = vmatpush.bf16.msra.mxu0 %v2782
      %3956 = vmatpush.bf16.msra.mxu0 %v2774
      %3957 = vmatpush.bf16.msra.mxu0 %v2766
      %3958 = vmatpush.bf16.msra.mxu0 %v2758
      %3959 = vmatpush.bf16.msra.mxu0 %v2750
      %3960 = vmatpush.bf16.msra.mxu0 %v2742
      %3961 = vmatpush.bf16.msra.mxu0 %v2734
      %3962 = vmatpush.bf16.msra.mxu0 %v2726
      %3963 = vmatmul.bf16.gmra.mxu0 %v728
      %v3964 = vpop.f32.mrf.mxu0
      %v3965 = vadd.f32 %v3951, %v3964
      %v3966 = vpop.f32.mrf.mxu0
      %v3967 = vadd.f32 %v3953, %v3966
      %3968 = vdwg.mxu0
      %3969 = vmatpush.bf16.msra.mxu0 %v2335
      %3970 = vmatpush.bf16.msra.mxu0 %v2327
      %3971 = vmatpush.bf16.msra.mxu0 %v2319
      %3972 = vmatpush.bf16.msra.mxu0 %v2311
      %3973 = vmatpush.bf16.msra.mxu0 %v2303
      %3974 = vmatpush.bf16.msra.mxu0 %v2295
      %3975 = vmatpush.bf16.msra.mxu0 %v2287
      %3976 = vmatpush.bf16.msra.mxu0 %v2279
      %3977 = vmatmul.bf16.gmra.mxu0 %v721
      %v3978 = vpop.f32.mrf.mxu0
      %v3979 = vadd.f32 0.0, %v3978
      %v3980 = vpop.f32.mrf.mxu0
      %v3981 = vadd.f32 0.0, %v3980
      %3982 = vdwg.mxu0
      %3983 = vmatpush.bf16.msra.mxu0 %v2399
      %3984 = vmatpush.bf16.msra.mxu0 %v2391
      %3985 = vmatpush.bf16.msra.mxu0 %v2383
      %3986 = vmatpush.bf16.msra.mxu0 %v2375
      %3987 = vmatpush.bf16.msra.mxu0 %v2367
      %3988 = vmatpush.bf16.msra.mxu0 %v2359
      %3989 = vmatpush.bf16.msra.mxu0 %v2351
      %3990 = vmatpush.bf16.msra.mxu0 %v2343
      %3991 = vmatmul.bf16.gmra.mxu0 %v722
      %v3992 = vpop.f32.mrf.mxu0
      %v3993 = vadd.f32 %v3979, %v3992
      %v3994 = vpop.f32.mrf.mxu0
      %v3995 = vadd.f32 %v3981, %v3994
      %3996 = vdwg.mxu0
      %3997 = vmatpush.bf16.msra.mxu0 %v2463
      %3998 = vmatpush.bf16.msra.mxu0 %v2455
      %3999 = vmatpush.bf16.msra.mxu0 %v2447
      %4000 = vmatpush.bf16.msra.mxu0 %v2439
      %4001 = vmatpush.bf16.msra.mxu0 %v2431
      %4002 = vmatpush.bf16.msra.mxu0 %v2423
      %4003 = vmatpush.bf16.msra.mxu0 %v2415
      %4004 = vmatpush.bf16.msra.mxu0 %v2407
      %4005 = vmatmul.bf16.gmra.mxu0 %v723
      %v4006 = vpop.f32.mrf.mxu0
      %v4007 = vadd.f32 %v3993, %v4006
      %v4008 = vpop.f32.mrf.mxu0
      %v4009 = vadd.f32 %v3995, %v4008
      %4010 = vdwg.mxu0
      %4011 = vmatpush.bf16.msra.mxu0 %v2527
      %4012 = vmatpush.bf16.msra.mxu0 %v2519
      %4013 = vmatpush.bf16.msra.mxu0 %v2511
      %4014 = vmatpush.bf16.msra.mxu0 %v2503
      %4015 = vmatpush.bf16.msra.mxu0 %v2495
      %4016 = vmatpush.bf16.msra.mxu0 %v2487
      %4017 = vmatpush.bf16.msra.mxu0 %v2479
      %4018 = vmatpush.bf16.msra.mxu0 %v2471
      %4019 = vmatmul.bf16.gmra.mxu0 %v724
      %v4020 = vpop.f32.mrf.mxu0
      %v4021 = vadd.f32 %v4007, %v4020
      %v4022 = vpop.f32.mrf.mxu0
      %v4023 = vadd.f32 %v4009, %v4022
      %4024 = vdwg.mxu0
      %4025 = vmatpush.bf16.msra.mxu0 %v2591
      %4026 = vmatpush.bf16.msra.mxu0 %v2583
      %4027 = vmatpush.bf16.msra.mxu0 %v2575
      %4028 = vmatpush.bf16.msra.mxu0 %v2567
      %4029 = vmatpush.bf16.msra.mxu0 %v2559
      %4030 = vmatpush.bf16.msra.mxu0 %v2551
      %4031 = vmatpush.bf16.msra.mxu0 %v2543
      %4032 = vmatpush.bf16.msra.mxu0 %v2535
      %4033 = vmatmul.bf16.gmra.mxu0 %v725
      %v4034 = vpop.f32.mrf.mxu0
      %v4035 = vadd.f32 %v4021, %v4034
      %v4036 = vpop.f32.mrf.mxu0
      %v4037 = vadd.f32 %v4023, %v4036
      %4038 = vdwg.mxu0
      %4039 = vmatpush.bf16.msra.mxu0 %v2655
      %4040 = vmatpush.bf16.msra.mxu0 %v2647
      %4041 = vmatpush.bf16.msra.mxu0 %v2639
      %4042 = vmatpush.bf16.msra.mxu0 %v2631
      %4043 = vmatpush.bf16.msra.mxu0 %v2623
      %4044 = vmatpush.bf16.msra.mxu0 %v2615
      %4045 = vmatpush.bf16.msra.mxu0 %v2607
      %4046 = vmatpush.bf16.msra.mxu0 %v2599
      %4047 = vmatmul.bf16.gmra.mxu0 %v726
      %v4048 = vpop.f32.mrf.mxu0
      %v4049 = vadd.f32 %v4035, %v4048
      %v4050 = vpop.f32.mrf.mxu0
      %v4051 = vadd.f32 %v4037, %v4050
      %4052 = vdwg.mxu0
      %4053 = vmatpush.bf16.msra.mxu0 %v2719
      %4054 = vmatpush.bf16.msra.mxu0 %v2711
      %4055 = vmatpush.bf16.msra.mxu0 %v2703
      %4056 = vmatpush.bf16.msra.mxu0 %v2695
      %4057 = vmatpush.bf16.msra.mxu0 %v2687
      %4058 = vmatpush.bf16.msra.mxu0 %v2679
      %4059 = vmatpush.bf16.msra.mxu0 %v2671
      %4060 = vmatpush.bf16.msra.mxu0 %v2663
      %4061 = vmatmul.bf16.gmra.mxu0 %v727
      %v4062 = vpop.f32.mrf.mxu0
      %v4063 = vadd.f32 %v4049, %v4062
      %v4064 = vpop.f32.mrf.mxu0
      %v4065 = vadd.f32 %v4051, %v4064
      %4066 = vdwg.mxu0
      %4067 = vmatpush.bf16.msra.mxu0 %v2783
      %4068 = vmatpush.bf16.msra.mxu0 %v2775
      %4069 = vmatpush.bf16.msra.mxu0 %v2767
      %4070 = vmatpush.bf16.msra.mxu0 %v2759
      %4071 = vmatpush.bf16.msra.mxu0 %v2751
      %4072 = vmatpush.bf16.msra.mxu0 %v2743
      %4073 = vmatpush.bf16.msra.mxu0 %v2735
      %4074 = vmatpush.bf16.msra.mxu0 %v2727
      %4075 = vmatmul.bf16.gmra.mxu0 %v728
      %v4076 = vpop.f32.mrf.mxu0
      %v4077 = vadd.f32 %v4063, %v4076
      %v4078 = vpop.f32.mrf.mxu0
      %v4079 = vadd.f32 %v4065, %v4078
      %4080 = vdwg.mxu0
      %4081 = vmatpush.bf16.msra.mxu0 %v2336
      %4082 = vmatpush.bf16.msra.mxu0 %v2328
      %4083 = vmatpush.bf16.msra.mxu0 %v2320
      %4084 = vmatpush.bf16.msra.mxu0 %v2312
      %4085 = vmatpush.bf16.msra.mxu0 %v2304
      %4086 = vmatpush.bf16.msra.mxu0 %v2296
      %4087 = vmatpush.bf16.msra.mxu0 %v2288
      %4088 = vmatpush.bf16.msra.mxu0 %v2280
      %4089 = vmatmul.bf16.gmra.mxu0 %v721
      %v4090 = vpop.f32.mrf.mxu0
      %v4091 = vadd.f32 0.0, %v4090
      %v4092 = vpop.f32.mrf.mxu0
      %v4093 = vadd.f32 0.0, %v4092
      %4094 = vdwg.mxu0
      %4095 = vmatpush.bf16.msra.mxu0 %v2400
      %4096 = vmatpush.bf16.msra.mxu0 %v2392
      %4097 = vmatpush.bf16.msra.mxu0 %v2384
      %4098 = vmatpush.bf16.msra.mxu0 %v2376
      %4099 = vmatpush.bf16.msra.mxu0 %v2368
      %4100 = vmatpush.bf16.msra.mxu0 %v2360
      %4101 = vmatpush.bf16.msra.mxu0 %v2352
      %4102 = vmatpush.bf16.msra.mxu0 %v2344
      %4103 = vmatmul.bf16.gmra.mxu0 %v722
      %v4104 = vpop.f32.mrf.mxu0
      %v4105 = vadd.f32 %v4091, %v4104
      %v4106 = vpop.f32.mrf.mxu0
      %v4107 = vadd.f32 %v4093, %v4106
      %4108 = vdwg.mxu0
      %4109 = vmatpush.bf16.msra.mxu0 %v2464
      %4110 = vmatpush.bf16.msra.mxu0 %v2456
      %4111 = vmatpush.bf16.msra.mxu0 %v2448
      %4112 = vmatpush.bf16.msra.mxu0 %v2440
      %4113 = vmatpush.bf16.msra.mxu0 %v2432
      %4114 = vmatpush.bf16.msra.mxu0 %v2424
      %4115 = vmatpush.bf16.msra.mxu0 %v2416
      %4116 = vmatpush.bf16.msra.mxu0 %v2408
      %4117 = vmatmul.bf16.gmra.mxu0 %v723
      %v4118 = vpop.f32.mrf.mxu0
      %v4119 = vadd.f32 %v4105, %v4118
      %v4120 = vpop.f32.mrf.mxu0
      %v4121 = vadd.f32 %v4107, %v4120
      %4122 = vdwg.mxu0
      %4123 = vmatpush.bf16.msra.mxu0 %v2528
      %4124 = vmatpush.bf16.msra.mxu0 %v2520
      %4125 = vmatpush.bf16.msra.mxu0 %v2512
      %4126 = vmatpush.bf16.msra.mxu0 %v2504
      %4127 = vmatpush.bf16.msra.mxu0 %v2496
      %4128 = vmatpush.bf16.msra.mxu0 %v2488
      %4129 = vmatpush.bf16.msra.mxu0 %v2480
      %4130 = vmatpush.bf16.msra.mxu0 %v2472
      %4131 = vmatmul.bf16.gmra.mxu0 %v724
      %v4132 = vpop.f32.mrf.mxu0
      %v4133 = vadd.f32 %v4119, %v4132
      %v4134 = vpop.f32.mrf.mxu0
      %v4135 = vadd.f32 %v4121, %v4134
      %4136 = vdwg.mxu0
      %4137 = vmatpush.bf16.msra.mxu0 %v2592
      %4138 = vmatpush.bf16.msra.mxu0 %v2584
      %4139 = vmatpush.bf16.msra.mxu0 %v2576
      %4140 = vmatpush.bf16.msra.mxu0 %v2568
      %4141 = vmatpush.bf16.msra.mxu0 %v2560
      %4142 = vmatpush.bf16.msra.mxu0 %v2552
      %4143 = vmatpush.bf16.msra.mxu0 %v2544
      %4144 = vmatpush.bf16.msra.mxu0 %v2536
      %4145 = vmatmul.bf16.gmra.mxu0 %v725
      %v4146 = vpop.f32.mrf.mxu0
      %v4147 = vadd.f32 %v4133, %v4146
      %v4148 = vpop.f32.mrf.mxu0
      %v4149 = vadd.f32 %v4135, %v4148
      %4150 = vdwg.mxu0
      %4151 = vmatpush.bf16.msra.mxu0 %v2656
      %4152 = vmatpush.bf16.msra.mxu0 %v2648
      %4153 = vmatpush.bf16.msra.mxu0 %v2640
      %4154 = vmatpush.bf16.msra.mxu0 %v2632
      %4155 = vmatpush.bf16.msra.mxu0 %v2624
      %4156 = vmatpush.bf16.msra.mxu0 %v2616
      %4157 = vmatpush.bf16.msra.mxu0 %v2608
      %4158 = vmatpush.bf16.msra.mxu0 %v2600
      %4159 = vmatmul.bf16.gmra.mxu0 %v726
      %v4160 = vpop.f32.mrf.mxu0
      %v4161 = vadd.f32 %v4147, %v4160
      %v4162 = vpop.f32.mrf.mxu0
      %v4163 = vadd.f32 %v4149, %v4162
      %4164 = vdwg.mxu0
      %4165 = vmatpush.bf16.msra.mxu0 %v2720
      %4166 = vmatpush.bf16.msra.mxu0 %v2712
      %4167 = vmatpush.bf16.msra.mxu0 %v2704
      %4168 = vmatpush.bf16.msra.mxu0 %v2696
      %4169 = vmatpush.bf16.msra.mxu0 %v2688
      %4170 = vmatpush.bf16.msra.mxu0 %v2680
      %4171 = vmatpush.bf16.msra.mxu0 %v2672
      %4172 = vmatpush.bf16.msra.mxu0 %v2664
      %4173 = vmatmul.bf16.gmra.mxu0 %v727
      %v4174 = vpop.f32.mrf.mxu0
      %v4175 = vadd.f32 %v4161, %v4174
      %v4176 = vpop.f32.mrf.mxu0
      %v4177 = vadd.f32 %v4163, %v4176
      %4178 = vdwg.mxu0
      %4179 = vmatpush.bf16.msra.mxu0 %v2784
      %4180 = vmatpush.bf16.msra.mxu0 %v2776
      %4181 = vmatpush.bf16.msra.mxu0 %v2768
      %4182 = vmatpush.bf16.msra.mxu0 %v2760
      %4183 = vmatpush.bf16.msra.mxu0 %v2752
      %4184 = vmatpush.bf16.msra.mxu0 %v2744
      %4185 = vmatpush.bf16.msra.mxu0 %v2736
      %4186 = vmatpush.bf16.msra.mxu0 %v2728
      %4187 = vmatmul.bf16.gmra.mxu0 %v728
      %v4188 = vpop.f32.mrf.mxu0
      %v4189 = vadd.f32 %v4175, %v4188
      %v4190 = vpop.f32.mrf.mxu0
      %v4191 = vadd.f32 %v4177, %v4190
      %4192 = vdwg.mxu0
      %v4193 = vmul.f32 %v3405, %v3405
      %v4194 = vmul.f32 %v3517, %v3517
      %v4195 = vmul.f32 %v3629, %v3629
      %v4196 = vmul.f32 %v3741, %v3741
      %v4197 = vmul.f32 %v3407, %v3407
      %v4198 = vmul.f32 %v3519, %v3519
      %v4199 = vmul.f32 %v3631, %v3631
      %v4200 = vmul.f32 %v3743, %v3743
      %v4201 = vmul.f32 %v3853, %v3853
      %v4202 = vmul.f32 %v3965, %v3965
      %v4203 = vmul.f32 %v4077, %v4077
      %v4204 = vmul.f32 %v4189, %v4189
      %v4205 = vmul.f32 %v3855, %v3855
      %v4206 = vmul.f32 %v3967, %v3967
      %v4207 = vmul.f32 %v4079, %v4079
      %v4208 = vmul.f32 %v4191, %v4191
      %v4209 = vadd.f32 %v4193, %v4201
      %v4210 = vadd.f32 %v4194, %v4202
      %v4211 = vadd.f32 %v4195, %v4203
      %v4212 = vadd.f32 %v4196, %v4204
      %v4213 = vadd.f32 %v4197, %v4205
      %v4214 = vadd.f32 %v4198, %v4206
      %v4215 = vadd.f32 %v4199, %v4207
      %v4216 = vadd.f32 %v4200, %v4208
      %v4217 = vrsqrt.pop %v4209
      %v4218 = vmul.f32 %v4217, %v4209
      %v4219 = vmul.f32 %v4218, %v4217
      %v4220 = vmul.f32 0.5, %v4219
      %v4221 = vsub.f32 1.5, %v4220
      %v4222 = vmul.f32 %v4217, %v4221
      %v4223 = vmul.f32 %v4209, %v4222
      %vm4224 = vcmp.eq.f32.partialorder %v4209, inf
      %v4225 = vsel %vm4224, %v4209, %v4223
      %vm4226 = vcmp.eq.f32.partialorder %v4209, 0.0
      %v4227 = vand.u32 %v4209, 2147483648
      %v4228 = vsel %vm4226, %v4227, %v4225
      %v4229 = vrsqrt.pop %v4210
      %v4230 = vmul.f32 %v4229, %v4210
      %v4231 = vmul.f32 %v4230, %v4229
      %v4232 = vmul.f32 0.5, %v4231
      %v4233 = vsub.f32 1.5, %v4232
      %v4234 = vmul.f32 %v4229, %v4233
      %v4235 = vmul.f32 %v4210, %v4234
      %vm4236 = vcmp.eq.f32.partialorder %v4210, inf
      %v4237 = vsel %vm4236, %v4210, %v4235
      %vm4238 = vcmp.eq.f32.partialorder %v4210, 0.0
      %v4239 = vand.u32 %v4210, 2147483648
      %v4240 = vsel %vm4238, %v4239, %v4237
      %v4241 = vrsqrt.pop %v4211
      %v4242 = vmul.f32 %v4241, %v4211
      %v4243 = vmul.f32 %v4242, %v4241
      %v4244 = vmul.f32 0.5, %v4243
      %v4245 = vsub.f32 1.5, %v4244
      %v4246 = vmul.f32 %v4241, %v4245
      %v4247 = vmul.f32 %v4211, %v4246
      %vm4248 = vcmp.eq.f32.partialorder %v4211, inf
      %v4249 = vsel %vm4248, %v4211, %v4247
      %vm4250 = vcmp.eq.f32.partialorder %v4211, 0.0
      %v4251 = vand.u32 %v4211, 2147483648
      %v4252 = vsel %vm4250, %v4251, %v4249
      %v4253 = vrsqrt.pop %v4212
      %v4254 = vmul.f32 %v4253, %v4212
      %v4255 = vmul.f32 %v4254, %v4253
      %v4256 = vmul.f32 0.5, %v4255
      %v4257 = vsub.f32 1.5, %v4256
      %v4258 = vmul.f32 %v4253, %v4257
      %v4259 = vmul.f32 %v4212, %v4258
      %vm4260 = vcmp.eq.f32.partialorder %v4212, inf
      %v4261 = vsel %vm4260, %v4212, %v4259
      %vm4262 = vcmp.eq.f32.partialorder %v4212, 0.0
      %v4263 = vand.u32 %v4212, 2147483648
      %v4264 = vsel %vm4262, %v4263, %v4261
      %v4265 = vrsqrt.pop %v4213
      %v4266 = vmul.f32 %v4265, %v4213
      %v4267 = vmul.f32 %v4266, %v4265
      %v4268 = vmul.f32 0.5, %v4267
      %v4269 = vsub.f32 1.5, %v4268
      %v4270 = vmul.f32 %v4265, %v4269
      %v4271 = vmul.f32 %v4213, %v4270
      %vm4272 = vcmp.eq.f32.partialorder %v4213, inf
      %v4273 = vsel %vm4272, %v4213, %v4271
      %vm4274 = vcmp.eq.f32.partialorder %v4213, 0.0
      %v4275 = vand.u32 %v4213, 2147483648
      %v4276 = vsel %vm4274, %v4275, %v4273
      %v4277 = vrsqrt.pop %v4214
      %v4278 = vmul.f32 %v4277, %v4214
      %v4279 = vmul.f32 %v4278, %v4277
      %v4280 = vmul.f32 0.5, %v4279
      %v4281 = vsub.f32 1.5, %v4280
      %v4282 = vmul.f32 %v4277, %v4281
      %v4283 = vmul.f32 %v4214, %v4282
      %vm4284 = vcmp.eq.f32.partialorder %v4214, inf
      %v4285 = vsel %vm4284, %v4214, %v4283
      %vm4286 = vcmp.eq.f32.partialorder %v4214, 0.0
      %v4287 = vand.u32 %v4214, 2147483648
      %v4288 = vsel %vm4286, %v4287, %v4285
      %v4289 = vrsqrt.pop %v4215
      %v4290 = vmul.f32 %v4289, %v4215
      %v4291 = vmul.f32 %v4290, %v4289
      %v4292 = vmul.f32 0.5, %v4291
      %v4293 = vsub.f32 1.5, %v4292
      %v4294 = vmul.f32 %v4289, %v4293
      %v4295 = vmul.f32 %v4215, %v4294
      %vm4296 = vcmp.eq.f32.partialorder %v4215, inf
      %v4297 = vsel %vm4296, %v4215, %v4295
      %vm4298 = vcmp.eq.f32.partialorder %v4215, 0.0
      %v4299 = vand.u32 %v4215, 2147483648
      %v4300 = vsel %vm4298, %v4299, %v4297
      %v4301 = vrsqrt.pop %v4216
      %v4302 = vmul.f32 %v4301, %v4216
      %v4303 = vmul.f32 %v4302, %v4301
      %v4304 = vmul.f32 0.5, %v4303
      %v4305 = vsub.f32 1.5, %v4304
      %v4306 = vmul.f32 %v4301, %v4305
      %v4307 = vmul.f32 %v4216, %v4306
      %vm4308 = vcmp.eq.f32.partialorder %v4216, inf
      %v4309 = vsel %vm4308, %v4216, %v4307
      %vm4310 = vcmp.eq.f32.partialorder %v4216, 0.0
      %v4311 = vand.u32 %v4216, 2147483648
      %v4312 = vsel %vm4310, %v4311, %v4309
      %v4313 = vpack.c.bf16 %v4276, %v4228
      %v4314 = vpack.c.bf16 %v4288, %v4240
      %v4315 = vpack.c.bf16 %v4300, %v4252
      %v4316 = vpack.c.bf16 %v4312, %v4264
      %v4317 = vld [vmem:[%s2] sm:$0xf]
      %v4318 = vld [vmem:[%s2 + $0x4] sm:$0xf]
      %v4319 = vld [vmem:[%s2 + $0x8] sm:$0xf]
      %v4320 = vld [vmem:[%s2 + $0xc] sm:$0xf]
      %v4321 = vld [vmem:[%s2 + $0x10] sm:$0xf]
      %v4322 = vld [vmem:[%s2 + $0x14] sm:$0xf]
      %v4323 = vld [vmem:[%s2 + $0x18] sm:$0xf]
      %v4324 = vld [vmem:[%s2 + $0x1c] sm:$0xf]
      %v4325 = vld [vmem:[%s2 + $0x20] sm:$0xf]
      %v4326 = vld [vmem:[%s2 + $0x24] sm:$0xf]
      %v4327 = vld [vmem:[%s2 + $0x28] sm:$0xf]
      %v4328 = vld [vmem:[%s2 + $0x2c] sm:$0xf]
      %v4329 = vld [vmem:[%s2 + $0x30] sm:$0xf]
      %v4330 = vld [vmem:[%s2 + $0x34] sm:$0xf]
      %v4331 = vld [vmem:[%s2 + $0x38] sm:$0xf]
      %v4332 = vld [vmem:[%s2 + $0x3c] sm:$0xf]
      %v4333 = vld [vmem:[%s2 + $0x40] sm:$0xf]
      %v4334 = vld [vmem:[%s2 + $0x44] sm:$0xf]
      %v4335 = vld [vmem:[%s2 + $0x48] sm:$0xf]
      %v4336 = vld [vmem:[%s2 + $0x4c] sm:$0xf]
      %v4337 = vld [vmem:[%s2 + $0x50] sm:$0xf]
      %v4338 = vld [vmem:[%s2 + $0x54] sm:$0xf]
      %v4339 = vld [vmem:[%s2 + $0x58] sm:$0xf]
      %v4340 = vld [vmem:[%s2 + $0x5c] sm:$0xf]
      %v4341 = vld [vmem:[%s2 + $0x60] sm:$0xf]
      %v4342 = vld [vmem:[%s2 + $0x64] sm:$0xf]
      %v4343 = vld [vmem:[%s2 + $0x68] sm:$0xf]
      %v4344 = vld [vmem:[%s2 + $0x6c] sm:$0xf]
      %v4345 = vld [vmem:[%s2 + $0x70] sm:$0xf]
      %v4346 = vld [vmem:[%s2 + $0x74] sm:$0xf]
      %v4347 = vld [vmem:[%s2 + $0x78] sm:$0xf]
      %v4348 = vld [vmem:[%s2 + $0x7c] sm:$0xf]
      %v4349 = vld [vmem:[%s2 + $0x80] sm:$0xf]
      %v4350 = vld [vmem:[%s2 + $0x84] sm:$0xf]
      %v4351 = vld [vmem:[%s2 + $0x88] sm:$0xf]
      %v4352 = vld [vmem:[%s2 + $0x8c] sm:$0xf]
      %v4353 = vld [vmem:[%s2 + $0x90] sm:$0xf]
      %v4354 = vld [vmem:[%s2 + $0x94] sm:$0xf]
      %v4355 = vld [vmem:[%s2 + $0x98] sm:$0xf]
      %v4356 = vld [vmem:[%s2 + $0x9c] sm:$0xf]
      %v4357 = vld [vmem:[%s2 + $0xa0] sm:$0xf]
      %v4358 = vld [vmem:[%s2 + $0xa4] sm:$0xf]
      %v4359 = vld [vmem:[%s2 + $0xa8] sm:$0xf]
      %v4360 = vld [vmem:[%s2 + $0xac] sm:$0xf]
      %v4361 = vld [vmem:[%s2 + $0xb0] sm:$0xf]
      %v4362 = vld [vmem:[%s2 + $0xb4] sm:$0xf]
      %v4363 = vld [vmem:[%s2 + $0xb8] sm:$0xf]
      %v4364 = vld [vmem:[%s2 + $0xbc] sm:$0xf]
      %v4365 = vld [vmem:[%s2 + $0xc0] sm:$0xf]
      %v4366 = vld [vmem:[%s2 + $0xc4] sm:$0xf]
      %v4367 = vld [vmem:[%s2 + $0xc8] sm:$0xf]
      %v4368 = vld [vmem:[%s2 + $0xcc] sm:$0xf]
      %v4369 = vld [vmem:[%s2 + $0xd0] sm:$0xf]
      %v4370 = vld [vmem:[%s2 + $0xd4] sm:$0xf]
      %v4371 = vld [vmem:[%s2 + $0xd8] sm:$0xf]
      %v4372 = vld [vmem:[%s2 + $0xdc] sm:$0xf]
      %v4373 = vld [vmem:[%s2 + $0xe0] sm:$0xf]
      %v4374 = vld [vmem:[%s2 + $0xe4] sm:$0xf]
      %v4375 = vld [vmem:[%s2 + $0xe8] sm:$0xf]
      %v4376 = vld [vmem:[%s2 + $0xec] sm:$0xf]
      %v4377 = vld [vmem:[%s2 + $0xf0] sm:$0xf]
      %v4378 = vld [vmem:[%s2 + $0xf4] sm:$0xf]
      %v4379 = vld [vmem:[%s2 + $0xf8] sm:$0xf]
      %v4380 = vld [vmem:[%s2 + $0xfc] sm:$0xf]
      %v4445 = vunpack.c.l.b16 %v4317
      %v4446 = vunpack.c.l.b16 %v4318
      %v4447 = vunpack.c.l.b16 %v4319
      %v4448 = vunpack.c.l.b16 %v4320
      %v4449 = vunpack.c.l.b16 %v4321
      %v4450 = vunpack.c.l.b16 %v4322
      %v4451 = vunpack.c.l.b16 %v4323
      %v4452 = vunpack.c.l.b16 %v4324
      %v4453 = vunpack.c.l.b16 %v4325
      %v4454 = vunpack.c.l.b16 %v4326
      %v4455 = vunpack.c.l.b16 %v4327
      %v4456 = vunpack.c.l.b16 %v4328
      %v4457 = vunpack.c.l.b16 %v4329
      %v4458 = vunpack.c.l.b16 %v4330
      %v4459 = vunpack.c.l.b16 %v4331
      %v4460 = vunpack.c.l.b16 %v4332
      %v4461 = vunpack.c.l.b16 %v4333
      %v4462 = vunpack.c.l.b16 %v4334
      %v4463 = vunpack.c.l.b16 %v4335
      %v4464 = vunpack.c.l.b16 %v4336
      %v4465 = vunpack.c.l.b16 %v4337
      %v4466 = vunpack.c.l.b16 %v4338
      %v4467 = vunpack.c.l.b16 %v4339
      %v4468 = vunpack.c.l.b16 %v4340
      %v4469 = vunpack.c.l.b16 %v4341
      %v4470 = vunpack.c.l.b16 %v4342
      %v4471 = vunpack.c.l.b16 %v4343
      %v4472 = vunpack.c.l.b16 %v4344
      %v4473 = vunpack.c.l.b16 %v4345
      %v4474 = vunpack.c.l.b16 %v4346
      %v4475 = vunpack.c.l.b16 %v4347
      %v4476 = vunpack.c.l.b16 %v4348
      %v4477 = vunpack.c.l.b16 %v4349
      %v4478 = vunpack.c.l.b16 %v4350
      %v4479 = vunpack.c.l.b16 %v4351
      %v4480 = vunpack.c.l.b16 %v4352
      %v4481 = vunpack.c.l.b16 %v4353
      %v4482 = vunpack.c.l.b16 %v4354
      %v4483 = vunpack.c.l.b16 %v4355
      %v4484 = vunpack.c.l.b16 %v4356
      %v4485 = vunpack.c.l.b16 %v4357
      %v4486 = vunpack.c.l.b16 %v4358
      %v4487 = vunpack.c.l.b16 %v4359
      %v4488 = vunpack.c.l.b16 %v4360
      %v4489 = vunpack.c.l.b16 %v4361
      %v4490 = vunpack.c.l.b16 %v4362
      %v4491 = vunpack.c.l.b16 %v4363
      %v4492 = vunpack.c.l.b16 %v4364
      %v4493 = vunpack.c.l.b16 %v4365
      %v4494 = vunpack.c.l.b16 %v4366
      %v4495 = vunpack.c.l.b16 %v4367
      %v4496 = vunpack.c.l.b16 %v4368
      %v4497 = vunpack.c.l.b16 %v4369
      %v4498 = vunpack.c.l.b16 %v4370
      %v4499 = vunpack.c.l.b16 %v4371
      %v4500 = vunpack.c.l.b16 %v4372
      %v4501 = vunpack.c.l.b16 %v4373
      %v4502 = vunpack.c.l.b16 %v4374
      %v4503 = vunpack.c.l.b16 %v4375
      %v4504 = vunpack.c.l.b16 %v4376
      %v4505 = vunpack.c.l.b16 %v4377
      %v4506 = vunpack.c.l.b16 %v4378
      %v4507 = vunpack.c.l.b16 %v4379
      %v4508 = vunpack.c.l.b16 %v4380
      %v4509 = vpack.c.b16 %v4446, %v4445
      %v4510 = vpack.c.b16 %v4448, %v4447
      %v4511 = vpack.c.b16 %v4450, %v4449
      %v4512 = vpack.c.b16 %v4452, %v4451
      %v4513 = vpack.c.b16 %v4454, %v4453
      %v4514 = vpack.c.b16 %v4456, %v4455
      %v4515 = vpack.c.b16 %v4458, %v4457
      %v4516 = vpack.c.b16 %v4460, %v4459
      %v4517 = vpack.c.b16 %v4462, %v4461
      %v4518 = vpack.c.b16 %v4464, %v4463
      %v4519 = vpack.c.b16 %v4466, %v4465
      %v4520 = vpack.c.b16 %v4468, %v4467
      %v4521 = vpack.c.b16 %v4470, %v4469
      %v4522 = vpack.c.b16 %v4472, %v4471
      %v4523 = vpack.c.b16 %v4474, %v4473
      %v4524 = vpack.c.b16 %v4476, %v4475
      %v4525 = vpack.c.b16 %v4478, %v4477
      %v4526 = vpack.c.b16 %v4480, %v4479
      %v4527 = vpack.c.b16 %v4482, %v4481
      %v4528 = vpack.c.b16 %v4484, %v4483
      %v4529 = vpack.c.b16 %v4486, %v4485
      %v4530 = vpack.c.b16 %v4488, %v4487
      %v4531 = vpack.c.b16 %v4490, %v4489
      %v4532 = vpack.c.b16 %v4492, %v4491
      %v4533 = vpack.c.b16 %v4494, %v4493
      %v4534 = vpack.c.b16 %v4496, %v4495
      %v4535 = vpack.c.b16 %v4498, %v4497
      %v4536 = vpack.c.b16 %v4500, %v4499
      %v4537 = vpack.c.b16 %v4502, %v4501
      %v4538 = vpack.c.b16 %v4504, %v4503
      %v4539 = vpack.c.b16 %v4506, %v4505
      %v4540 = vpack.c.b16 %v4508, %v4507
      %4573 = vmatpush.bf16.msra.mxu0 %v4516
      %4574 = vmatpush.bf16.msra.mxu0 %v4515
      %4575 = vmatpush.bf16.msra.mxu0 %v4514
      %4576 = vmatpush.bf16.msra.mxu0 %v4513
      %4577 = vmatpush.bf16.msra.mxu0 %v4512
      %4578 = vmatpush.bf16.msra.mxu0 %v4511
      %4579 = vmatpush.bf16.msra.mxu0 %v4510
      %4580 = vmatpush.bf16.msra.mxu0 %v4509
      %4581 = vmatmul.bf16.gmra.mxu0 %v4313
      %v4582 = vpop.f32.mrf.mxu0
      %v4583 = vadd.f32 0.0, %v4582
      %v4584 = vpop.f32.mrf.mxu0
      %v4585 = vadd.f32 0.0, %v4584
      %4586 = vdwg.mxu0
      %4587 = vmatpush.bf16.msra.mxu0 %v4524
      %4588 = vmatpush.bf16.msra.mxu0 %v4523
      %4589 = vmatpush.bf16.msra.mxu0 %v4522
      %4590 = vmatpush.bf16.msra.mxu0 %v4521
      %4591 = vmatpush.bf16.msra.mxu0 %v4520
      %4592 = vmatpush.bf16.msra.mxu0 %v4519
      %4593 = vmatpush.bf16.msra.mxu0 %v4518
      %4594 = vmatpush.bf16.msra.mxu0 %v4517
      %4595 = vmatmul.bf16.gmra.mxu0 %v4314
      %v4596 = vpop.f32.mrf.mxu0
      %v4597 = vadd.f32 %v4583, %v4596
      %v4598 = vpop.f32.mrf.mxu0
      %v4599 = vadd.f32 %v4585, %v4598
      %4600 = vdwg.mxu0
      %4601 = vmatpush.bf16.msra.mxu0 %v4532
      %4602 = vmatpush.bf16.msra.mxu0 %v4531
      %4603 = vmatpush.bf16.msra.mxu0 %v4530
      %4604 = vmatpush.bf16.msra.mxu0 %v4529
      %4605 = vmatpush.bf16.msra.mxu0 %v4528
      %4606 = vmatpush.bf16.msra.mxu0 %v4527
      %4607 = vmatpush.bf16.msra.mxu0 %v4526
      %4608 = vmatpush.bf16.msra.mxu0 %v4525
      %4609 = vmatmul.bf16.gmra.mxu0 %v4315
      %v4610 = vpop.f32.mrf.mxu0
      %v4611 = vadd.f32 %v4597, %v4610
      %v4612 = vpop.f32.mrf.mxu0
      %v4613 = vadd.f32 %v4599, %v4612
      %4614 = vdwg.mxu0
      %4615 = vmatpush.bf16.msra.mxu0 %v4540
      %4616 = vmatpush.bf16.msra.mxu0 %v4539
      %4617 = vmatpush.bf16.msra.mxu0 %v4538
      %4618 = vmatpush.bf16.msra.mxu0 %v4537
      %4619 = vmatpush.bf16.msra.mxu0 %v4536
      %4620 = vmatpush.bf16.msra.mxu0 %v4535
      %4621 = vmatpush.bf16.msra.mxu0 %v4534
      %4622 = vmatpush.bf16.msra.mxu0 %v4533
      %4623 = vmatmul.bf16.gmra.mxu0 %v4316
      %v4624 = vpop.f32.mrf.mxu0
      %v4625 = vadd.f32 %v4611, %v4624
      %v4626 = vpop.f32.mrf.mxu0
      %v4627 = vadd.f32 %v4613, %v4626
      %4628 = vdwg.mxu0
      %4629 = vst [vmem:[%s175] sm:$0xff] %v4625
      %4630 = vst [vmem:[%s175 + $0x8] sm:$0xff] %v4627
      %s4631 = smul.u32 2, %s14
      %p4632 = scmp.lt.s32.totalorder %s4631, 3
      %s4633 = scalar_select %p4632, %s4631, 3
      %s4634 = smul.addr %s4633, 8
      %s4635 = scalar_lea.vmem %s3, %s4634
      // Predicated region
      $region33: #{mel_spectrogram.1} parent=31 // pred_check
        %p4636 = pneg %p100
      $region34: #{mel_spectrogram.1} parent=31 // pred_check_branch
        %4638 = sbr.rel (%p4636) target = $region36
      $region35: #{mel_spectrogram.1} parent=31 // pred_region
        %s4639 = smul.u32 2, %s14
      $region36: #{mel_spectrogram.1} parent=31 // pred_fallthru
        _
    $region32: #{mel_spectrogram.1} parent=5 // pred_fallthru
      _
    %p4640 = scmp.le.s32.totalorder 2, %s9
    // Predicated region
    $region37: #{mel_spectrogram.1} parent=5 // pred_check
      %p4641 = pneg %p4640
    $region38: #{mel_spectrogram.1} parent=5 // pred_check_branch
      %4643 = sbr.rel (%p4641) target = $region40
    $region39: #{mel_spectrogram.1} parent=5 // pred_region
      %s4644 = ssub.s32 %s9, 2
      // Predicated region
      $region41: #{mel_spectrogram.1} parent=39 // pred_check
        %p4645 = pneg %p106
      $region42: #{mel_spectrogram.1} parent=39 // pred_check_branch
        %4647 = sbr.rel (%p4645) target = $region44
      $region43: #{mel_spectrogram.1} parent=39 // pred_region
        %s4648 = smul.u32 2, %s15
        %p4649 = scmp.lt.s32.totalorder %s4648, 3
        %s4650 = scalar_select %p4649, %s4648, 3
        %s4651 = smul.addr %s4650, 8
        %s4652 = scalar_lea.vmem %s3, %s4651
      $region44: #{mel_spectrogram.1} parent=39 // pred_fallthru
        _
    $region40: #{mel_spectrogram.1} parent=5 // pred_fallthru
      _
  $region6: #{mel_spectrogram.1} parent=0 // loop_footer
    %s13 = sadd.s32 1, %s9
  $region7: #{mel_spectrogram.1} parent=0 // loop_footer_branch
    %8 = sbr.rel target = $region3
  $region8: #{mel_spectrogram.1} parent=0 // loop_exit
    _

</llo_original>
